<compile_context>
chip_gen: v6e
topology: v6e:2x2x1
jax: 0.10.0
libtpu: 0.0.40
codegen_flags: <defaults>
</compile_context>

<pallas_src>
import functools
import math

import jax
import jax.numpy as jnp
from jax import lax
from jax.experimental import pallas as pl
from jax.experimental.pallas import tpu as pltpu

EPS = 1e-6  # LayerNormalizer epsilon (biased-variance layer norm)


def _layer_norm(y, gamma, beta):
    mu = jnp.mean(y, axis=-1, keepdims=True)
    var = jnp.mean((y - mu) ** 2, axis=-1, keepdims=True)
    return gamma * (y - mu) * lax.rsqrt(var + EPS) + beta


def encoder_block_kernel(
    x_q_ref, x_kv_ref, mask_ref,
    wq_ref, wk_ref, wv_ref, wo_ref,
    bq_ref, bk_ref, bv_ref, bo_ref,
    g1_ref, be1_ref,
    w1_ref, bf1_ref, w2_ref, bf2_ref,
    g2_ref, be2_ref,
    o_ref,
    k_scr, v_scr,
    *, num_heads,
):
    qt = pl.program_id(1)

    # K/V projections: compute once per batch element, cache in bf16 scratch.
    @pl.when(qt == 0)
    def _():
        xf = x_kv_ref[0].astype(jnp.bfloat16)                       # (S, E)
        k = jnp.dot(xf, wk_ref[...], preferred_element_type=jnp.float32) + bk_ref[...]
        v = jnp.dot(xf, wv_ref[...], preferred_element_type=jnp.float32) + bv_ref[...]
        k_scr[...] = k.astype(jnp.bfloat16)
        v_scr[...] = v.astype(jnp.bfloat16)

    x_q = x_q_ref[0]                                                # (TQ, E) f32 residual
    TQ, E = x_q.shape
    D = E // num_heads
    scale = 1.0 / math.sqrt(D)

    # Q projection for this query tile (bf16 MXU inputs, f32 accumulation).
    q = jnp.dot(x_q.astype(jnp.bfloat16), wq_ref[...],
                preferred_element_type=jnp.float32) + bq_ref[...]
    qb = (q * scale).astype(jnp.bfloat16)                           # fold 1/sqrt(D) into q
    kb = k_scr[...]                                                 # (S, E) bf16
    vb = v_scr[...]                                                 # (S, E) bf16
    mask_add = mask_ref[...]                                        # (TQ, S) additive mask
    wo = wo_ref[...]                                                # (E, E)  bf16

    # Per-head attention; each head's context is folded directly into the
    # output projection accumulator (no concat, no explicit transposes, and
    # the serial accumulation keeps only one (TQ, S) score block live).
    dn_qk = (((1,), (1,)), ((), ()))     # contract D: (TQ,D) x (S,D) -> (TQ,S)
    attn = jnp.zeros((TQ, E), jnp.float32)
    for h in range(num_heads):           # small static unroll over heads
        lo = h * D
        qh = qb[:, lo:lo + D]
        kh = kb[:, lo:lo + D]
        vh = vb[:, lo:lo + D]
        s = lax.dot_general(qh, kh, dn_qk, preferred_element_type=jnp.float32)
        s = s + mask_add
        m = jnp.max(s, axis=-1, keepdims=True)
        p = jnp.exp(s - m)
        p = p * pl.reciprocal(jnp.sum(p, axis=-1, keepdims=True), approx=True)
        ctx = jnp.dot(p.astype(jnp.bfloat16), vh, preferred_element_type=jnp.float32)
        attn = attn + jnp.dot(ctx.astype(jnp.bfloat16), wo[lo:lo + D, :],
                              preferred_element_type=jnp.float32)
    attn = attn + bo_ref[...]

    # LayerNorm 1 (f32 stats) + skip connection of the original input.
    out1 = _layer_norm(attn, g1_ref[...], be1_ref[...]) + x_q

    # Feed-forward: Linear -> ReLU -> Linear (bf16 MXU inputs, f32 accum).
    h1 = jnp.dot(out1.astype(jnp.bfloat16), w1_ref[...],
                 preferred_element_type=jnp.float32) + bf1_ref[...]
    h1 = jnp.maximum(h1, 0.0)
    ffn = jnp.dot(h1.astype(jnp.bfloat16), w2_ref[...],
                  preferred_element_type=jnp.float32) + bf2_ref[...]

    # LayerNorm 2 + skip connection of out1.
    o_ref[0] = (_layer_norm(ffn, g2_ref[...], be2_ref[...]) + out1).astype(o_ref.dtype)


def encoder_block(x, mask, params, *, num_heads=8, q_tile=None):
    B, S, E = x.shape
    F = params["w1"].shape[1]
    assert E % num_heads == 0
    if q_tile is None:
        q_tile = S if S <= 256 else 256
    assert S % q_tile == 0 and (q_tile == S or q_tile % 8 == 0)
    n_qt = S // q_tile

    bf16 = jnp.bfloat16
    f32 = jnp.float32

    # Additive mask hoisted out of the per-head loop: 0 where attended, -1e9 masked.
    mask_add = (mask.astype(f32) - 1.0) * 1e9

    def const_spec(shape):
        n = len(shape)
        return pl.BlockSpec(shape, lambda b, qt, _n=n: (0,) * _n)

    in_specs = [
        pl.BlockSpec((1, q_tile, E), lambda b, qt: (b, qt, 0)),   # x (query tile)
        pl.BlockSpec((1, S, E), lambda b, qt: (b, 0, 0)),         # x (full seq, K/V source)
        pl.BlockSpec((q_tile, S), lambda b, qt: (qt, 0)),         # additive mask tile
        const_spec((E, E)), const_spec((E, E)),                   # wq, wk
        const_spec((E, E)), const_spec((E, E)),                   # wv, wo
        const_spec((1, E)), const_spec((1, E)),                   # bq, bk
        const_spec((1, E)), const_spec((1, E)),                   # bv, bo
        const_spec((1, E)), const_spec((1, E)),                   # gamma1, beta1
        const_spec((E, F)), const_spec((1, F)),                   # ff w1, b1
        const_spec((F, E)), const_spec((1, E)),                   # ff w2, b2
        const_spec((1, E)), const_spec((1, E)),                   # gamma2, beta2
    ]
    out_specs = pl.BlockSpec((1, q_tile, E), lambda b, qt: (b, qt, 0))

    # TODO(synk): for production shapes on v7x, add pipeline_mode=pl.Buffered(1)
    # on the grid-invariant weight specs (halves resident weight VMEM) and tile
    # the FFN over F with an extra "arbitrary" grid axis if w1/w2 still don't fit.
    return pl.pallas_call(
        functools.partial(encoder_block_kernel, num_heads=num_heads),
        out_shape=jax.ShapeDtypeStruct((B, S, E), f32),
        grid_spec=pltpu.PrefetchScalarGridSpec(
            num_scalar_prefetch=0,
            grid=(B, n_qt),
            in_specs=in_specs,
            out_specs=out_specs,
            scratch_shapes=[
                pltpu.VMEM((S, E), bf16),   # cached K projection
                pltpu.VMEM((S, E), bf16),   # cached V projection
            ],
        ),
        compiler_params=pltpu.CompilerParams(
            # batch axis -> megacore-parallel; query-tile axis carries the K/V
            # scratch so it must stay sequential ("arbitrary").
            dimension_semantics=("parallel", "arbitrary"),
            vmem_limit_bytes=64 * 1024 * 1024,
        ),
    )(
        x, x, mask_add,
        params["wq"].astype(bf16), params["wk"].astype(bf16),
        params["wv"].astype(bf16), params["wo"].astype(bf16),
        params["bq"], params["bk"], params["bv"], params["bo"],
        params["g1"], params["be1"],
        params["w1"].astype(bf16), params["bf1"],
        params["w2"].astype(bf16), params["bf2"],
        params["g2"], params["be2"],
    )


def reference_encoder_block(x, mask, p, *, num_heads=8):
    """Pure-JAX fp32 reference for correctness checking."""
    B, S, E = x.shape
    D = E // num_heads
    scale = 1.0 / jnp.sqrt(jnp.float32(D))

    q = x @ p["wq"] + p["bq"]
    k = x @ p["wk"] + p["bk"]
    v = x @ p["wv"] + p["bv"]
    q = q.reshape(B, S, num_heads, D).transpose(0, 2, 1, 3)
    k = k.reshape(B, S, num_heads, D).transpose(0, 2, 1, 3)
    v = v.reshape(B, S, num_heads, D).transpose(0, 2, 1, 3)
    scores = jnp.einsum("bhqd,bhkd->bhqk", q, k) * scale
    scores = jnp.where(mask[None, None] > 0, scores, -1e9)
    attn = jax.nn.softmax(scores, axis=-1)
    out = jnp.einsum("bhqk,bhkd->bhqd", attn, v)
    out = out.transpose(0, 2, 1, 3).reshape(B, S, E)
    out = out @ p["wo"] + p["bo"]

    def ln(y, g, b):
        mu = jnp.mean(y, axis=-1, keepdims=True)
        var = jnp.mean((y - mu) ** 2, axis=-1, keepdims=True)
        return g * (y - mu) * lax.rsqrt(var + EPS) + b

    out1 = ln(out, p["g1"], p["be1"]) + x
    ffn = jnp.maximum(out1 @ p["w1"] + p["bf1"], 0.0) @ p["w2"] + p["bf2"]
    return ln(ffn, p["g2"], p["be2"]) + out1


def init_params(key, embedding_dims, expansion_dims):
    E, F = embedding_dims, expansion_dims
    ks = jax.random.split(key, 6)
    std = 0.02
    return {
        "wq": jax.random.normal(ks[0], (E, E), jnp.float32) * std,
        "bq": jnp.zeros((1, E), jnp.float32),
        "wk": jax.random.normal(ks[1], (E, E), jnp.float32) * std,
        "bk": jnp.zeros((1, E), jnp.float32),
        "wv": jax.random.normal(ks[2], (E, E), jnp.float32) * std,
        "bv": jnp.zeros((1, E), jnp.float32),
        "wo": jax.random.normal(ks[3], (E, E), jnp.float32) * std,
        "bo": jnp.zeros((1, E), jnp.float32),
        "g1": jnp.ones((1, E), jnp.float32),
        "be1": jnp.zeros((1, E), jnp.float32),
        "w1": jax.random.normal(ks[4], (E, F), jnp.float32) * std,
        "bf1": jnp.zeros((1, F), jnp.float32),
        "w2": jax.random.normal(ks[5], (F, E), jnp.float32) * std,
        "bf2": jnp.zeros((1, E), jnp.float32),
        "g2": jnp.ones((1, E), jnp.float32),
        "be2": jnp.zeros((1, E), jnp.float32),
    }


if __name__ == "__main__":
    B, S, E, F, H = 2, 8, 32, 64, 8   # batch, seq, embedding, expansion, heads

    key = jax.random.PRNGKey(0)
    k_x, k_p = jax.random.split(key)
    x = jax.random.normal(k_x, (B, S, E), jnp.float32)
    params = init_params(k_p, E, F)

    # source mask (S, S): last key position is "padding" -> masked out
    mask = jnp.ones((S, S), jnp.float32).at[:, -1].set(0.0)

    out = jax.block_until_ready(encoder_block(x, mask, params, num_heads=H))
    ref = reference_encoder_block(x, mask, params, num_heads=H)

    assert out.shape == (B, S, E)
    # bf16 MXU inputs + approximate reciprocal -> looser tolerance than pure-f32.
    assert jnp.allclose(out, ref, atol=5e-2, rtol=5e-2), "mismatch vs reference"

    print("KERNEL_OK")
</pallas_src>

<mosaic_0001>
module attributes {stable_mosaic.version = 11 : i64} {
  func.func @encoder_block_kernel(%arg0: i32, %arg1: i32, %arg2: memref<1x8x32xf32, #tpu.memory_space<vmem>>, %arg3: memref<1x8x32xf32, #tpu.memory_space<vmem>>, %arg4: memref<8x8xf32, #tpu.memory_space<vmem>>, %arg5: memref<32x32xbf16, #tpu.memory_space<vmem>>, %arg6: memref<32x32xbf16, #tpu.memory_space<vmem>>, %arg7: memref<32x32xbf16, #tpu.memory_space<vmem>>, %arg8: memref<32x32xbf16, #tpu.memory_space<vmem>>, %arg9: memref<1x32xf32, #tpu.memory_space<vmem>>, %arg10: memref<1x32xf32, #tpu.memory_space<vmem>>, %arg11: memref<1x32xf32, #tpu.memory_space<vmem>>, %arg12: memref<1x32xf32, #tpu.memory_space<vmem>>, %arg13: memref<1x32xf32, #tpu.memory_space<vmem>>, %arg14: memref<1x32xf32, #tpu.memory_space<vmem>>, %arg15: memref<32x64xbf16, #tpu.memory_space<vmem>>, %arg16: memref<1x64xf32, #tpu.memory_space<vmem>>, %arg17: memref<64x32xbf16, #tpu.memory_space<vmem>>, %arg18: memref<1x32xf32, #tpu.memory_space<vmem>>, %arg19: memref<1x32xf32, #tpu.memory_space<vmem>>, %arg20: memref<1x32xf32, #tpu.memory_space<vmem>>, %arg21: memref<1x8x32xf32, #tpu.memory_space<vmem>>, %arg22: memref<8x32xbf16, #tpu.memory_space<vmem>>, %arg23: memref<8x32xbf16, #tpu.memory_space<vmem>>) attributes {dimension_semantics = [#tpu.dimension_semantics<parallel>, #tpu.dimension_semantics<arbitrary>], iteration_bounds = array<i64: 2, 1>, scalar_prefetch = 0 : i64, scratch_operands = 2 : i64, tpu.core_type = #tpu.core_type<tc>, window_params = [{transform_indices = @transform_0, window_bounds = array<i64: 1, 8, 32>}, {transform_indices = @transform_1, window_bounds = array<i64: 1, 8, 32>}, {transform_indices = @transform_2, window_bounds = array<i64: 8, 8>}, {pipeline_mode = #tpu.pipeline_mode<synchronous>, transform_indices = @transform_3, window_bounds = array<i64: 32, 32>}, {pipeline_mode = #tpu.pipeline_mode<synchronous>, transform_indices = @transform_4, window_bounds = array<i64: 32, 32>}, {pipeline_mode = #tpu.pipeline_mode<synchronous>, transform_indices = @transform_5, window_bounds = array<i64: 32, 32>}, {pipeline_mode = #tpu.pipeline_mode<synchronous>, transform_indices = @transform_6, window_bounds = array<i64: 32, 32>}, {pipeline_mode = #tpu.pipeline_mode<synchronous>, transform_indices = @transform_7, window_bounds = array<i64: 1, 32>}, {pipeline_mode = #tpu.pipeline_mode<synchronous>, transform_indices = @transform_8, window_bounds = array<i64: 1, 32>}, {pipeline_mode = #tpu.pipeline_mode<synchronous>, transform_indices = @transform_9, window_bounds = array<i64: 1, 32>}, {pipeline_mode = #tpu.pipeline_mode<synchronous>, transform_indices = @transform_10, window_bounds = array<i64: 1, 32>}, {pipeline_mode = #tpu.pipeline_mode<synchronous>, transform_indices = @transform_11, window_bounds = array<i64: 1, 32>}, {pipeline_mode = #tpu.pipeline_mode<synchronous>, transform_indices = @transform_12, window_bounds = array<i64: 1, 32>}, {pipeline_mode = #tpu.pipeline_mode<synchronous>, transform_indices = @transform_13, window_bounds = array<i64: 32, 64>}, {pipeline_mode = #tpu.pipeline_mode<synchronous>, transform_indices = @transform_14, window_bounds = array<i64: 1, 64>}, {pipeline_mode = #tpu.pipeline_mode<synchronous>, transform_indices = @transform_15, window_bounds = array<i64: 64, 32>}, {pipeline_mode = #tpu.pipeline_mode<synchronous>, transform_indices = @transform_16, window_bounds = array<i64: 1, 32>}, {pipeline_mode = #tpu.pipeline_mode<synchronous>, transform_indices = @transform_17, window_bounds = array<i64: 1, 32>}, {pipeline_mode = #tpu.pipeline_mode<synchronous>, transform_indices = @transform_18, window_bounds = array<i64: 1, 32>}, {transform_indices = @transform_19, window_bounds = array<i64: 1, 8, 32>}]} {
    %c0_i32 = arith.constant 0 : i32
    %0 = arith.cmpi eq, %arg1, %c0_i32 : i32
    %1 = arith.extui %0 : i1 to i32
    %c0_i32_0 = arith.constant 0 : i32
    %2 = arith.cmpi ne, %1, %c0_i32_0 : i32
    scf.if %2 {
      %c0_91 = arith.constant 0 : index
      %c0_92 = arith.constant 0 : index
      %c0_93 = arith.constant 0 : index
      %257 = vector.load %arg3[%c0_91, %c0_92, %c0_93] : memref<1x8x32xf32, #tpu.memory_space<vmem>>, vector<1x8x32xf32>
      %258 = vector.shape_cast %257 : vector<1x8x32xf32> to vector<8x32xf32>
      %259 = arith.truncf %258 : vector<8x32xf32> to vector<8x32xbf16>
      %c0_94 = arith.constant 0 : index
      %c0_95 = arith.constant 0 : index
      %260 = vector.load %arg6[%c0_94, %c0_95] : memref<32x32xbf16, #tpu.memory_space<vmem>>, vector<32x32xbf16>
      %cst_96 = arith.constant dense<0.000000e+00> : vector<8x32xf32>
      %261 = tpu.matmul %259, %260, %cst_96 {dimension_numbers = #tpu.dot_dimension_numbers<[1], [0], [0], [1], [0, 0, 1, 1], [], []>} : vector<8x32xbf16>, vector<32x32xbf16>, vector<8x32xf32> -> vector<8x32xf32>
      %c0_97 = arith.constant 0 : index
      %c0_98 = arith.constant 0 : index
      %262 = vector.load %arg10[%c0_97, %c0_98] : memref<1x32xf32, #tpu.memory_space<vmem>>, vector<1x32xf32>
      %263 = vector.broadcast %262 : vector<1x32xf32> to vector<8x32xf32>
      %264 = arith.addf %261, %263 : vector<8x32xf32>
      %c0_99 = arith.constant 0 : index
      %c0_100 = arith.constant 0 : index
      %265 = vector.load %arg7[%c0_99, %c0_100] : memref<32x32xbf16, #tpu.memory_space<vmem>>, vector<32x32xbf16>
      %cst_101 = arith.constant dense<0.000000e+00> : vector<8x32xf32>
      %266 = tpu.matmul %259, %265, %cst_101 {dimension_numbers = #tpu.dot_dimension_numbers<[1], [0], [0], [1], [0, 0, 1, 1], [], []>} : vector<8x32xbf16>, vector<32x32xbf16>, vector<8x32xf32> -> vector<8x32xf32>
      %c0_102 = arith.constant 0 : index
      %c0_103 = arith.constant 0 : index
      %267 = vector.load %arg11[%c0_102, %c0_103] : memref<1x32xf32, #tpu.memory_space<vmem>>, vector<1x32xf32>
      %268 = vector.broadcast %267 : vector<1x32xf32> to vector<8x32xf32>
      %269 = arith.addf %266, %268 : vector<8x32xf32>
      %270 = arith.truncf %264 : vector<8x32xf32> to vector<8x32xbf16>
      %c0_104 = arith.constant 0 : index
      %c0_105 = arith.constant 0 : index
      %271 = vector.load %arg22[%c0_104, %c0_105] : memref<8x32xbf16, #tpu.memory_space<vmem>>, vector<8x32xbf16>
      tpu.vector_store %arg22[%c0_104, %c0_105], %270 {strides = array<i32>} : memref<8x32xbf16, #tpu.memory_space<vmem>>, vector<8x32xbf16>,
      %272 = arith.truncf %269 : vector<8x32xf32> to vector<8x32xbf16>
      %c0_106 = arith.constant 0 : index
      %c0_107 = arith.constant 0 : index
      %273 = vector.load %arg23[%c0_106, %c0_107] : memref<8x32xbf16, #tpu.memory_space<vmem>>, vector<8x32xbf16>
      tpu.vector_store %arg23[%c0_106, %c0_107], %272 {strides = array<i32>} : memref<8x32xbf16, #tpu.memory_space<vmem>>, vector<8x32xbf16>,
    } else {
    }
    %c0 = arith.constant 0 : index
    %c0_1 = arith.constant 0 : index
    %c0_2 = arith.constant 0 : index
    %3 = vector.load %arg2[%c0, %c0_1, %c0_2] : memref<1x8x32xf32, #tpu.memory_space<vmem>>, vector<1x8x32xf32>
    %4 = vector.shape_cast %3 : vector<1x8x32xf32> to vector<8x32xf32>
    %5 = arith.truncf %4 : vector<8x32xf32> to vector<8x32xbf16>
    %c0_3 = arith.constant 0 : index
    %c0_4 = arith.constant 0 : index
    %6 = vector.load %arg5[%c0_3, %c0_4] : memref<32x32xbf16, #tpu.memory_space<vmem>>, vector<32x32xbf16>
    %cst = arith.constant dense<0.000000e+00> : vector<8x32xf32>
    %7 = tpu.matmul %5, %6, %cst {dimension_numbers = #tpu.dot_dimension_numbers<[1], [0], [0], [1], [0, 0, 1, 1], [], []>} : vector<8x32xbf16>, vector<32x32xbf16>, vector<8x32xf32> -> vector<8x32xf32>
    %c0_5 = arith.constant 0 : index
    %c0_6 = arith.constant 0 : index
    %8 = vector.load %arg9[%c0_5, %c0_6] : memref<1x32xf32, #tpu.memory_space<vmem>>, vector<1x32xf32>
    %9 = vector.broadcast %8 : vector<1x32xf32> to vector<8x32xf32>
    %10 = arith.addf %7, %9 : vector<8x32xf32>
    %cst_7 = arith.constant 5.000000e-01 : f32
    %11 = vector.broadcast %cst_7 : f32 to vector<8x32xf32>
    %12 = arith.mulf %10, %11 : vector<8x32xf32>
    %13 = arith.truncf %12 : vector<8x32xf32> to vector<8x32xbf16>
    %c0_8 = arith.constant 0 : index
    %c0_9 = arith.constant 0 : index
    %14 = vector.load %arg22[%c0_8, %c0_9] : memref<8x32xbf16, #tpu.memory_space<vmem>>, vector<8x32xbf16>
    %c0_10 = arith.constant 0 : index
    %c0_11 = arith.constant 0 : index
    %15 = vector.load %arg23[%c0_10, %c0_11] : memref<8x32xbf16, #tpu.memory_space<vmem>>, vector<8x32xbf16>
    %c0_12 = arith.constant 0 : index
    %c0_13 = arith.constant 0 : index
    %16 = vector.load %arg4[%c0_12, %c0_13] : memref<8x8xf32, #tpu.memory_space<vmem>>, vector<8x8xf32>
    %c0_14 = arith.constant 0 : index
    %c0_15 = arith.constant 0 : index
    %17 = vector.load %arg8[%c0_14, %c0_15] : memref<32x32xbf16, #tpu.memory_space<vmem>>, vector<32x32xbf16>
    %cst_16 = arith.constant 0.000000e+00 : f32
    %18 = vector.broadcast %cst_16 : f32 to vector<8x32xf32>
    %19 = vector.extract_strided_slice %13 {offsets = [0, 0], sizes = [8, 4], strides = [1, 1]} : vector<8x32xbf16> to vector<8x4xbf16>
    %20 = vector.extract_strided_slice %14 {offsets = [0, 0], sizes = [8, 4], strides = [1, 1]} : vector<8x32xbf16> to vector<8x4xbf16>
    %21 = vector.extract_strided_slice %15 {offsets = [0, 0], sizes = [8, 4], strides = [1, 1]} : vector<8x32xbf16> to vector<8x4xbf16>
    %cst_17 = arith.constant dense<0.000000e+00> : vector<8x8xf32>
    %22 = tpu.matmul %19, %20, %cst_17 {dimension_numbers = #tpu.dot_dimension_numbers<[1], [1], [0], [0], [0, 0, 1, 0], [], []>} : vector<8x4xbf16>, vector<8x4xbf16>, vector<8x8xf32> -> vector<8x8xf32>
    %23 = arith.addf %22, %16 : vector<8x8xf32>
    %cst_18 = arith.constant dense<0xFF800000> : vector<8xf32>
    %24 = vector.multi_reduction <maximumf>, %23, %cst_18 [1] : vector<8x8xf32> to vector<8xf32>
    %25 = vector.shape_cast %24 : vector<8xf32> to vector<8x1xf32>
    %26 = vector.broadcast %25 : vector<8x1xf32> to vector<8x8xf32>
    %27 = arith.subf %23, %26 : vector<8x8xf32>
    %28 = math.exp %27 : vector<8x8xf32>
    %cst_19 = arith.constant dense<0.000000e+00> : vector<8xf32>
    %29 = vector.multi_reduction <add>, %28, %cst_19 [1] : vector<8x8xf32> to vector<8xf32>
    %30 = vector.shape_cast %29 : vector<8xf32> to vector<8x1xf32>
    %31 = tpu.reciprocal %30 {approx = true} : vector<8x1xf32> -> vector<8x1xf32>
    %32 = vector.broadcast %31 : vector<8x1xf32> to vector<8x8xf32>
    %33 = arith.mulf %28, %32 : vector<8x8xf32>
    %34 = arith.truncf %33 : vector<8x8xf32> to vector<8x8xbf16>
    %cst_20 = arith.constant dense<0.000000e+00> : vector<8x4xf32>
    %35 = tpu.matmul %34, %21, %cst_20 {dimension_numbers = #tpu.dot_dimension_numbers<[1], [0], [0], [1], [0, 0, 1, 1], [], []>} : vector<8x8xbf16>, vector<8x4xbf16>, vector<8x4xf32> -> vector<8x4xf32>
    %36 = arith.truncf %35 : vector<8x4xf32> to vector<8x4xbf16>
    %37 = vector.extract_strided_slice %17 {offsets = [0, 0], sizes = [4, 32], strides = [1, 1]} : vector<32x32xbf16> to vector<4x32xbf16>
    %cst_21 = arith.constant dense<0.000000e+00> : vector<8x32xf32>
    %38 = tpu.matmul %36, %37, %cst_21 {dimension_numbers = #tpu.dot_dimension_numbers<[1], [0], [0], [1], [0, 0, 1, 1], [], []>} : vector<8x4xbf16>, vector<4x32xbf16>, vector<8x32xf32> -> vector<8x32xf32>
    %39 = arith.addf %18, %38 : vector<8x32xf32>
    %40 = vector.extract_strided_slice %13 {offsets = [0, 4], sizes = [8, 4], strides = [1, 1]} : vector<8x32xbf16> to vector<8x4xbf16>
    %41 = vector.extract_strided_slice %14 {offsets = [0, 4], sizes = [8, 4], strides = [1, 1]} : vector<8x32xbf16> to vector<8x4xbf16>
    %42 = vector.extract_strided_slice %15 {offsets = [0, 4], sizes = [8, 4], strides = [1, 1]} : vector<8x32xbf16> to vector<8x4xbf16>
    %cst_22 = arith.constant dense<0.000000e+00> : vector<8x8xf32>
    %43 = tpu.matmul %40, %41, %cst_22 {dimension_numbers = #tpu.dot_dimension_numbers<[1], [1], [0], [0], [0, 0, 1, 0], [], []>} : vector<8x4xbf16>, vector<8x4xbf16>, vector<8x8xf32> -> vector<8x8xf32>
    %44 = arith.addf %43, %16 : vector<8x8xf32>
    %cst_23 = arith.constant dense<0xFF800000> : vector<8xf32>
    %45 = vector.multi_reduction <maximumf>, %44, %cst_23 [1] : vector<8x8xf32> to vector<8xf32>
    %46 = vector.shape_cast %45 : vector<8xf32> to vector<8x1xf32>
    %47 = vector.broadcast %46 : vector<8x1xf32> to vector<8x8xf32>
    %48 = arith.subf %44, %47 : vector<8x8xf32>
    %49 = math.exp %48 : vector<8x8xf32>
    %cst_24 = arith.constant dense<0.000000e+00> : vector<8xf32>
    %50 = vector.multi_reduction <add>, %49, %cst_24 [1] : vector<8x8xf32> to vector<8xf32>
    %51 = vector.shape_cast %50 : vector<8xf32> to vector<8x1xf32>
    %52 = tpu.reciprocal %51 {approx = true} : vector<8x1xf32> -> vector<8x1xf32>
    %53 = vector.broadcast %52 : vector<8x1xf32> to vector<8x8xf32>
    %54 = arith.mulf %49, %53 : vector<8x8xf32>
    %55 = arith.truncf %54 : vector<8x8xf32> to vector<8x8xbf16>
    %cst_25 = arith.constant dense<0.000000e+00> : vector<8x4xf32>
    %56 = tpu.matmul %55, %42, %cst_25 {dimension_numbers = #tpu.dot_dimension_numbers<[1], [0], [0], [1], [0, 0, 1, 1], [], []>} : vector<8x8xbf16>, vector<8x4xbf16>, vector<8x4xf32> -> vector<8x4xf32>
    %57 = arith.truncf %56 : vector<8x4xf32> to vector<8x4xbf16>
    %58 = vector.extract_strided_slice %17 {offsets = [4, 0], sizes = [4, 32], strides = [1, 1]} : vector<32x32xbf16> to vector<4x32xbf16>
    %cst_26 = arith.constant dense<0.000000e+00> : vector<8x32xf32>
    %59 = tpu.matmul %57, %58, %cst_26 {dimension_numbers = #tpu.dot_dimension_numbers<[1], [0], [0], [1], [0, 0, 1, 1], [], []>} : vector<8x4xbf16>, vector<4x32xbf16>, vector<8x32xf32> -> vector<8x32xf32>
    %60 = arith.addf %39, %59 : vector<8x32xf32>
    %61 = vector.extract_strided_slice %13 {offsets = [0, 8], sizes = [8, 4], strides = [1, 1]} : vector<8x32xbf16> to vector<8x4xbf16>
    %62 = vector.extract_strided_slice %14 {offsets = [0, 8], sizes = [8, 4], strides = [1, 1]} : vector<8x32xbf16> to vector<8x4xbf16>
    %63 = vector.extract_strided_slice %15 {offsets = [0, 8], sizes = [8, 4], strides = [1, 1]} : vector<8x32xbf16> to vector<8x4xbf16>
    %cst_27 = arith.constant dense<0.000000e+00> : vector<8x8xf32>
    %64 = tpu.matmul %61, %62, %cst_27 {dimension_numbers = #tpu.dot_dimension_numbers<[1], [1], [0], [0], [0, 0, 1, 0], [], []>} : vector<8x4xbf16>, vector<8x4xbf16>, vector<8x8xf32> -> vector<8x8xf32>
    %65 = arith.addf %64, %16 : vector<8x8xf32>
    %cst_28 = arith.constant dense<0xFF800000> : vector<8xf32>
    %66 = vector.multi_reduction <maximumf>, %65, %cst_28 [1] : vector<8x8xf32> to vector<8xf32>
    %67 = vector.shape_cast %66 : vector<8xf32> to vector<8x1xf32>
    %68 = vector.broadcast %67 : vector<8x1xf32> to vector<8x8xf32>
    %69 = arith.subf %65, %68 : vector<8x8xf32>
    %70 = math.exp %69 : vector<8x8xf32>
    %cst_29 = arith.constant dense<0.000000e+00> : vector<8xf32>
    %71 = vector.multi_reduction <add>, %70, %cst_29 [1] : vector<8x8xf32> to vector<8xf32>
    %72 = vector.shape_cast %71 : vector<8xf32> to vector<8x1xf32>
    %73 = tpu.reciprocal %72 {approx = true} : vector<8x1xf32> -> vector<8x1xf32>
    %74 = vector.broadcast %73 : vector<8x1xf32> to vector<8x8xf32>
    %75 = arith.mulf %70, %74 : vector<8x8xf32>
    %76 = arith.truncf %75 : vector<8x8xf32> to vector<8x8xbf16>
    %cst_30 = arith.constant dense<0.000000e+00> : vector<8x4xf32>
    %77 = tpu.matmul %76, %63, %cst_30 {dimension_numbers = #tpu.dot_dimension_numbers<[1], [0], [0], [1], [0, 0, 1, 1], [], []>} : vector<8x8xbf16>, vector<8x4xbf16>, vector<8x4xf32> -> vector<8x4xf32>
    %78 = arith.truncf %77 : vector<8x4xf32> to vector<8x4xbf16>
    %79 = vector.extract_strided_slice %17 {offsets = [8, 0], sizes = [4, 32], strides = [1, 1]} : vector<32x32xbf16> to vector<4x32xbf16>
    %cst_31 = arith.constant dense<0.000000e+00> : vector<8x32xf32>
    %80 = tpu.matmul %78, %79, %cst_31 {dimension_numbers = #tpu.dot_dimension_numbers<[1], [0], [0], [1], [0, 0, 1, 1], [], []>} : vector<8x4xbf16>, vector<4x32xbf16>, vector<8x32xf32> -> vector<8x32xf32>
    %81 = arith.addf %60, %80 : vector<8x32xf32>
    %82 = vector.extract_strided_slice %13 {offsets = [0, 12], sizes = [8, 4], strides = [1, 1]} : vector<8x32xbf16> to vector<8x4xbf16>
    %83 = vector.extract_strided_slice %14 {offsets = [0, 12], sizes = [8, 4], strides = [1, 1]} : vector<8x32xbf16> to vector<8x4xbf16>
    %84 = vector.extract_strided_slice %15 {offsets = [0, 12], sizes = [8, 4], strides = [1, 1]} : vector<8x32xbf16> to vector<8x4xbf16>
    %cst_32 = arith.constant dense<0.000000e+00> : vector<8x8xf32>
    %85 = tpu.matmul %82, %83, %cst_32 {dimension_numbers = #tpu.dot_dimension_numbers<[1], [1], [0], [0], [0, 0, 1, 0], [], []>} : vector<8x4xbf16>, vector<8x4xbf16>, vector<8x8xf32> -> vector<8x8xf32>
    %86 = arith.addf %85, %16 : vector<8x8xf32>
    %cst_33 = arith.constant dense<0xFF800000> : vector<8xf32>
    %87 = vector.multi_reduction <maximumf>, %86, %cst_33 [1] : vector<8x8xf32> to vector<8xf32>
    %88 = vector.shape_cast %87 : vector<8xf32> to vector<8x1xf32>
    %89 = vector.broadcast %88 : vector<8x1xf32> to vector<8x8xf32>
    %90 = arith.subf %86, %89 : vector<8x8xf32>
    %91 = math.exp %90 : vector<8x8xf32>
    %cst_34 = arith.constant dense<0.000000e+00> : vector<8xf32>
    %92 = vector.multi_reduction <add>, %91, %cst_34 [1] : vector<8x8xf32> to vector<8xf32>
    %93 = vector.shape_cast %92 : vector<8xf32> to vector<8x1xf32>
    %94 = tpu.reciprocal %93 {approx = true} : vector<8x1xf32> -> vector<8x1xf32>
    %95 = vector.broadcast %94 : vector<8x1xf32> to vector<8x8xf32>
    %96 = arith.mulf %91, %95 : vector<8x8xf32>
    %97 = arith.truncf %96 : vector<8x8xf32> to vector<8x8xbf16>
    %cst_35 = arith.constant dense<0.000000e+00> : vector<8x4xf32>
    %98 = tpu.matmul %97, %84, %cst_35 {dimension_numbers = #tpu.dot_dimension_numbers<[1], [0], [0], [1], [0, 0, 1, 1], [], []>} : vector<8x8xbf16>, vector<8x4xbf16>, vector<8x4xf32> -> vector<8x4xf32>
    %99 = arith.truncf %98 : vector<8x4xf32> to vector<8x4xbf16>
    %100 = vector.extract_strided_slice %17 {offsets = [12, 0], sizes = [4, 32], strides = [1, 1]} : vector<32x32xbf16> to vector<4x32xbf16>
    %cst_36 = arith.constant dense<0.000000e+00> : vector<8x32xf32>
    %101 = tpu.matmul %99, %100, %cst_36 {dimension_numbers = #tpu.dot_dimension_numbers<[1], [0], [0], [1], [0, 0, 1, 1], [], []>} : vector<8x4xbf16>, vector<4x32xbf16>, vector<8x32xf32> -> vector<8x32xf32>
    %102 = arith.addf %81, %101 : vector<8x32xf32>
    %103 = vector.extract_strided_slice %13 {offsets = [0, 16], sizes = [8, 4], strides = [1, 1]} : vector<8x32xbf16> to vector<8x4xbf16>
    %104 = vector.extract_strided_slice %14 {offsets = [0, 16], sizes = [8, 4], strides = [1, 1]} : vector<8x32xbf16> to vector<8x4xbf16>
    %105 = vector.extract_strided_slice %15 {offsets = [0, 16], sizes = [8, 4], strides = [1, 1]} : vector<8x32xbf16> to vector<8x4xbf16>
    %cst_37 = arith.constant dense<0.000000e+00> : vector<8x8xf32>
    %106 = tpu.matmul %103, %104, %cst_37 {dimension_numbers = #tpu.dot_dimension_numbers<[1], [1], [0], [0], [0, 0, 1, 0], [], []>} : vector<8x4xbf16>, vector<8x4xbf16>, vector<8x8xf32> -> vector<8x8xf32>
    %107 = arith.addf %106, %16 : vector<8x8xf32>
    %cst_38 = arith.constant dense<0xFF800000> : vector<8xf32>
    %108 = vector.multi_reduction <maximumf>, %107, %cst_38 [1] : vector<8x8xf32> to vector<8xf32>
    %109 = vector.shape_cast %108 : vector<8xf32> to vector<8x1xf32>
    %110 = vector.broadcast %109 : vector<8x1xf32> to vector<8x8xf32>
    %111 = arith.subf %107, %110 : vector<8x8xf32>
    %112 = math.exp %111 : vector<8x8xf32>
    %cst_39 = arith.constant dense<0.000000e+00> : vector<8xf32>
    %113 = vector.multi_reduction <add>, %112, %cst_39 [1] : vector<8x8xf32> to vector<8xf32>
    %114 = vector.shape_cast %113 : vector<8xf32> to vector<8x1xf32>
    %115 = tpu.reciprocal %114 {approx = true} : vector<8x1xf32> -> vector<8x1xf32>
    %116 = vector.broadcast %115 : vector<8x1xf32> to vector<8x8xf32>
    %117 = arith.mulf %112, %116 : vector<8x8xf32>
    %118 = arith.truncf %117 : vector<8x8xf32> to vector<8x8xbf16>
    %cst_40 = arith.constant dense<0.000000e+00> : vector<8x4xf32>
    %119 = tpu.matmul %118, %105, %cst_40 {dimension_numbers = #tpu.dot_dimension_numbers<[1], [0], [0], [1], [0, 0, 1, 1], [], []>} : vector<8x8xbf16>, vector<8x4xbf16>, vector<8x4xf32> -> vector<8x4xf32>
    %120 = arith.truncf %119 : vector<8x4xf32> to vector<8x4xbf16>
    %121 = vector.extract_strided_slice %17 {offsets = [16, 0], sizes = [4, 32], strides = [1, 1]} : vector<32x32xbf16> to vector<4x32xbf16>
    %cst_41 = arith.constant dense<0.000000e+00> : vector<8x32xf32>
    %122 = tpu.matmul %120, %121, %cst_41 {dimension_numbers = #tpu.dot_dimension_numbers<[1], [0], [0], [1], [0, 0, 1, 1], [], []>} : vector<8x4xbf16>, vector<4x32xbf16>, vector<8x32xf32> -> vector<8x32xf32>
    %123 = arith.addf %102, %122 : vector<8x32xf32>
    %124 = vector.extract_strided_slice %13 {offsets = [0, 20], sizes = [8, 4], strides = [1, 1]} : vector<8x32xbf16> to vector<8x4xbf16>
    %125 = vector.extract_strided_slice %14 {offsets = [0, 20], sizes = [8, 4], strides = [1, 1]} : vector<8x32xbf16> to vector<8x4xbf16>
    %126 = vector.extract_strided_slice %15 {offsets = [0, 20], sizes = [8, 4], strides = [1, 1]} : vector<8x32xbf16> to vector<8x4xbf16>
    %cst_42 = arith.constant dense<0.000000e+00> : vector<8x8xf32>
    %127 = tpu.matmul %124, %125, %cst_42 {dimension_numbers = #tpu.dot_dimension_numbers<[1], [1], [0], [0], [0, 0, 1, 0], [], []>} : vector<8x4xbf16>, vector<8x4xbf16>, vector<8x8xf32> -> vector<8x8xf32>
    %128 = arith.addf %127, %16 : vector<8x8xf32>
    %cst_43 = arith.constant dense<0xFF800000> : vector<8xf32>
    %129 = vector.multi_reduction <maximumf>, %128, %cst_43 [1] : vector<8x8xf32> to vector<8xf32>
    %130 = vector.shape_cast %129 : vector<8xf32> to vector<8x1xf32>
    %131 = vector.broadcast %130 : vector<8x1xf32> to vector<8x8xf32>
    %132 = arith.subf %128, %131 : vector<8x8xf32>
    %133 = math.exp %132 : vector<8x8xf32>
    %cst_44 = arith.constant dense<0.000000e+00> : vector<8xf32>
    %134 = vector.multi_reduction <add>, %133, %cst_44 [1] : vector<8x8xf32> to vector<8xf32>
    %135 = vector.shape_cast %134 : vector<8xf32> to vector<8x1xf32>
    %136 = tpu.reciprocal %135 {approx = true} : vector<8x1xf32> -> vector<8x1xf32>
    %137 = vector.broadcast %136 : vector<8x1xf32> to vector<8x8xf32>
    %138 = arith.mulf %133, %137 : vector<8x8xf32>
    %139 = arith.truncf %138 : vector<8x8xf32> to vector<8x8xbf16>
    %cst_45 = arith.constant dense<0.000000e+00> : vector<8x4xf32>
    %140 = tpu.matmul %139, %126, %cst_45 {dimension_numbers = #tpu.dot_dimension_numbers<[1], [0], [0], [1], [0, 0, 1, 1], [], []>} : vector<8x8xbf16>, vector<8x4xbf16>, vector<8x4xf32> -> vector<8x4xf32>
    %141 = arith.truncf %140 : vector<8x4xf32> to vector<8x4xbf16>
    %142 = vector.extract_strided_slice %17 {offsets = [20, 0], sizes = [4, 32], strides = [1, 1]} : vector<32x32xbf16> to vector<4x32xbf16>
    %cst_46 = arith.constant dense<0.000000e+00> : vector<8x32xf32>
    %143 = tpu.matmul %141, %142, %cst_46 {dimension_numbers = #tpu.dot_dimension_numbers<[1], [0], [0], [1], [0, 0, 1, 1], [], []>} : vector<8x4xbf16>, vector<4x32xbf16>, vector<8x32xf32> -> vector<8x32xf32>
    %144 = arith.addf %123, %143 : vector<8x32xf32>
    %145 = vector.extract_strided_slice %13 {offsets = [0, 24], sizes = [8, 4], strides = [1, 1]} : vector<8x32xbf16> to vector<8x4xbf16>
    %146 = vector.extract_strided_slice %14 {offsets = [0, 24], sizes = [8, 4], strides = [1, 1]} : vector<8x32xbf16> to vector<8x4xbf16>
    %147 = vector.extract_strided_slice %15 {offsets = [0, 24], sizes = [8, 4], strides = [1, 1]} : vector<8x32xbf16> to vector<8x4xbf16>
    %cst_47 = arith.constant dense<0.000000e+00> : vector<8x8xf32>
    %148 = tpu.matmul %145, %146, %cst_47 {dimension_numbers = #tpu.dot_dimension_numbers<[1], [1], [0], [0], [0, 0, 1, 0], [], []>} : vector<8x4xbf16>, vector<8x4xbf16>, vector<8x8xf32> -> vector<8x8xf32>
    %149 = arith.addf %148, %16 : vector<8x8xf32>
    %cst_48 = arith.constant dense<0xFF800000> : vector<8xf32>
    %150 = vector.multi_reduction <maximumf>, %149, %cst_48 [1] : vector<8x8xf32> to vector<8xf32>
    %151 = vector.shape_cast %150 : vector<8xf32> to vector<8x1xf32>
    %152 = vector.broadcast %151 : vector<8x1xf32> to vector<8x8xf32>
    %153 = arith.subf %149, %152 : vector<8x8xf32>
    %154 = math.exp %153 : vector<8x8xf32>
    %cst_49 = arith.constant dense<0.000000e+00> : vector<8xf32>
    %155 = vector.multi_reduction <add>, %154, %cst_49 [1] : vector<8x8xf32> to vector<8xf32>
    %156 = vector.shape_cast %155 : vector<8xf32> to vector<8x1xf32>
    %157 = tpu.reciprocal %156 {approx = true} : vector<8x1xf32> -> vector<8x1xf32>
    %158 = vector.broadcast %157 : vector<8x1xf32> to vector<8x8xf32>
    %159 = arith.mulf %154, %158 : vector<8x8xf32>
    %160 = arith.truncf %159 : vector<8x8xf32> to vector<8x8xbf16>
    %cst_50 = arith.constant dense<0.000000e+00> : vector<8x4xf32>
    %161 = tpu.matmul %160, %147, %cst_50 {dimension_numbers = #tpu.dot_dimension_numbers<[1], [0], [0], [1], [0, 0, 1, 1], [], []>} : vector<8x8xbf16>, vector<8x4xbf16>, vector<8x4xf32> -> vector<8x4xf32>
    %162 = arith.truncf %161 : vector<8x4xf32> to vector<8x4xbf16>
    %163 = vector.extract_strided_slice %17 {offsets = [24, 0], sizes = [4, 32], strides = [1, 1]} : vector<32x32xbf16> to vector<4x32xbf16>
    %cst_51 = arith.constant dense<0.000000e+00> : vector<8x32xf32>
    %164 = tpu.matmul %162, %163, %cst_51 {dimension_numbers = #tpu.dot_dimension_numbers<[1], [0], [0], [1], [0, 0, 1, 1], [], []>} : vector<8x4xbf16>, vector<4x32xbf16>, vector<8x32xf32> -> vector<8x32xf32>
    %165 = arith.addf %144, %164 : vector<8x32xf32>
    %166 = vector.extract_strided_slice %13 {offsets = [0, 28], sizes = [8, 4], strides = [1, 1]} : vector<8x32xbf16> to vector<8x4xbf16>
    %167 = vector.extract_strided_slice %14 {offsets = [0, 28], sizes = [8, 4], strides = [1, 1]} : vector<8x32xbf16> to vector<8x4xbf16>
    %168 = vector.extract_strided_slice %15 {offsets = [0, 28], sizes = [8, 4], strides = [1, 1]} : vector<8x32xbf16> to vector<8x4xbf16>
    %cst_52 = arith.constant dense<0.000000e+00> : vector<8x8xf32>
    %169 = tpu.matmul %166, %167, %cst_52 {dimension_numbers = #tpu.dot_dimension_numbers<[1], [1], [0], [0], [0, 0, 1, 0], [], []>} : vector<8x4xbf16>, vector<8x4xbf16>, vector<8x8xf32> -> vector<8x8xf32>
    %170 = arith.addf %169, %16 : vector<8x8xf32>
    %cst_53 = arith.constant dense<0xFF800000> : vector<8xf32>
    %171 = vector.multi_reduction <maximumf>, %170, %cst_53 [1] : vector<8x8xf32> to vector<8xf32>
    %172 = vector.shape_cast %171 : vector<8xf32> to vector<8x1xf32>
    %173 = vector.broadcast %172 : vector<8x1xf32> to vector<8x8xf32>
    %174 = arith.subf %170, %173 : vector<8x8xf32>
    %175 = math.exp %174 : vector<8x8xf32>
    %cst_54 = arith.constant dense<0.000000e+00> : vector<8xf32>
    %176 = vector.multi_reduction <add>, %175, %cst_54 [1] : vector<8x8xf32> to vector<8xf32>
    %177 = vector.shape_cast %176 : vector<8xf32> to vector<8x1xf32>
    %178 = tpu.reciprocal %177 {approx = true} : vector<8x1xf32> -> vector<8x1xf32>
    %179 = vector.broadcast %178 : vector<8x1xf32> to vector<8x8xf32>
    %180 = arith.mulf %175, %179 : vector<8x8xf32>
    %181 = arith.truncf %180 : vector<8x8xf32> to vector<8x8xbf16>
    %cst_55 = arith.constant dense<0.000000e+00> : vector<8x4xf32>
    %182 = tpu.matmul %181, %168, %cst_55 {dimension_numbers = #tpu.dot_dimension_numbers<[1], [0], [0], [1], [0, 0, 1, 1], [], []>} : vector<8x8xbf16>, vector<8x4xbf16>, vector<8x4xf32> -> vector<8x4xf32>
    %183 = arith.truncf %182 : vector<8x4xf32> to vector<8x4xbf16>
    %184 = vector.extract_strided_slice %17 {offsets = [28, 0], sizes = [4, 32], strides = [1, 1]} : vector<32x32xbf16> to vector<4x32xbf16>
    %cst_56 = arith.constant dense<0.000000e+00> : vector<8x32xf32>
    %185 = tpu.matmul %183, %184, %cst_56 {dimension_numbers = #tpu.dot_dimension_numbers<[1], [0], [0], [1], [0, 0, 1, 1], [], []>} : vector<8x4xbf16>, vector<4x32xbf16>, vector<8x32xf32> -> vector<8x32xf32>
    %186 = arith.addf %165, %185 : vector<8x32xf32>
    %c0_57 = arith.constant 0 : index
    %c0_58 = arith.constant 0 : index
    %187 = vector.load %arg12[%c0_57, %c0_58] : memref<1x32xf32, #tpu.memory_space<vmem>>, vector<1x32xf32>
    %188 = vector.broadcast %187 : vector<1x32xf32> to vector<8x32xf32>
    %189 = arith.addf %186, %188 : vector<8x32xf32>
    %c0_59 = arith.constant 0 : index
    %c0_60 = arith.constant 0 : index
    %190 = vector.load %arg13[%c0_59, %c0_60] : memref<1x32xf32, #tpu.memory_space<vmem>>, vector<1x32xf32>
    %c0_61 = arith.constant 0 : index
    %c0_62 = arith.constant 0 : index
    %191 = vector.load %arg14[%c0_61, %c0_62] : memref<1x32xf32, #tpu.memory_space<vmem>>, vector<1x32xf32>
    %cst_63 = arith.constant dense<0.000000e+00> : vector<8xf32>
    %192 = vector.multi_reduction <add>, %189, %cst_63 [1] : vector<8x32xf32> to vector<8xf32>
    %193 = vector.shape_cast %192 : vector<8xf32> to vector<8x1xf32>
    %cst_64 = arith.constant 3.200000e+01 : f32
    %194 = vector.broadcast %cst_64 : f32 to vector<8x1xf32>
    %195 = arith.divf %193, %194 : vector<8x1xf32>
    %196 = vector.broadcast %195 : vector<8x1xf32> to vector<8x32xf32>
    %197 = arith.subf %189, %196 : vector<8x32xf32>
    %198 = arith.mulf %197, %197 : vector<8x32xf32>
    %cst_65 = arith.constant dense<0.000000e+00> : vector<8xf32>
    %199 = vector.multi_reduction <add>, %198, %cst_65 [1] : vector<8x32xf32> to vector<8xf32>
    %200 = vector.shape_cast %199 : vector<8xf32> to vector<8x1xf32>
    %cst_66 = arith.constant 3.200000e+01 : f32
    %201 = vector.broadcast %cst_66 : f32 to vector<8x1xf32>
    %202 = arith.divf %200, %201 : vector<8x1xf32>
    %203 = vector.broadcast %195 : vector<8x1xf32> to vector<8x32xf32>
    %204 = arith.subf %189, %203 : vector<8x32xf32>
    %205 = vector.broadcast %190 : vector<1x32xf32> to vector<8x32xf32>
    %206 = arith.mulf %205, %204 : vector<8x32xf32>
    %cst_67 = arith.constant 9.99999997E-7 : f32
    %207 = vector.broadcast %cst_67 : f32 to vector<8x1xf32>
    %208 = arith.addf %202, %207 : vector<8x1xf32>
    %209 = math.rsqrt %208 : vector<8x1xf32>
    %210 = vector.broadcast %209 : vector<8x1xf32> to vector<8x32xf32>
    %211 = arith.mulf %206, %210 : vector<8x32xf32>
    %212 = vector.broadcast %191 : vector<1x32xf32> to vector<8x32xf32>
    %213 = arith.addf %211, %212 : vector<8x32xf32>
    %214 = arith.addf %213, %4 : vector<8x32xf32>
    %215 = arith.truncf %214 : vector<8x32xf32> to vector<8x32xbf16>
    %c0_68 = arith.constant 0 : index
    %c0_69 = arith.constant 0 : index
    %216 = vector.load %arg15[%c0_68, %c0_69] : memref<32x64xbf16, #tpu.memory_space<vmem>>, vector<32x64xbf16>
    %cst_70 = arith.constant dense<0.000000e+00> : vector<8x64xf32>
    %217 = tpu.matmul %215, %216, %cst_70 {dimension_numbers = #tpu.dot_dimension_numbers<[1], [0], [0], [1], [0, 0, 1, 1], [], []>} : vector<8x32xbf16>, vector<32x64xbf16>, vector<8x64xf32> -> vector<8x64xf32>
    %c0_71 = arith.constant 0 : index
    %c0_72 = arith.constant 0 : index
    %218 = vector.load %arg16[%c0_71, %c0_72] : memref<1x64xf32, #tpu.memory_space<vmem>>, vector<1x64xf32>
    %219 = vector.broadcast %218 : vector<1x64xf32> to vector<8x64xf32>
    %220 = arith.addf %217, %219 : vector<8x64xf32>
    %cst_73 = arith.constant 0.000000e+00 : f32
    %221 = vector.broadcast %cst_73 : f32 to vector<8x64xf32>
    %222 = arith.maximumf %220, %221 : vector<8x64xf32>
    %223 = arith.truncf %222 : vector<8x64xf32> to vector<8x64xbf16>
    %c0_74 = arith.constant 0 : index
    %c0_75 = arith.constant 0 : index
    %224 = vector.load %arg17[%c0_74, %c0_75] : memref<64x32xbf16, #tpu.memory_space<vmem>>, vector<64x32xbf16>
    %cst_76 = arith.constant dense<0.000000e+00> : vector<8x32xf32>
    %225 = tpu.matmul %223, %224, %cst_76 {dimension_numbers = #tpu.dot_dimension_numbers<[1], [0], [0], [1], [0, 0, 1, 1], [], []>} : vector<8x64xbf16>, vector<64x32xbf16>, vector<8x32xf32> -> vector<8x32xf32>
    %c0_77 = arith.constant 0 : index
    %c0_78 = arith.constant 0 : index
    %226 = vector.load %arg18[%c0_77, %c0_78] : memref<1x32xf32, #tpu.memory_space<vmem>>, vector<1x32xf32>
    %227 = vector.broadcast %226 : vector<1x32xf32> to vector<8x32xf32>
    %228 = arith.addf %225, %227 : vector<8x32xf32>
    %c0_79 = arith.constant 0 : index
    %c0_80 = arith.constant 0 : index
    %229 = vector.load %arg19[%c0_79, %c0_80] : memref<1x32xf32, #tpu.memory_space<vmem>>, vector<1x32xf32>
    %c0_81 = arith.constant 0 : index
    %c0_82 = arith.constant 0 : index
    %230 = vector.load %arg20[%c0_81, %c0_82] : memref<1x32xf32, #tpu.memory_space<vmem>>, vector<1x32xf32>
    %cst_83 = arith.constant dense<0.000000e+00> : vector<8xf32>
    %231 = vector.multi_reduction <add>, %228, %cst_83 [1] : vector<8x32xf32> to vector<8xf32>
    %232 = vector.shape_cast %231 : vector<8xf32> to vector<8x1xf32>
    %cst_84 = arith.constant 3.200000e+01 : f32
    %233 = vector.broadcast %cst_84 : f32 to vector<8x1xf32>
    %234 = arith.divf %232, %233 : vector<8x1xf32>
    %235 = vector.broadcast %234 : vector<8x1xf32> to vector<8x32xf32>
    %236 = arith.subf %228, %235 : vector<8x32xf32>
    %237 = arith.mulf %236, %236 : vector<8x32xf32>
    %cst_85 = arith.constant dense<0.000000e+00> : vector<8xf32>
    %238 = vector.multi_reduction <add>, %237, %cst_85 [1] : vector<8x32xf32> to vector<8xf32>
    %239 = vector.shape_cast %238 : vector<8xf32> to vector<8x1xf32>
    %cst_86 = arith.constant 3.200000e+01 : f32
    %240 = vector.broadcast %cst_86 : f32 to vector<8x1xf32>
    %241 = arith.divf %239, %240 : vector<8x1xf32>
    %242 = vector.broadcast %234 : vector<8x1xf32> to vector<8x32xf32>
    %243 = arith.subf %228, %242 : vector<8x32xf32>
    %244 = vector.broadcast %229 : vector<1x32xf32> to vector<8x32xf32>
    %245 = arith.mulf %244, %243 : vector<8x32xf32>
    %cst_87 = arith.constant 9.99999997E-7 : f32
    %246 = vector.broadcast %cst_87 : f32 to vector<8x1xf32>
    %247 = arith.addf %241, %246 : vector<8x1xf32>
    %248 = math.rsqrt %247 : vector<8x1xf32>
    %249 = vector.broadcast %248 : vector<8x1xf32> to vector<8x32xf32>
    %250 = arith.mulf %245, %249 : vector<8x32xf32>
    %251 = vector.broadcast %230 : vector<1x32xf32> to vector<8x32xf32>
    %252 = arith.addf %250, %251 : vector<8x32xf32>
    %253 = arith.addf %252, %214 : vector<8x32xf32>
    %c0_88 = arith.constant 0 : index
    %c0_89 = arith.constant 0 : index
    %c0_90 = arith.constant 0 : index
    %254 = vector.load %arg21[%c0_88, %c0_89, %c0_90] : memref<1x8x32xf32, #tpu.memory_space<vmem>>, vector<1x8x32xf32>
    %255 = vector.shape_cast %254 : vector<1x8x32xf32> to vector<8x32xf32>
    %256 = vector.shape_cast %253 : vector<8x32xf32> to vector<1x8x32xf32>
    tpu.vector_store %arg21[%c0_88, %c0_89, %c0_90], %256 {strides = array<i32>} : memref<1x8x32xf32, #tpu.memory_space<vmem>>, vector<1x8x32xf32>,
    return
  }
  func.func @transform_0(%arg0: i32, %arg1: i32) -> (i32, i32, i32) {
    %c0_i32 = arith.constant 0 : i32
    %c0_i32_0 = arith.constant 0 : i32
    return %arg0, %arg1, %c0_i32 : i32, i32, i32
  }
  func.func @transform_1(%arg0: i32, %arg1: i32) -> (i32, i32, i32) {
    %c0_i32 = arith.constant 0 : i32
    %c0_i32_0 = arith.constant 0 : i32
    %c0_i32_1 = arith.constant 0 : i32
    return %arg0, %c0_i32, %c0_i32_0 : i32, i32, i32
  }
  func.func @transform_2(%arg0: i32, %arg1: i32) -> (i32, i32) {
    %c0_i32 = arith.constant 0 : i32
    %c0_i32_0 = arith.constant 0 : i32
    return %arg1, %c0_i32 : i32, i32
  }
  func.func @transform_3(%arg0: i32, %arg1: i32) -> (i32, i32) {
    %c0_i32 = arith.constant 0 : i32
    %c0_i32_0 = arith.constant 0 : i32
    %c0_i32_1 = arith.constant 0 : i32
    return %c0_i32, %c0_i32_0 : i32, i32
  }
  func.func @transform_4(%arg0: i32, %arg1: i32) -> (i32, i32) {
    %c0_i32 = arith.constant 0 : i32
    %c0_i32_0 = arith.constant 0 : i32
    %c0_i32_1 = arith.constant 0 : i32
    return %c0_i32, %c0_i32_0 : i32, i32
  }
  func.func @transform_5(%arg0: i32, %arg1: i32) -> (i32, i32) {
    %c0_i32 = arith.constant 0 : i32
    %c0_i32_0 = arith.constant 0 : i32
    %c0_i32_1 = arith.constant 0 : i32
    return %c0_i32, %c0_i32_0 : i32, i32
  }
  func.func @transform_6(%arg0: i32, %arg1: i32) -> (i32, i32) {
    %c0_i32 = arith.constant 0 : i32
    %c0_i32_0 = arith.constant 0 : i32
    %c0_i32_1 = arith.constant 0 : i32
    return %c0_i32, %c0_i32_0 : i32, i32
  }
  func.func @transform_7(%arg0: i32, %arg1: i32) -> (i32, i32) {
    %c0_i32 = arith.constant 0 : i32
    %c0_i32_0 = arith.constant 0 : i32
    %c0_i32_1 = arith.constant 0 : i32
    return %c0_i32, %c0_i32_0 : i32, i32
  }
  func.func @transform_8(%arg0: i32, %arg1: i32) -> (i32, i32) {
    %c0_i32 = arith.constant 0 : i32
    %c0_i32_0 = arith.constant 0 : i32
    %c0_i32_1 = arith.constant 0 : i32
    return %c0_i32, %c0_i32_0 : i32, i32
  }
  func.func @transform_9(%arg0: i32, %arg1: i32) -> (i32, i32) {
    %c0_i32 = arith.constant 0 : i32
    %c0_i32_0 = arith.constant 0 : i32
    %c0_i32_1 = arith.constant 0 : i32
    return %c0_i32, %c0_i32_0 : i32, i32
  }
  func.func @transform_10(%arg0: i32, %arg1: i32) -> (i32, i32) {
    %c0_i32 = arith.constant 0 : i32
    %c0_i32_0 = arith.constant 0 : i32
    %c0_i32_1 = arith.constant 0 : i32
    return %c0_i32, %c0_i32_0 : i32, i32
  }
  func.func @transform_11(%arg0: i32, %arg1: i32) -> (i32, i32) {
    %c0_i32 = arith.constant 0 : i32
    %c0_i32_0 = arith.constant 0 : i32
    %c0_i32_1 = arith.constant 0 : i32
    return %c0_i32, %c0_i32_0 : i32, i32
  }
  func.func @transform_12(%arg0: i32, %arg1: i32) -> (i32, i32) {
    %c0_i32 = arith.constant 0 : i32
    %c0_i32_0 = arith.constant 0 : i32
    %c0_i32_1 = arith.constant 0 : i32
    return %c0_i32, %c0_i32_0 : i32, i32
  }
  func.func @transform_13(%arg0: i32, %arg1: i32) -> (i32, i32) {
    %c0_i32 = arith.constant 0 : i32
    %c0_i32_0 = arith.constant 0 : i32
    %c0_i32_1 = arith.constant 0 : i32
    return %c0_i32, %c0_i32_0 : i32, i32
  }
  func.func @transform_14(%arg0: i32, %arg1: i32) -> (i32, i32) {
    %c0_i32 = arith.constant 0 : i32
    %c0_i32_0 = arith.constant 0 : i32
    %c0_i32_1 = arith.constant 0 : i32
    return %c0_i32, %c0_i32_0 : i32, i32
  }
  func.func @transform_15(%arg0: i32, %arg1: i32) -> (i32, i32) {
    %c0_i32 = arith.constant 0 : i32
    %c0_i32_0 = arith.constant 0 : i32
    %c0_i32_1 = arith.constant 0 : i32
    return %c0_i32, %c0_i32_0 : i32, i32
  }
  func.func @transform_16(%arg0: i32, %arg1: i32) -> (i32, i32) {
    %c0_i32 = arith.constant 0 : i32
    %c0_i32_0 = arith.constant 0 : i32
    %c0_i32_1 = arith.constant 0 : i32
    return %c0_i32, %c0_i32_0 : i32, i32
  }
  func.func @transform_17(%arg0: i32, %arg1: i32) -> (i32, i32) {
    %c0_i32 = arith.constant 0 : i32
    %c0_i32_0 = arith.constant 0 : i32
    %c0_i32_1 = arith.constant 0 : i32
    return %c0_i32, %c0_i32_0 : i32, i32
  }
  func.func @transform_18(%arg0: i32, %arg1: i32) -> (i32, i32) {
    %c0_i32 = arith.constant 0 : i32
    %c0_i32_0 = arith.constant 0 : i32
    %c0_i32_1 = arith.constant 0 : i32
    return %c0_i32, %c0_i32_0 : i32, i32
  }
  func.func @transform_19(%arg0: i32, %arg1: i32) -> (i32, i32, i32) {
    %c0_i32 = arith.constant 0 : i32
    %c0_i32_0 = arith.constant 0 : i32
    return %arg0, %arg1, %c0_i32 : i32, i32, i32
  }
}

</mosaic_0001>

<llo_original>
// kernel: tpu_custom_call.1
$region0: #{tpu_custom_call.1}
  #allocation0 [shape = 'u32[]', space=smem, size = 0x4, offset = 0x4, fixed_abs, tag = 'smem constant byte address 0x4 - core index']
  #allocation1 [shape = 'u32[144,128]{1,0:T(1,128)}', space=vmem, size = 0x12000, scoped, tag = 'internal scratch']
  #allocation2 [shape = 'bf16[8,32]{1,0:T(8,128)(2,1)}', space=vmem, size = 0x800, scoped, tag = 'scratch operand']
  #allocation3 [shape = 'bf16[8,32]{1,0:T(8,128)(2,1)}', space=vmem, size = 0x800, scoped, tag = 'scratch operand']
  %s0 = inlined_call_operand.vmem [shape: f32[2,8,32], index: 0, kind: input, shape index: {}]
  %s1 = inlined_call_operand.vmem [shape: f32[2,8,32], index: 1, kind: input, shape index: {}]
  %s2 = inlined_call_operand.hbm [shape: f32[8,8], index: 2, kind: input, shape index: {}]
  %s3 = inlined_call_operand.vmem [shape: bf16[32,32], index: 3, kind: input, shape index: {}]
  %s4 = inlined_call_operand.hbm [shape: bf16[32,32], index: 4, kind: input, shape index: {}]
  %s5 = inlined_call_operand.hbm [shape: bf16[32,32], index: 5, kind: input, shape index: {}]
  %s6 = inlined_call_operand.hbm [shape: bf16[32,32], index: 6, kind: input, shape index: {}]
  %s7 = inlined_call_operand.hbm [shape: f32[1,32], index: 7, kind: input, shape index: {}]
  %s8 = inlined_call_operand.hbm [shape: f32[1,32], index: 8, kind: input, shape index: {}]
  %s9 = inlined_call_operand.hbm [shape: f32[1,32], index: 9, kind: input, shape index: {}]
  %s10 = inlined_call_operand.vmem [shape: f32[1,32], index: 10, kind: input, shape index: {}]
  %s11 = inlined_call_operand.vmem [shape: f32[1,32], index: 11, kind: input, shape index: {}]
  %s12 = inlined_call_operand.vmem [shape: f32[1,32], index: 12, kind: input, shape index: {}]
  %s13 = inlined_call_operand.vmem [shape: bf16[32,64], index: 13, kind: input, shape index: {}]
  %s14 = inlined_call_operand.vmem [shape: f32[1,64], index: 14, kind: input, shape index: {}]
  %s15 = inlined_call_operand.vmem [shape: bf16[64,32], index: 15, kind: input, shape index: {}]
  %s16 = inlined_call_operand.vmem [shape: f32[1,32], index: 16, kind: input, shape index: {}]
  %s17 = inlined_call_operand.vmem [shape: f32[1,32], index: 17, kind: input, shape index: {}]
  %s18 = inlined_call_operand.vmem [shape: f32[1,32], index: 18, kind: input, shape index: {}]
  %s19 = inlined_call_operand.hbm [shape: f32[2,8,32], index: 19, kind: output, shape index: {}]
  %s20 = sld [smem:[#allocation0]]
  $region141: #{tpu_custom_call.1} parent=0
    _
  %s22 = ssub.s32 1, %s20
  %s23 = scalar_select 0, %s22, %s20
  $region1: #{tpu_custom_call.1} parent=0
    #allocation4 [shape = 'u8[4096]{0}', space=vmem, size = 0x1000, scoped, tag = 'input window, operand 2, single buffered']
    #allocation5 [shape = 's32[2]{0}', space=sflag, size = 0x8, scoped, tag = 'scoped memory for tpu_custom_call.1']
    #allocation6 [shape = 's32[2]{0}', space=sflag, size = 0x8, scoped, tag = 'scoped memory for tpu_custom_call.1']
    #allocation7 [shape = 'u8[8192]{0}', space=vmem, size = 0x2000, scoped, tag = 'input window, operand 4, single buffered']
    #allocation8 [shape = 's32[1]{0}', space=sflag, size = 0x4, scoped, tag = 'scoped memory for tpu_custom_call.1']
    #allocation9 [shape = 'u8[8192]{0}', space=vmem, size = 0x2000, scoped, tag = 'input window, operand 5, single buffered']
    #allocation10 [shape = 'u8[8192]{0}', space=vmem, size = 0x2000, scoped, tag = 'input window, operand 6, single buffered']
    #allocation11 [shape = 's32[1]{0}', space=sflag, size = 0x4, scoped, tag = 'scoped memory for tpu_custom_call.1']
    #allocation12 [shape = 'u8[512]{0}', space=vmem, size = 0x400, scoped, tag = 'input window, operand 7, single buffered']
    #allocation13 [shape = 'u8[512]{0}', space=vmem, size = 0x400, scoped, tag = 'input window, operand 8, single buffered']
    #allocation14 [shape = 's32[1]{0}', space=sflag, size = 0x4, scoped, tag = 'scoped memory for tpu_custom_call.1']
    #allocation15 [shape = 'u8[512]{0}', space=vmem, size = 0x400, scoped, tag = 'input window, operand 9, single buffered']
    #allocation16 [shape = 'u8[8192]{0}', space=vmem, size = 0x2000, scoped, tag = 'output window, operand 0']
    %24 = vsyncpa [#allocation5], 0
    %25 = vsyncpa [#allocation8], 0
    %26 = vsyncpa [#allocation11], 0
    %27 = vsyncpa [#allocation14], 0
    %28 = vsyncpa [#allocation6], 0
    %s29 = scalar_lea.sflag [#allocation6], 1
    %30 = vsyncpa %s29, 0
    loop: start=0, step=1, limit=4
    $region2: #{tpu_custom_call.1} parent=1 // loop_pre_header
      _
    $region3: #{tpu_custom_call.1} parent=1 // loop_header
      %s32 = sphi 0, %s36
      %p33 = scmp.ge.s32.totalorder %s32, 4
      %s39 = sphi 0, %s51
      %s40 = sphi 0, %s47
      %s41 = sphi 0, %s39
      %s42 = sphi 0, %s40
      %s43 = sphi 0, %s41
      %s44 = sphi 0, %s42
      %s56 = sphi 0, %s58
      %s59 = sphi 0, %s56
      %s60 = sphi 0, %s59
      %s76 = sphi 0, %s60
      %s82 = sphi 0, %s84
      %s85 = sphi 0, %s82
      %s86 = sphi 0, %s85
      %s102 = sphi 0, %s86
      %s108 = sphi 0, %s110
      %s111 = sphi 0, %s108
      %s112 = sphi 0, %s111
      %s128 = sphi 0, %s112
      %s132 = sphi 0, %s132
      %s134 = sphi 0, %s132
      %s135 = sphi 0, %s134
      %s149 = sphi 0, %s135
      %s153 = sphi 0, %s153
      %s155 = sphi 0, %s153
      %s156 = sphi 0, %s155
      %s170 = sphi 0, %s156
      %s174 = sphi 0, %s174
      %s176 = sphi 0, %s174
      %s177 = sphi 0, %s176
      %s191 = sphi 0, %s177
      %s195 = sphi 0, %s195
      %s197 = sphi 0, %s195
      %s198 = sphi 0, %s197
      %s212 = sphi 0, %s198
      %s216 = sphi 0, %s216
      %s218 = sphi 0, %s216
      %s219 = sphi 0, %s218
      %s233 = sphi 0, %s219
      %s237 = sphi 0, %s237
      %s239 = sphi 0, %s237
      %s240 = sphi 0, %s239
      %s254 = sphi 0, %s240
      %s258 = sphi 0, %s258
      %s260 = sphi 0, %s258
      %s261 = sphi 0, %s260
      %s275 = sphi 0, %s261
      %s279 = sphi 0, %s279
      %s281 = sphi 0, %s279
      %s282 = sphi 0, %s281
      %s296 = sphi 0, %s282
      %s300 = sphi 0, %s300
      %s302 = sphi 0, %s300
      %s303 = sphi 0, %s302
      %s317 = sphi 0, %s303
      %s321 = sphi 0, %s321
      %s323 = sphi 0, %s321
      %s324 = sphi 0, %s323
      %s338 = sphi 0, %s324
      %s342 = sphi 0, %s342
      %s344 = sphi 0, %s342
      %s345 = sphi 0, %s344
      %s359 = sphi 0, %s345
      %s363 = sphi 0, %s363
      %s365 = sphi 0, %s363
      %s366 = sphi 0, %s365
      %s380 = sphi 0, %s366
      %s384 = sphi 0, %s384
      %s386 = sphi 0, %s384
      %s387 = sphi 0, %s386
      %s401 = sphi 0, %s387
      %s405 = sphi 0, %s405
      %s407 = sphi 0, %s405
      %s408 = sphi 0, %s407
      %s422 = sphi 0, %s408
      %s426 = sphi 0, %s426
      %s428 = sphi 0, %s426
      %s429 = sphi 0, %s428
      %s443 = sphi 0, %s429
      %s447 = sphi 0, %s447
      %s449 = sphi 0, %s447
      %s450 = sphi 0, %s449
      %s464 = sphi 0, %s450
      %s472 = sphi 0, %s474
      %s475 = sphi 0, %s472
      %s476 = sphi 0, %s475
      %s492 = sphi 0, %s476
    $region4: #{tpu_custom_call.1} parent=1 // loop_header_branch
      %35 = sbr.rel (%p33) target = $region8
    $region5: #{tpu_custom_call.1} parent=1 // loop_body
      %s37 = ssub.s32 %s32, 1
      %s38 = ssub.s32 %s32, 2
      %s45 = sadd.s32 1, %s40
      %p46 = scmp.ge.s32.totalorder %s45, 1
      %s47 = scalar_select %p46, 0, %s45
      %s48 = sadd.s32 1, %s39
      %s49 = scalar_select %p46, %s48, %s39
      %p50 = scmp.ge.s32.totalorder %s49, 2
      %s51 = scalar_select %p50, 0, %s49
      %s52 = ssub.s32 %s39, %s51
      %s53 = ssub.s32 %s40, %s47
      %s54 = sor.u32 %s52, %s53
      %p55 = scmp.eq.s32.totalorder %s54, 0
      %s57 = sadd.s32 %s56, 1
      %s58 = scalar_select %p55, %s56, %s57
      %p61 = pneg %p55
      %p62 = scmp.eq.s32.totalorder %s32, 1
      %p63 = por %p61, %p62
      %p64 = scmp.ne.s32.totalorder %s56, %s59
      %p65 = scmp.eq.s32.totalorder %s32, 0
      %p66 = por %p64, %p65
      %p67 = scmp.ne.s32.totalorder %s56, %s59
      %p68 = scmp.eq.s32.totalorder %s37, 1
      %p69 = por %p67, %p68
      %p70 = scmp.ne.s32.totalorder %s59, %s60
      %p71 = scmp.eq.s32.totalorder %s37, 0
      %p72 = por %p70, %p71
      %p73 = scmp.ne.s32.totalorder %s59, %s60
      %p74 = scmp.eq.s32.totalorder %s38, 1
      %p75 = por %p73, %p74
      %p77 = scmp.ne.s32.totalorder %s60, %s76
      %p78 = scmp.eq.s32.totalorder %s38, 0
      %p79 = por %p77, %p78
      %s80 = ssub.s32 %s39, %s51
      %p81 = scmp.eq.s32.totalorder %s80, 0
      %s83 = sadd.s32 %s82, 1
      %s84 = scalar_select %p81, %s82, %s83
      %p87 = pneg %p81
      %p88 = scmp.eq.s32.totalorder %s32, 1
      %p89 = por %p87, %p88
      %p90 = scmp.ne.s32.totalorder %s82, %s85
      %p91 = scmp.eq.s32.totalorder %s32, 0
      %p92 = por %p90, %p91
      %p93 = scmp.ne.s32.totalorder %s82, %s85
      %p94 = scmp.eq.s32.totalorder %s37, 1
      %p95 = por %p93, %p94
      %p96 = scmp.ne.s32.totalorder %s85, %s86
      %p97 = scmp.eq.s32.totalorder %s37, 0
      %p98 = por %p96, %p97
      %p99 = scmp.ne.s32.totalorder %s85, %s86
      %p100 = scmp.eq.s32.totalorder %s38, 1
      %p101 = por %p99, %p100
      %p103 = scmp.ne.s32.totalorder %s86, %s102
      %p104 = scmp.eq.s32.totalorder %s38, 0
      %p105 = por %p103, %p104
      %s106 = ssub.s32 %s40, %s47
      %p107 = scmp.eq.s32.totalorder %s106, 0
      %s109 = sadd.s32 %s108, 1
      %s110 = scalar_select %p107, %s108, %s109
      %p113 = pneg %p107
      %p114 = scmp.eq.s32.totalorder %s32, 1
      %p115 = por %p113, %p114
      %p116 = scmp.ne.s32.totalorder %s108, %s111
      %p117 = scmp.eq.s32.totalorder %s32, 0
      %p118 = por %p116, %p117
      %p119 = scmp.ne.s32.totalorder %s108, %s111
      %p120 = scmp.eq.s32.totalorder %s37, 1
      %p121 = por %p119, %p120
      %p122 = scmp.ne.s32.totalorder %s111, %s112
      %p123 = scmp.eq.s32.totalorder %s37, 0
      %p124 = por %p122, %p123
      %p125 = scmp.ne.s32.totalorder %s111, %s112
      %p126 = scmp.eq.s32.totalorder %s38, 1
      %p127 = por %p125, %p126
      %p129 = scmp.ne.s32.totalorder %s112, %s128
      %p130 = scmp.eq.s32.totalorder %s38, 0
      %p131 = por %p129, %p130
      %s133 = sadd.s32 %s132, 1
      %p136 = scmp.eq.s32.totalorder %s32, 1
      %p137 = scmp.ne.s32.totalorder %s132, %s134
      %p138 = scmp.eq.s32.totalorder %s32, 0
      %p139 = por %p137, %p138
      %p140 = scmp.ne.s32.totalorder %s132, %s134
      %p141 = scmp.eq.s32.totalorder %s37, 1
      %p142 = por %p140, %p141
      %p143 = scmp.ne.s32.totalorder %s134, %s135
      %p144 = scmp.eq.s32.totalorder %s37, 0
      %p145 = por %p143, %p144
      %p146 = scmp.ne.s32.totalorder %s134, %s135
      %p147 = scmp.eq.s32.totalorder %s38, 1
      %p148 = por %p146, %p147
      %p150 = scmp.ne.s32.totalorder %s135, %s149
      %p151 = scmp.eq.s32.totalorder %s38, 0
      %p152 = por %p150, %p151
      %s154 = sadd.s32 %s153, 1
      %p157 = scmp.eq.s32.totalorder %s32, 1
      %p158 = scmp.ne.s32.totalorder %s153, %s155
      %p159 = scmp.eq.s32.totalorder %s32, 0
      %p160 = por %p158, %p159
      %p161 = scmp.ne.s32.totalorder %s153, %s155
      %p162 = scmp.eq.s32.totalorder %s37, 1
      %p163 = por %p161, %p162
      %p164 = scmp.ne.s32.totalorder %s155, %s156
      %p165 = scmp.eq.s32.totalorder %s37, 0
      %p166 = por %p164, %p165
      %p167 = scmp.ne.s32.totalorder %s155, %s156
      %p168 = scmp.eq.s32.totalorder %s38, 1
      %p169 = por %p167, %p168
      %p171 = scmp.ne.s32.totalorder %s156, %s170
      %p172 = scmp.eq.s32.totalorder %s38, 0
      %p173 = por %p171, %p172
      %s175 = sadd.s32 %s174, 1
      %p178 = scmp.eq.s32.totalorder %s32, 1
      %p179 = scmp.ne.s32.totalorder %s174, %s176
      %p180 = scmp.eq.s32.totalorder %s32, 0
      %p181 = por %p179, %p180
      %p182 = scmp.ne.s32.totalorder %s174, %s176
      %p183 = scmp.eq.s32.totalorder %s37, 1
      %p184 = por %p182, %p183
      %p185 = scmp.ne.s32.totalorder %s176, %s177
      %p186 = scmp.eq.s32.totalorder %s37, 0
      %p187 = por %p185, %p186
      %p188 = scmp.ne.s32.totalorder %s176, %s177
      %p189 = scmp.eq.s32.totalorder %s38, 1
      %p190 = por %p188, %p189
      %p192 = scmp.ne.s32.totalorder %s177, %s191
      %p193 = scmp.eq.s32.totalorder %s38, 0
      %p194 = por %p192, %p193
      %s196 = sadd.s32 %s195, 1
      %p199 = scmp.eq.s32.totalorder %s32, 1
      %p200 = scmp.ne.s32.totalorder %s195, %s197
      %p201 = scmp.eq.s32.totalorder %s32, 0
      %p202 = por %p200, %p201
      %p203 = scmp.ne.s32.totalorder %s195, %s197
      %p204 = scmp.eq.s32.totalorder %s37, 1
      %p205 = por %p203, %p204
      %p206 = scmp.ne.s32.totalorder %s197, %s198
      %p207 = scmp.eq.s32.totalorder %s37, 0
      %p208 = por %p206, %p207
      %p209 = scmp.ne.s32.totalorder %s197, %s198
      %p210 = scmp.eq.s32.totalorder %s38, 1
      %p211 = por %p209, %p210
      %p213 = scmp.ne.s32.totalorder %s198, %s212
      %p214 = scmp.eq.s32.totalorder %s38, 0
      %p215 = por %p213, %p214
      %s217 = sadd.s32 %s216, 1
      %p220 = scmp.eq.s32.totalorder %s32, 1
      %p221 = scmp.ne.s32.totalorder %s216, %s218
      %p222 = scmp.eq.s32.totalorder %s32, 0
      %p223 = por %p221, %p222
      %p224 = scmp.ne.s32.totalorder %s216, %s218
      %p225 = scmp.eq.s32.totalorder %s37, 1
      %p226 = por %p224, %p225
      %p227 = scmp.ne.s32.totalorder %s218, %s219
      %p228 = scmp.eq.s32.totalorder %s37, 0
      %p229 = por %p227, %p228
      %p230 = scmp.ne.s32.totalorder %s218, %s219
      %p231 = scmp.eq.s32.totalorder %s38, 1
      %p232 = por %p230, %p231
      %p234 = scmp.ne.s32.totalorder %s219, %s233
      %p235 = scmp.eq.s32.totalorder %s38, 0
      %p236 = por %p234, %p235
      %s238 = sadd.s32 %s237, 1
      %p241 = scmp.eq.s32.totalorder %s32, 1
      %p242 = scmp.ne.s32.totalorder %s237, %s239
      %p243 = scmp.eq.s32.totalorder %s32, 0
      %p244 = por %p242, %p243
      %p245 = scmp.ne.s32.totalorder %s237, %s239
      %p246 = scmp.eq.s32.totalorder %s37, 1
      %p247 = por %p245, %p246
      %p248 = scmp.ne.s32.totalorder %s239, %s240
      %p249 = scmp.eq.s32.totalorder %s37, 0
      %p250 = por %p248, %p249
      %p251 = scmp.ne.s32.totalorder %s239, %s240
      %p252 = scmp.eq.s32.totalorder %s38, 1
      %p253 = por %p251, %p252
      %p255 = scmp.ne.s32.totalorder %s240, %s254
      %p256 = scmp.eq.s32.totalorder %s38, 0
      %p257 = por %p255, %p256
      %s259 = sadd.s32 %s258, 1
      %p262 = scmp.eq.s32.totalorder %s32, 1
      %p263 = scmp.ne.s32.totalorder %s258, %s260
      %p264 = scmp.eq.s32.totalorder %s32, 0
      %p265 = por %p263, %p264
      %p266 = scmp.ne.s32.totalorder %s258, %s260
      %p267 = scmp.eq.s32.totalorder %s37, 1
      %p268 = por %p266, %p267
      %p269 = scmp.ne.s32.totalorder %s260, %s261
      %p270 = scmp.eq.s32.totalorder %s37, 0
      %p271 = por %p269, %p270
      %p272 = scmp.ne.s32.totalorder %s260, %s261
      %p273 = scmp.eq.s32.totalorder %s38, 1
      %p274 = por %p272, %p273
      %p276 = scmp.ne.s32.totalorder %s261, %s275
      %p277 = scmp.eq.s32.totalorder %s38, 0
      %p278 = por %p276, %p277
      %s280 = sadd.s32 %s279, 1
      %p283 = scmp.eq.s32.totalorder %s32, 1
      %p284 = scmp.ne.s32.totalorder %s279, %s281
      %p285 = scmp.eq.s32.totalorder %s32, 0
      %p286 = por %p284, %p285
      %p287 = scmp.ne.s32.totalorder %s279, %s281
      %p288 = scmp.eq.s32.totalorder %s37, 1
      %p289 = por %p287, %p288
      %p290 = scmp.ne.s32.totalorder %s281, %s282
      %p291 = scmp.eq.s32.totalorder %s37, 0
      %p292 = por %p290, %p291
      %p293 = scmp.ne.s32.totalorder %s281, %s282
      %p294 = scmp.eq.s32.totalorder %s38, 1
      %p295 = por %p293, %p294
      %p297 = scmp.ne.s32.totalorder %s282, %s296
      %p298 = scmp.eq.s32.totalorder %s38, 0
      %p299 = por %p297, %p298
      %s301 = sadd.s32 %s300, 1
      %p304 = scmp.eq.s32.totalorder %s32, 1
      %p305 = scmp.ne.s32.totalorder %s300, %s302
      %p306 = scmp.eq.s32.totalorder %s32, 0
      %p307 = por %p305, %p306
      %p308 = scmp.ne.s32.totalorder %s300, %s302
      %p309 = scmp.eq.s32.totalorder %s37, 1
      %p310 = por %p308, %p309
      %p311 = scmp.ne.s32.totalorder %s302, %s303
      %p312 = scmp.eq.s32.totalorder %s37, 0
      %p313 = por %p311, %p312
      %p314 = scmp.ne.s32.totalorder %s302, %s303
      %p315 = scmp.eq.s32.totalorder %s38, 1
      %p316 = por %p314, %p315
      %p318 = scmp.ne.s32.totalorder %s303, %s317
      %p319 = scmp.eq.s32.totalorder %s38, 0
      %p320 = por %p318, %p319
      %s322 = sadd.s32 %s321, 1
      %p325 = scmp.eq.s32.totalorder %s32, 1
      %p326 = scmp.ne.s32.totalorder %s321, %s323
      %p327 = scmp.eq.s32.totalorder %s32, 0
      %p328 = por %p326, %p327
      %p329 = scmp.ne.s32.totalorder %s321, %s323
      %p330 = scmp.eq.s32.totalorder %s37, 1
      %p331 = por %p329, %p330
      %p332 = scmp.ne.s32.totalorder %s323, %s324
      %p333 = scmp.eq.s32.totalorder %s37, 0
      %p334 = por %p332, %p333
      %p335 = scmp.ne.s32.totalorder %s323, %s324
      %p336 = scmp.eq.s32.totalorder %s38, 1
      %p337 = por %p335, %p336
      %p339 = scmp.ne.s32.totalorder %s324, %s338
      %p340 = scmp.eq.s32.totalorder %s38, 0
      %p341 = por %p339, %p340
      %s343 = sadd.s32 %s342, 1
      %p346 = scmp.eq.s32.totalorder %s32, 1
      %p347 = scmp.ne.s32.totalorder %s342, %s344
      %p348 = scmp.eq.s32.totalorder %s32, 0
      %p349 = por %p347, %p348
      %p350 = scmp.ne.s32.totalorder %s342, %s344
      %p351 = scmp.eq.s32.totalorder %s37, 1
      %p352 = por %p350, %p351
      %p353 = scmp.ne.s32.totalorder %s344, %s345
      %p354 = scmp.eq.s32.totalorder %s37, 0
      %p355 = por %p353, %p354
      %p356 = scmp.ne.s32.totalorder %s344, %s345
      %p357 = scmp.eq.s32.totalorder %s38, 1
      %p358 = por %p356, %p357
      %p360 = scmp.ne.s32.totalorder %s345, %s359
      %p361 = scmp.eq.s32.totalorder %s38, 0
      %p362 = por %p360, %p361
      %s364 = sadd.s32 %s363, 1
      %p367 = scmp.eq.s32.totalorder %s32, 1
      %p368 = scmp.ne.s32.totalorder %s363, %s365
      %p369 = scmp.eq.s32.totalorder %s32, 0
      %p370 = por %p368, %p369
      %p371 = scmp.ne.s32.totalorder %s363, %s365
      %p372 = scmp.eq.s32.totalorder %s37, 1
      %p373 = por %p371, %p372
      %p374 = scmp.ne.s32.totalorder %s365, %s366
      %p375 = scmp.eq.s32.totalorder %s37, 0
      %p376 = por %p374, %p375
      %p377 = scmp.ne.s32.totalorder %s365, %s366
      %p378 = scmp.eq.s32.totalorder %s38, 1
      %p379 = por %p377, %p378
      %p381 = scmp.ne.s32.totalorder %s366, %s380
      %p382 = scmp.eq.s32.totalorder %s38, 0
      %p383 = por %p381, %p382
      %s385 = sadd.s32 %s384, 1
      %p388 = scmp.eq.s32.totalorder %s32, 1
      %p389 = scmp.ne.s32.totalorder %s384, %s386
      %p390 = scmp.eq.s32.totalorder %s32, 0
      %p391 = por %p389, %p390
      %p392 = scmp.ne.s32.totalorder %s384, %s386
      %p393 = scmp.eq.s32.totalorder %s37, 1
      %p394 = por %p392, %p393
      %p395 = scmp.ne.s32.totalorder %s386, %s387
      %p396 = scmp.eq.s32.totalorder %s37, 0
      %p397 = por %p395, %p396
      %p398 = scmp.ne.s32.totalorder %s386, %s387
      %p399 = scmp.eq.s32.totalorder %s38, 1
      %p400 = por %p398, %p399
      %p402 = scmp.ne.s32.totalorder %s387, %s401
      %p403 = scmp.eq.s32.totalorder %s38, 0
      %p404 = por %p402, %p403
      %s406 = sadd.s32 %s405, 1
      %p409 = scmp.eq.s32.totalorder %s32, 1
      %p410 = scmp.ne.s32.totalorder %s405, %s407
      %p411 = scmp.eq.s32.totalorder %s32, 0
      %p412 = por %p410, %p411
      %p413 = scmp.ne.s32.totalorder %s405, %s407
      %p414 = scmp.eq.s32.totalorder %s37, 1
      %p415 = por %p413, %p414
      %p416 = scmp.ne.s32.totalorder %s407, %s408
      %p417 = scmp.eq.s32.totalorder %s37, 0
      %p418 = por %p416, %p417
      %p419 = scmp.ne.s32.totalorder %s407, %s408
      %p420 = scmp.eq.s32.totalorder %s38, 1
      %p421 = por %p419, %p420
      %p423 = scmp.ne.s32.totalorder %s408, %s422
      %p424 = scmp.eq.s32.totalorder %s38, 0
      %p425 = por %p423, %p424
      %s427 = sadd.s32 %s426, 1
      %p430 = scmp.eq.s32.totalorder %s32, 1
      %p431 = scmp.ne.s32.totalorder %s426, %s428
      %p432 = scmp.eq.s32.totalorder %s32, 0
      %p433 = por %p431, %p432
      %p434 = scmp.ne.s32.totalorder %s426, %s428
      %p435 = scmp.eq.s32.totalorder %s37, 1
      %p436 = por %p434, %p435
      %p437 = scmp.ne.s32.totalorder %s428, %s429
      %p438 = scmp.eq.s32.totalorder %s37, 0
      %p439 = por %p437, %p438
      %p440 = scmp.ne.s32.totalorder %s428, %s429
      %p441 = scmp.eq.s32.totalorder %s38, 1
      %p442 = por %p440, %p441
      %p444 = scmp.ne.s32.totalorder %s429, %s443
      %p445 = scmp.eq.s32.totalorder %s38, 0
      %p446 = por %p444, %p445
      %s448 = sadd.s32 %s447, 1
      %p451 = scmp.eq.s32.totalorder %s32, 1
      %p452 = scmp.ne.s32.totalorder %s447, %s449
      %p453 = scmp.eq.s32.totalorder %s32, 0
      %p454 = por %p452, %p453
      %p455 = scmp.ne.s32.totalorder %s447, %s449
      %p456 = scmp.eq.s32.totalorder %s37, 1
      %p457 = por %p455, %p456
      %p458 = scmp.ne.s32.totalorder %s449, %s450
      %p459 = scmp.eq.s32.totalorder %s37, 0
      %p460 = por %p458, %p459
      %p461 = scmp.ne.s32.totalorder %s449, %s450
      %p462 = scmp.eq.s32.totalorder %s38, 1
      %p463 = por %p461, %p462
      %p465 = scmp.ne.s32.totalorder %s450, %s464
      %p466 = scmp.eq.s32.totalorder %s38, 0
      %p467 = por %p465, %p466
      %s468 = ssub.s32 %s39, %s51
      %s469 = ssub.s32 %s40, %s47
      %s470 = sor.u32 %s468, %s469
      %p471 = scmp.eq.s32.totalorder %s470, 0
      %s473 = sadd.s32 %s472, 1
      %s474 = scalar_select %p471, %s472, %s473
      %p477 = pneg %p471
      %p478 = scmp.eq.s32.totalorder %s32, 1
      %p479 = por %p477, %p478
      %p480 = scmp.ne.s32.totalorder %s472, %s475
      %p481 = scmp.eq.s32.totalorder %s32, 0
      %p482 = por %p480, %p481
      %p483 = scmp.ne.s32.totalorder %s472, %s475
      %p484 = scmp.eq.s32.totalorder %s37, 1
      %p485 = por %p483, %p484
      %p486 = scmp.ne.s32.totalorder %s475, %s476
      %p487 = scmp.eq.s32.totalorder %s37, 0
      %p488 = por %p486, %p487
      %p489 = scmp.ne.s32.totalorder %s475, %s476
      %p490 = scmp.eq.s32.totalorder %s38, 1
      %p491 = por %p489, %p490
      %p493 = scmp.ne.s32.totalorder %s476, %s492
      %p494 = scmp.eq.s32.totalorder %s38, 0
      %p495 = por %p493, %p494
      %p496 = scmp.le.s32.totalorder 1, %s32
      %p497 = scmp.lt.s32.totalorder %s32, 3
      %p498 = pnand %p496, %p497
      %p499 = pneg %p498
      // Predicated region
      $region9: #{tpu_custom_call.1} parent=5 // pred_check
        _
      $region10: #{tpu_custom_call.1} parent=5 // pred_check_branch
        %501 = sbr.rel (%p498) target = $region12
      $region11: #{tpu_custom_call.1} parent=5 // pred_region
        %s502 = ssub.s32 %s32, 1
        // Predicated region
        $region13: #{tpu_custom_call.1} parent=11 // pred_check
          %p503 = pneg %p124
        $region14: #{tpu_custom_call.1} parent=11 // pred_check_branch
          %505 = sbr.rel (%p503) target = $region16
        $region15: #{tpu_custom_call.1} parent=11 // pred_region
          %s507 = ssub.s32 128, 128
          %508 = vsyncadd [#allocation5], %s507
          %s509 = smul.addr %s42, 128
          %s510 = scalar_lea.hbm %s2, %s509
          %s512 = sshll.u32 [#allocation4], 4
          %s513 = int_to_ptr.vmem [resolvable:$true] %s512
          %515 = dma.hbm_to_vmem [thread:$0]  %s510, 128, %s513, [#allocation5]
        $region16: #{tpu_custom_call.1} parent=11 // pred_fallthru
          _
        // Predicated region
        $region17: #{tpu_custom_call.1} parent=11 // pred_check
          %p516 = pneg %p145
        $region18: #{tpu_custom_call.1} parent=11 // pred_check_branch
          %518 = sbr.rel (%p516) target = $region20
        $region19: #{tpu_custom_call.1} parent=11 // pred_region
          _
        $region20: #{tpu_custom_call.1} parent=11 // pred_fallthru
          _
        // Predicated region
        $region21: #{tpu_custom_call.1} parent=11 // pred_check
          %p519 = pneg %p166
        $region22: #{tpu_custom_call.1} parent=11 // pred_check_branch
          %521 = sbr.rel (%p519) target = $region24
        $region23: #{tpu_custom_call.1} parent=11 // pred_region
          %s523 = ssub.s32 256, 256
          %524 = vsyncadd [#allocation8], %s523
          %s525 = sshll.u32 [#allocation7], 4
          %s526 = int_to_ptr.vmem [resolvable:$true] %s525
          %531 = dma.hbm_to_vmem [thread:$0]  %s4, 256, %s526, [#allocation8], 64, 64, 4
        $region24: #{tpu_custom_call.1} parent=11 // pred_fallthru
          _
        // Predicated region
        $region25: #{tpu_custom_call.1} parent=11 // pred_check
          %p532 = pneg %p187
        $region26: #{tpu_custom_call.1} parent=11 // pred_check_branch
          %534 = sbr.rel (%p532) target = $region28
        $region27: #{tpu_custom_call.1} parent=11 // pred_region
          %s536 = ssub.s32 256, 256
          %537 = vsyncadd [#allocation8], %s536
          %s538 = sshll.u32 [#allocation9], 4
          %s539 = int_to_ptr.vmem [resolvable:$true] %s538
          %544 = dma.hbm_to_vmem [thread:$0]  %s5, 256, %s539, [#allocation8], 64, 64, 4
        $region28: #{tpu_custom_call.1} parent=11 // pred_fallthru
          _
        // Predicated region
        $region29: #{tpu_custom_call.1} parent=11 // pred_check
          %p545 = pneg %p208
        $region30: #{tpu_custom_call.1} parent=11 // pred_check_branch
          %547 = sbr.rel (%p545) target = $region32
        $region31: #{tpu_custom_call.1} parent=11 // pred_region
          %s549 = ssub.s32 256, 256
          %550 = vsyncadd [#allocation11], %s549
          %s551 = sshll.u32 [#allocation10], 4
          %s552 = int_to_ptr.vmem [resolvable:$true] %s551
          %557 = dma.hbm_to_vmem [thread:$0]  %s6, 256, %s552, [#allocation11], 64, 64, 4
        $region32: #{tpu_custom_call.1} parent=11 // pred_fallthru
          _
        // Predicated region
        $region33: #{tpu_custom_call.1} parent=11 // pred_check
          %p558 = pneg %p229
        $region34: #{tpu_custom_call.1} parent=11 // pred_check_branch
          %560 = sbr.rel (%p558) target = $region36
        $region35: #{tpu_custom_call.1} parent=11 // pred_region
          %s562 = ssub.s32 16, 16
          %563 = vsyncadd [#allocation11], %s562
          %s565 = sshll.u32 [#allocation12], 4
          %s566 = int_to_ptr.vmem [resolvable:$true] %s565
          %568 = dma.hbm_to_vmem [thread:$0]  %s7, 16, %s566, [#allocation11]
        $region36: #{tpu_custom_call.1} parent=11 // pred_fallthru
          _
        // Predicated region
        $region37: #{tpu_custom_call.1} parent=11 // pred_check
          %p569 = pneg %p250
        $region38: #{tpu_custom_call.1} parent=11 // pred_check_branch
          %571 = sbr.rel (%p569) target = $region40
        $region39: #{tpu_custom_call.1} parent=11 // pred_region
          %s573 = ssub.s32 16, 16
          %574 = vsyncadd [#allocation14], %s573
          %s576 = sshll.u32 [#allocation13], 4
          %s577 = int_to_ptr.vmem [resolvable:$true] %s576
          %579 = dma.hbm_to_vmem [thread:$0]  %s8, 16, %s577, [#allocation14]
        $region40: #{tpu_custom_call.1} parent=11 // pred_fallthru
          _
        // Predicated region
        $region41: #{tpu_custom_call.1} parent=11 // pred_check
          %p580 = pneg %p271
        $region42: #{tpu_custom_call.1} parent=11 // pred_check_branch
          %582 = sbr.rel (%p580) target = $region44
        $region43: #{tpu_custom_call.1} parent=11 // pred_region
          %s584 = ssub.s32 16, 16
          %585 = vsyncadd [#allocation14], %s584
          %s587 = sshll.u32 [#allocation15], 4
          %s588 = int_to_ptr.vmem [resolvable:$true] %s587
          %590 = dma.hbm_to_vmem [thread:$0]  %s9, 16, %s588, [#allocation14]
        $region44: #{tpu_custom_call.1} parent=11 // pred_fallthru
          _
        // Predicated region
        $region45: #{tpu_custom_call.1} parent=11 // pred_check
          %p591 = pneg %p292
        $region46: #{tpu_custom_call.1} parent=11 // pred_check_branch
          %593 = sbr.rel (%p591) target = $region48
        $region47: #{tpu_custom_call.1} parent=11 // pred_region
          _
        $region48: #{tpu_custom_call.1} parent=11 // pred_fallthru
          _
        // Predicated region
        $region49: #{tpu_custom_call.1} parent=11 // pred_check
          %p594 = pneg %p313
        $region50: #{tpu_custom_call.1} parent=11 // pred_check_branch
          %596 = sbr.rel (%p594) target = $region52
        $region51: #{tpu_custom_call.1} parent=11 // pred_region
          _
        $region52: #{tpu_custom_call.1} parent=11 // pred_fallthru
          _
        // Predicated region
        $region53: #{tpu_custom_call.1} parent=11 // pred_check
          %p597 = pneg %p334
        $region54: #{tpu_custom_call.1} parent=11 // pred_check_branch
          %599 = sbr.rel (%p597) target = $region56
        $region55: #{tpu_custom_call.1} parent=11 // pred_region
          _
        $region56: #{tpu_custom_call.1} parent=11 // pred_fallthru
          _
        // Predicated region
        $region57: #{tpu_custom_call.1} parent=11 // pred_check
          %p600 = pneg %p355
        $region58: #{tpu_custom_call.1} parent=11 // pred_check_branch
          %602 = sbr.rel (%p600) target = $region60
        $region59: #{tpu_custom_call.1} parent=11 // pred_region
          _
        $region60: #{tpu_custom_call.1} parent=11 // pred_fallthru
          _
        // Predicated region
        $region61: #{tpu_custom_call.1} parent=11 // pred_check
          %p603 = pneg %p376
        $region62: #{tpu_custom_call.1} parent=11 // pred_check_branch
          %605 = sbr.rel (%p603) target = $region64
        $region63: #{tpu_custom_call.1} parent=11 // pred_region
          _
        $region64: #{tpu_custom_call.1} parent=11 // pred_fallthru
          _
        // Predicated region
        $region65: #{tpu_custom_call.1} parent=11 // pred_check
          %p606 = pneg %p397
        $region66: #{tpu_custom_call.1} parent=11 // pred_check_branch
          %608 = sbr.rel (%p606) target = $region68
        $region67: #{tpu_custom_call.1} parent=11 // pred_region
          _
        $region68: #{tpu_custom_call.1} parent=11 // pred_fallthru
          _
        // Predicated region
        $region69: #{tpu_custom_call.1} parent=11 // pred_check
          %p609 = pneg %p418
        $region70: #{tpu_custom_call.1} parent=11 // pred_check_branch
          %611 = sbr.rel (%p609) target = $region72
        $region71: #{tpu_custom_call.1} parent=11 // pred_region
          _
        $region72: #{tpu_custom_call.1} parent=11 // pred_fallthru
          _
        // Predicated region
        $region73: #{tpu_custom_call.1} parent=11 // pred_check
          %p612 = pneg %p439
        $region74: #{tpu_custom_call.1} parent=11 // pred_check_branch
          %614 = sbr.rel (%p612) target = $region76
        $region75: #{tpu_custom_call.1} parent=11 // pred_region
          _
        $region76: #{tpu_custom_call.1} parent=11 // pred_fallthru
          _
        // Predicated region
        $region77: #{tpu_custom_call.1} parent=11 // pred_check
          %p615 = pneg %p460
        $region78: #{tpu_custom_call.1} parent=11 // pred_check_branch
          %617 = sbr.rel (%p615) target = $region80
        $region79: #{tpu_custom_call.1} parent=11 // pred_region
          _
        $region80: #{tpu_custom_call.1} parent=11 // pred_fallthru
          _
      $region12: #{tpu_custom_call.1} parent=5 // pred_fallthru
        _
      %p618 = scmp.lt.s32.totalorder %s32, 2
      // Predicated region
      $region81: #{tpu_custom_call.1} parent=5 // pred_check
        %p619 = pneg %p618
      $region82: #{tpu_custom_call.1} parent=5 // pred_check_branch
        %621 = sbr.rel (%p619) target = $region84
      $region83: #{tpu_custom_call.1} parent=5 // pred_region
        // Predicated region
        $region85: #{tpu_custom_call.1} parent=83 // pred_check
          %p622 = pneg %p66
        $region86: #{tpu_custom_call.1} parent=83 // pred_check_branch
          %624 = sbr.rel (%p622) target = $region88
        $region87: #{tpu_custom_call.1} parent=83 // pred_region
          %p625 = scmp.lt.s32.totalorder %s39, 1
          %s626 = scalar_select %p625, %s39, 1
          %p627 = scmp.lt.s32.totalorder %s40, 0
          %s628 = scalar_select %p627, %s40, 0
          %s629 = sadd.s32 %s628, %s626
          %s630 = smul.addr %s629, 8
          %s631 = scalar_lea.vmem %s0, %s630
        $region88: #{tpu_custom_call.1} parent=83 // pred_fallthru
          _
        // Predicated region
        $region89: #{tpu_custom_call.1} parent=83 // pred_check
          %p632 = pneg %p92
        $region90: #{tpu_custom_call.1} parent=83 // pred_check_branch
          %634 = sbr.rel (%p632) target = $region92
        $region91: #{tpu_custom_call.1} parent=83 // pred_region
          %p635 = scmp.lt.s32.totalorder %s39, 1
          %s636 = scalar_select %p635, %s39, 1
          %s637 = smul.addr %s636, 8
          %s638 = scalar_lea.vmem %s1, %s637
        $region92: #{tpu_custom_call.1} parent=83 // pred_fallthru
          _
      $region84: #{tpu_custom_call.1} parent=5 // pred_fallthru
        _
      %p639 = scmp.le.s32.totalorder 1, %s32
      %p640 = scmp.lt.s32.totalorder %s32, 3
      %p641 = pnand %p639, %p640
      %p642 = pneg %p641
      // Predicated region
      $region93: #{tpu_custom_call.1} parent=5 // pred_check
        _
      $region94: #{tpu_custom_call.1} parent=5 // pred_check_branch
        %644 = sbr.rel (%p641) target = $region96
      $region95: #{tpu_custom_call.1} parent=5 // pred_region
        %s645 = ssub.s32 %s32, 1
        // Predicated region
        $region97: #{tpu_custom_call.1} parent=95 // pred_check
          %p646 = pneg %p124
        $region98: #{tpu_custom_call.1} parent=95 // pred_check_branch
          %648 = sbr.rel (%p646) target = $region100
        $region99: #{tpu_custom_call.1} parent=95 // pred_region
          %649 = dma.done [#allocation5], 128
        $region100: #{tpu_custom_call.1} parent=95 // pred_fallthru
          _
        // Predicated region
        $region101: #{tpu_custom_call.1} parent=95 // pred_check
          %p650 = pneg %p166
        $region102: #{tpu_custom_call.1} parent=95 // pred_check_branch
          %652 = sbr.rel (%p650) target = $region104
        $region103: #{tpu_custom_call.1} parent=95 // pred_region
          %653 = dma.done [#allocation8], 256
        $region104: #{tpu_custom_call.1} parent=95 // pred_fallthru
          _
        // Predicated region
        $region105: #{tpu_custom_call.1} parent=95 // pred_check
          %p654 = pneg %p187
        $region106: #{tpu_custom_call.1} parent=95 // pred_check_branch
          %656 = sbr.rel (%p654) target = $region108
        $region107: #{tpu_custom_call.1} parent=95 // pred_region
          %657 = dma.done [#allocation8], 256
        $region108: #{tpu_custom_call.1} parent=95 // pred_fallthru
          _
        // Predicated region
        $region109: #{tpu_custom_call.1} parent=95 // pred_check
          %p658 = pneg %p208
        $region110: #{tpu_custom_call.1} parent=95 // pred_check_branch
          %660 = sbr.rel (%p658) target = $region112
        $region111: #{tpu_custom_call.1} parent=95 // pred_region
          %661 = dma.done [#allocation11], 256
        $region112: #{tpu_custom_call.1} parent=95 // pred_fallthru
          _
        // Predicated region
        $region113: #{tpu_custom_call.1} parent=95 // pred_check
          %p662 = pneg %p229
        $region114: #{tpu_custom_call.1} parent=95 // pred_check_branch
          %664 = sbr.rel (%p662) target = $region116
        $region115: #{tpu_custom_call.1} parent=95 // pred_region
          %665 = dma.done [#allocation11], 16
        $region116: #{tpu_custom_call.1} parent=95 // pred_fallthru
          _
        // Predicated region
        $region117: #{tpu_custom_call.1} parent=95 // pred_check
          %p666 = pneg %p250
        $region118: #{tpu_custom_call.1} parent=95 // pred_check_branch
          %668 = sbr.rel (%p666) target = $region120
        $region119: #{tpu_custom_call.1} parent=95 // pred_region
          %669 = dma.done [#allocation14], 16
        $region120: #{tpu_custom_call.1} parent=95 // pred_fallthru
          _
        // Predicated region
        $region121: #{tpu_custom_call.1} parent=95 // pred_check
          %p670 = pneg %p271
        $region122: #{tpu_custom_call.1} parent=95 // pred_check_branch
          %672 = sbr.rel (%p670) target = $region124
        $region123: #{tpu_custom_call.1} parent=95 // pred_region
          %673 = dma.done [#allocation14], 16
        $region124: #{tpu_custom_call.1} parent=95 // pred_fallthru
          _
        %p674 = scmp.lt.s32.totalorder %s41, 1
        %s675 = scalar_select %p674, %s41, 1
        %p676 = scmp.lt.s32.totalorder %s42, 0
        %s677 = scalar_select %p676, %s42, 0
        %s678 = sadd.s32 %s677, %s675
        %s679 = smul.addr %s678, 8
        %s680 = scalar_lea.vmem %s0, %s679
        %p681 = pneg %p72
        %p682 = pneg %p69
        %p683 = scmp.lt.s32.totalorder %s41, 1
        %s684 = scalar_select %p683, %s41, 1
        %s685 = smul.addr %s684, 8
        %s686 = scalar_lea.vmem %s1, %s685
        %p687 = pneg %p98
        %p688 = pneg %p95
        %p689 = pneg %p124
        %p690 = pneg %p121
        %p691 = pneg %p145
        %p692 = pneg %p142
        %p693 = pneg %p166
        %p694 = pneg %p163
        %p695 = pneg %p187
        %p696 = pneg %p184
        %p697 = pneg %p208
        %p698 = pneg %p205
        %p699 = pneg %p229
        %p700 = pneg %p226
        %p701 = pneg %p250
        %p702 = pneg %p247
        %p703 = pneg %p271
        %p704 = pneg %p268
        %p705 = pneg %p292
        %p706 = pneg %p289
        %p707 = pneg %p313
        %p708 = pneg %p310
        %p709 = pneg %p334
        %p710 = pneg %p331
        %p711 = pneg %p355
        %p712 = pneg %p352
        %p713 = pneg %p376
        %p714 = pneg %p373
        %p715 = pneg %p397
        %p716 = pneg %p394
        %p717 = pneg %p418
        %p718 = pneg %p415
        %p719 = pneg %p439
        %p720 = pneg %p436
        %p721 = pneg %p460
        %p722 = pneg %p457
        %p723 = pneg %p488
        %p724 = pneg %p485
        %s725 = sand.u32 %s475, 1
        %s726 = scalar_lea.sflag [#allocation6], %s725
        %s727 = sand.u32 %s475, 1
        %s728 = smul.addr %s727, 8
        %s729 = scalar_lea.vmem [#allocation16], %s728
        %p730 = scmp.lt.s32.totalorder %s41, 1
        %s731 = scalar_select %p730, %s41, 1
        %p732 = scmp.lt.s32.totalorder %s42, 0
        %s733 = scalar_select %p732, %s42, 0
        %s734 = sadd.s32 %s733, %s731
        %s735 = smul.addr %s734, 8
        %s736 = scalar_lea.vmem %s0, %s735
        %p737 = scmp.lt.s32.totalorder %s41, 1
        %s738 = scalar_select %p737, %s41, 1
        %s739 = smul.addr %s738, 8
        %s740 = scalar_lea.vmem %s1, %s739
        %p742 = scmp.eq.s32.totalorder %s42, 0
        // Predicated region
        $region125: #{tpu_custom_call.1} parent=95 // pred_check
          %p743 = pneg %p742
        $region126: #{tpu_custom_call.1} parent=95 // pred_check_branch
          %745 = sbr.rel (%p743) target = $region128
        $region127: #{tpu_custom_call.1} parent=95 // pred_region
          %v746 = vld [vmem:[%s740] sm:$0xff]
          %v747 = vpack.c.bf16 %v746, %v746
          %v748 = vld [vmem:[#allocation7] sm:$0xf]
          %v749 = vld [vmem:[#allocation7 + $0x4] sm:$0xf]
          %v750 = vld [vmem:[#allocation7 + $0x8] sm:$0xf]
          %v751 = vld [vmem:[#allocation7 + $0xc] sm:$0xf]
          %v752 = vld [vmem:[#allocation13] sm:$0x1]
          %v754 = vlaneseq
          %v755 = vshrl.u32 %v754, 7
          %v756 = vsub.s32 0, %v755
          %v757 = vrot.slane %v752, %v756
          %v763 = vunpack.c.l.b16 %v748
          %v764 = vunpack.c.l.b16 %v749
          %v765 = vunpack.c.l.b16 %v750
          %v766 = vunpack.c.l.b16 %v751
          %v767 = vpack.c.b16 %v764, %v763
          %v768 = vpack.c.b16 %v766, %v765
          %vm771 = vcmask 261120
          %v773 = vsel %vm771, %v747, 0
          %775 = vmatprep.subr.bf16.mxu0 0
          %776 = vmatpush1.bf16.msra.mxu0 0
          %777 = vmatprep.subr.bf16.mxu0 0
          %778 = vmatpush1.bf16.msra.mxu0 0
          %779 = vmatprep.subr.bf16.mxu0 0
          %780 = vmatpush1.bf16.msra.mxu0 0
          %781 = vmatprep.subr.bf16.mxu0 0
          %782 = vmatpush1.bf16.msra.mxu0 0
          %783 = vmatprep.subr.bf16.mxu0 0
          %784 = vmatpush1.bf16.msra.mxu0 0
          %785 = vmatprep.subr.bf16.mxu0 0
          %786 = vmatpush1.bf16.msra.mxu0 0
          %787 = vmatprep.subr.bf16.mxu0 0
          %788 = vmatpush1.bf16.msra.mxu0 %v768
          %789 = vmatprep.subr.bf16.mxu0 0
          %790 = vmatpush1.bf16.msra.mxu0 %v767
          %791 = vmatprep.subr.bf16.mxu0 0
          %792 = vmatpush2.bf16.msra.mxu0 0
          %793 = vmatprep.subr.bf16.mxu0 0
          %794 = vmatpush2.bf16.msra.mxu0 0
          %795 = vmatprep.subr.bf16.mxu0 0
          %796 = vmatpush2.bf16.msra.mxu0 0
          %797 = vmatprep.subr.bf16.mxu0 0
          %798 = vmatpush2.bf16.msra.mxu0 0
          %799 = vmatprep.subr.bf16.mxu0 0
          %800 = vmatpush2.bf16.msra.mxu0 0
          %801 = vmatprep.subr.bf16.mxu0 0
          %802 = vmatpush2.bf16.msra.mxu0 0
          %803 = vmatprep.subr.bf16.mxu0 0
          %804 = vmatpush2.bf16.msra.mxu0 0
          %805 = vmatprep.subr.bf16.mxu0 0
          %806 = vmatpush2.bf16.msra.mxu0 0
          %807 = vmatprep.mubr.bf16.mxu0 0
          %808 = vmatmul.mubr.bf16.gmra.mxu0 %v773
          %v809 = vpop.f32.mrf.mxu0
          %v810 = vadd.f32 %v757, %v809
          %v811 = vpop.f32.mrf.mxu0
          %v812 = vpop.f32.mrf.mxu0
          %v813 = vpop.f32.mrf.mxu0
          %814 = vdwg.mxu0
          %v815 = vld [vmem:[#allocation9] sm:$0xf]
          %v816 = vld [vmem:[#allocation9 + $0x4] sm:$0xf]
          %v817 = vld [vmem:[#allocation9 + $0x8] sm:$0xf]
          %v818 = vld [vmem:[#allocation9 + $0xc] sm:$0xf]
          %v819 = vld [vmem:[#allocation15] sm:$0x1]
          %v821 = vlaneseq
          %v822 = vshrl.u32 %v821, 7
          %v823 = vsub.s32 0, %v822
          %v824 = vrot.slane %v819, %v823
          %v830 = vunpack.c.l.b16 %v815
          %v831 = vunpack.c.l.b16 %v816
          %v832 = vunpack.c.l.b16 %v817
          %v833 = vunpack.c.l.b16 %v818
          %v834 = vpack.c.b16 %v831, %v830
          %v835 = vpack.c.b16 %v833, %v832
          %838 = vmatprep.subr.bf16.mxu0 0
          %839 = vmatpush1.bf16.msra.mxu0 0
          %840 = vmatprep.subr.bf16.mxu0 0
          %841 = vmatpush1.bf16.msra.mxu0 0
          %842 = vmatprep.subr.bf16.mxu0 0
          %843 = vmatpush1.bf16.msra.mxu0 0
          %844 = vmatprep.subr.bf16.mxu0 0
          %845 = vmatpush1.bf16.msra.mxu0 0
          %846 = vmatprep.subr.bf16.mxu0 0
          %847 = vmatpush1.bf16.msra.mxu0 0
          %848 = vmatprep.subr.bf16.mxu0 0
          %849 = vmatpush1.bf16.msra.mxu0 0
          %850 = vmatprep.subr.bf16.mxu0 0
          %851 = vmatpush1.bf16.msra.mxu0 %v835
          %852 = vmatprep.subr.bf16.mxu0 0
          %853 = vmatpush1.bf16.msra.mxu0 %v834
          %854 = vmatprep.subr.bf16.mxu0 0
          %855 = vmatpush2.bf16.msra.mxu0 0
          %856 = vmatprep.subr.bf16.mxu0 0
          %857 = vmatpush2.bf16.msra.mxu0 0
          %858 = vmatprep.subr.bf16.mxu0 0
          %859 = vmatpush2.bf16.msra.mxu0 0
          %860 = vmatprep.subr.bf16.mxu0 0
          %861 = vmatpush2.bf16.msra.mxu0 0
          %862 = vmatprep.subr.bf16.mxu0 0
          %863 = vmatpush2.bf16.msra.mxu0 0
          %864 = vmatprep.subr.bf16.mxu0 0
          %865 = vmatpush2.bf16.msra.mxu0 0
          %866 = vmatprep.subr.bf16.mxu0 0
          %867 = vmatpush2.bf16.msra.mxu0 0
          %868 = vmatprep.subr.bf16.mxu0 0
          %869 = vmatpush2.bf16.msra.mxu0 0
          %870 = vmatprep.mubr.bf16.mxu0 0
          %871 = vmatmul.mubr.bf16.gmra.mxu0 %v773
          %v872 = vpop.f32.mrf.mxu0
          %v873 = vadd.f32 %v824, %v872
          %v874 = vpop.f32.mrf.mxu0
          %v875 = vpop.f32.mrf.mxu0
          %v876 = vpop.f32.mrf.mxu0
          %877 = vdwg.mxu0
          %v878 = vpack.c.bf16 %v810, %v810
          %vm879 = vcmask 257024
          %880 = vst.msk [vmem:[#allocation2] sm:$0xf] %vm879, %v878
          %v881 = vpack.c.bf16 %v873, %v873
          %882 = vst.msk [vmem:[#allocation3] sm:$0xf] %vm879, %v881
        $region128: #{tpu_custom_call.1} parent=95 // pred_fallthru
          _
        %v883 = vld [vmem:[%s736] sm:$0xff]
        %v884 = vpack.c.bf16 %v883, %v883
        %v885 = vld [vmem:[%s3] sm:$0xf]
        %v886 = vld [vmem:[%s3 + $0x4] sm:$0xf]
        %v887 = vld [vmem:[%s3 + $0x8] sm:$0xf]
        %v888 = vld [vmem:[%s3 + $0xc] sm:$0xf]
        %v889 = vld [vmem:[#allocation12] sm:$0x1]
        %v891 = vlaneseq
        %v892 = vshrl.u32 %v891, 7
        %v893 = vsub.s32 0, %v892
        %v894 = vrot.slane %v889, %v893
        %v900 = vunpack.c.l.b16 %v885
        %v901 = vunpack.c.l.b16 %v886
        %v902 = vunpack.c.l.b16 %v887
        %v903 = vunpack.c.l.b16 %v888
        %v904 = vpack.c.b16 %v901, %v900
        %v905 = vpack.c.b16 %v903, %v902
        %vm908 = vcmask 261120
        %v910 = vsel %vm908, %v884, 0
        %912 = vmatprep.subr.bf16.mxu0 0
        %913 = vmatpush1.bf16.msra.mxu0 0
        %914 = vmatprep.subr.bf16.mxu0 0
        %915 = vmatpush1.bf16.msra.mxu0 0
        %916 = vmatprep.subr.bf16.mxu0 0
        %917 = vmatpush1.bf16.msra.mxu0 0
        %918 = vmatprep.subr.bf16.mxu0 0
        %919 = vmatpush1.bf16.msra.mxu0 0
        %920 = vmatprep.subr.bf16.mxu0 0
        %921 = vmatpush1.bf16.msra.mxu0 0
        %922 = vmatprep.subr.bf16.mxu0 0
        %923 = vmatpush1.bf16.msra.mxu0 0
        %924 = vmatprep.subr.bf16.mxu0 0
        %925 = vmatpush1.bf16.msra.mxu0 %v905
        %926 = vmatprep.subr.bf16.mxu0 0
        %927 = vmatpush1.bf16.msra.mxu0 %v904
        %928 = vmatprep.subr.bf16.mxu0 0
        %929 = vmatpush2.bf16.msra.mxu0 0
        %930 = vmatprep.subr.bf16.mxu0 0
        %931 = vmatpush2.bf16.msra.mxu0 0
        %932 = vmatprep.subr.bf16.mxu0 0
        %933 = vmatpush2.bf16.msra.mxu0 0
        %934 = vmatprep.subr.bf16.mxu0 0
        %935 = vmatpush2.bf16.msra.mxu0 0
        %936 = vmatprep.subr.bf16.mxu0 0
        %937 = vmatpush2.bf16.msra.mxu0 0
        %938 = vmatprep.subr.bf16.mxu0 0
        %939 = vmatpush2.bf16.msra.mxu0 0
        %940 = vmatprep.subr.bf16.mxu0 0
        %941 = vmatpush2.bf16.msra.mxu0 0
        %942 = vmatprep.subr.bf16.mxu0 0
        %943 = vmatpush2.bf16.msra.mxu0 0
        %944 = vmatprep.mubr.bf16.mxu0 0
        %945 = vmatmul.mubr.bf16.gmra.mxu0 %v910
        %v946 = vpop.f32.mrf.mxu0
        %v947 = vadd.f32 %v894, %v946
        %v948 = vpop.f32.mrf.mxu0
        %v949 = vpop.f32.mrf.mxu0
        %v950 = vpop.f32.mrf.mxu0
        %951 = vdwg.mxu0
        %v952 = vmul.f32 %v947, 0.5
        %v953 = vpack.c.bf16 %v952, %v952
        %v954 = vld [vmem:[#allocation2] sm:$0xf]
        %v955 = vld [vmem:[#allocation3] sm:$0xf]
        %v956 = vld [vmem:[#allocation4] sm:$0xff]
        %v957 = vld [vmem:[#allocation10] sm:$0xf]
        %v958 = vld [vmem:[#allocation10 + $0x4] sm:$0xf]
        %v959 = vld [vmem:[#allocation10 + $0x8] sm:$0xf]
        %v960 = vld [vmem:[#allocation10 + $0xc] sm:$0xf]
        %vm961 = vcmask 31744
        %v963 = vsel %vm961, %v953, 0
        %v966 = vsel %vm961, %v954, 0
        %968 = vmatprep.subr.bf16.mxu0 0
        %969 = vmatpush1.bf16.xpose.msra.mxu0 0
        %970 = vmatprep.subr.bf16.mxu0 0
        %971 = vmatpush1.bf16.xpose.msra.mxu0 0
        %972 = vmatprep.subr.bf16.mxu0 0
        %973 = vmatpush1.bf16.xpose.msra.mxu0 0
        %974 = vmatprep.subr.bf16.mxu0 0
        %975 = vmatpush1.bf16.xpose.msra.mxu0 0
        %976 = vmatprep.subr.bf16.mxu0 0
        %977 = vmatpush1.bf16.xpose.msra.mxu0 0
        %978 = vmatprep.subr.bf16.mxu0 0
        %979 = vmatpush1.bf16.xpose.msra.mxu0 0
        %980 = vmatprep.subr.bf16.mxu0 0
        %981 = vmatpush1.bf16.xpose.msra.mxu0 0
        %982 = vmatprep.subr.bf16.mxu0 0
        %983 = vmatpush1.bf16.xpose.msra.mxu0 %v966
        %984 = vmatprep.subr.bf16.mxu0 0
        %985 = vmatpush2.bf16.xpose.msra.mxu0 0
        %986 = vmatprep.subr.bf16.mxu0 0
        %987 = vmatpush2.bf16.xpose.msra.mxu0 0
        %988 = vmatprep.subr.bf16.mxu0 0
        %989 = vmatpush2.bf16.xpose.msra.mxu0 0
        %990 = vmatprep.subr.bf16.mxu0 0
        %991 = vmatpush2.bf16.xpose.msra.mxu0 0
        %992 = vmatprep.subr.bf16.mxu0 0
        %993 = vmatpush2.bf16.xpose.msra.mxu0 0
        %994 = vmatprep.subr.bf16.mxu0 0
        %995 = vmatpush2.bf16.xpose.msra.mxu0 0
        %996 = vmatprep.subr.bf16.mxu0 0
        %997 = vmatpush2.bf16.xpose.msra.mxu0 0
        %998 = vmatprep.subr.bf16.mxu0 0
        %999 = vmatpush2.bf16.xpose.msra.mxu0 0
        %1000 = vmatprep.mubr.bf16.mxu0 0
        %1001 = vmatmul.mubr.bf16.gmra.mxu0 %v963
        %v1002 = vpop.f32.mrf.mxu0
        %v1003 = vadd.f32 %v956, %v1002
        %v1004 = vpop.f32.mrf.mxu0
        %v1005 = vpop.f32.mrf.mxu0
        %v1006 = vpop.f32.mrf.mxu0
        %1007 = vdwg.mxu0
        %vm1008 = vcmask 64512
        %v1009 = vsel %vm1008, %v1003, -inf
        %1010 = vmax.xlane.f32.xlu0 %v1009
        %v1011 = vpop.xlane.xlu0 %1010
        %v1012 = vsub.f32 %v1003, %v1011
        %v1013 = vmul.f32 %v1012, 1.442695
        %v1014 = vpow.pop %v1013
        %v1015 = vsel %vm1008, %v1014, 0.0
        %1016 = vadd.xlane.f32.xlu0 %v1015
        %v1017 = vpop.xlane.xlu0 %1016
        %v1018 = vrcp.pop %v1017
        %v1019 = vmul.f32 %v1014, %v1018
        %v1020 = vpack.c.bf16 %v1019, %v1019
        %v1022 = vsel %vm1008, %v1020, 0
        %vm1024 = vcmask 1043456
        %v1026 = vsel %vm1024, %v955, 0
        %1028 = vmatprep.subr.bf16.mxu0 0
        %1029 = vmatpush1.bf16.msra.mxu0 0
        %1030 = vmatprep.subr.bf16.mxu0 0
        %1031 = vmatpush1.bf16.msra.mxu0 0
        %1032 = vmatprep.subr.bf16.mxu0 0
        %1033 = vmatpush1.bf16.msra.mxu0 0
        %1034 = vmatprep.subr.bf16.mxu0 0
        %1035 = vmatpush1.bf16.msra.mxu0 0
        %1036 = vmatprep.subr.bf16.mxu0 0
        %1037 = vmatpush1.bf16.msra.mxu0 0
        %1038 = vmatprep.subr.bf16.mxu0 0
        %1039 = vmatpush1.bf16.msra.mxu0 0
        %1040 = vmatprep.subr.bf16.mxu0 0
        %1041 = vmatpush1.bf16.msra.mxu0 0
        %1042 = vmatprep.subr.bf16.mxu0 0
        %1043 = vmatpush1.bf16.msra.mxu0 %v1026
        %1044 = vmatprep.subr.bf16.mxu0 0
        %1045 = vmatpush2.bf16.msra.mxu0 0
        %1046 = vmatprep.subr.bf16.mxu0 0
        %1047 = vmatpush2.bf16.msra.mxu0 0
        %1048 = vmatprep.subr.bf16.mxu0 0
        %1049 = vmatpush2.bf16.msra.mxu0 0
        %1050 = vmatprep.subr.bf16.mxu0 0
        %1051 = vmatpush2.bf16.msra.mxu0 0
        %1052 = vmatprep.subr.bf16.mxu0 0
        %1053 = vmatpush2.bf16.msra.mxu0 0
        %1054 = vmatprep.subr.bf16.mxu0 0
        %1055 = vmatpush2.bf16.msra.mxu0 0
        %1056 = vmatprep.subr.bf16.mxu0 0
        %1057 = vmatpush2.bf16.msra.mxu0 0
        %1058 = vmatprep.subr.bf16.mxu0 0
        %1059 = vmatpush2.bf16.msra.mxu0 0
        %1060 = vmatprep.mubr.bf16.mxu0 0
        %1061 = vmatmul.mubr.bf16.gmra.mxu0 %v1022
        %v1062 = vpop.f32.mrf.mxu0
        %v1063 = vadd.f32 0.0, %v1062
        %v1064 = vpop.f32.mrf.mxu0
        %v1065 = vpop.f32.mrf.mxu0
        %v1066 = vpop.f32.mrf.mxu0
        %1067 = vdwg.mxu0
        %v1068 = vpack.c.bf16 %v1063, %v1063
        %1070 = vrot.lane.b32.xlu0 %v953, 124
        %v1071 = vpop.permute.xlu0 %1070
        %v1073 = vunpack.c.l.b16 %v954
        %v1074 = vpack.c.b16 %v1073, %v1073
        %1075 = vrot.lane.b32.xlu0 %v1074, 124
        %v1076 = vpop.permute.xlu0 %1075
        %v1078 = vsel %vm961, %v1071, 0
        %v1081 = vsel %vm961, %v1076, 0
        %1083 = vmatprep.subr.bf16.mxu0 0
        %1084 = vmatpush1.bf16.xpose.msra.mxu0 0
        %1085 = vmatprep.subr.bf16.mxu0 0
        %1086 = vmatpush1.bf16.xpose.msra.mxu0 0
        %1087 = vmatprep.subr.bf16.mxu0 0
        %1088 = vmatpush1.bf16.xpose.msra.mxu0 0
        %1089 = vmatprep.subr.bf16.mxu0 0
        %1090 = vmatpush1.bf16.xpose.msra.mxu0 0
        %1091 = vmatprep.subr.bf16.mxu0 0
        %1092 = vmatpush1.bf16.xpose.msra.mxu0 0
        %1093 = vmatprep.subr.bf16.mxu0 0
        %1094 = vmatpush1.bf16.xpose.msra.mxu0 0
        %1095 = vmatprep.subr.bf16.mxu0 0
        %1096 = vmatpush1.bf16.xpose.msra.mxu0 0
        %1097 = vmatprep.subr.bf16.mxu0 0
        %1098 = vmatpush1.bf16.xpose.msra.mxu0 %v1081
        %1099 = vmatprep.subr.bf16.mxu0 0
        %1100 = vmatpush2.bf16.xpose.msra.mxu0 0
        %1101 = vmatprep.subr.bf16.mxu0 0
        %1102 = vmatpush2.bf16.xpose.msra.mxu0 0
        %1103 = vmatprep.subr.bf16.mxu0 0
        %1104 = vmatpush2.bf16.xpose.msra.mxu0 0
        %1105 = vmatprep.subr.bf16.mxu0 0
        %1106 = vmatpush2.bf16.xpose.msra.mxu0 0
        %1107 = vmatprep.subr.bf16.mxu0 0
        %1108 = vmatpush2.bf16.xpose.msra.mxu0 0
        %1109 = vmatprep.subr.bf16.mxu0 0
        %1110 = vmatpush2.bf16.xpose.msra.mxu0 0
        %1111 = vmatprep.subr.bf16.mxu0 0
        %1112 = vmatpush2.bf16.xpose.msra.mxu0 0
        %1113 = vmatprep.subr.bf16.mxu0 0
        %1114 = vmatpush2.bf16.xpose.msra.mxu0 0
        %1115 = vmatprep.mubr.bf16.mxu0 0
        %1116 = vmatmul.mubr.bf16.gmra.mxu0 %v1078
        %v1117 = vpop.f32.mrf.mxu0
        %v1118 = vadd.f32 %v956, %v1117
        %v1119 = vpop.f32.mrf.mxu0
        %v1120 = vpop.f32.mrf.mxu0
        %v1121 = vpop.f32.mrf.mxu0
        %1122 = vdwg.mxu0
        %v1123 = vsel %vm1008, %v1118, -inf
        %1124 = vmax.xlane.f32.xlu0 %v1123
        %v1125 = vpop.xlane.xlu0 %1124
        %v1126 = vsub.f32 %v1118, %v1125
        %v1127 = vmul.f32 %v1126, 1.442695
        %v1128 = vpow.pop %v1127
        %v1129 = vsel %vm1008, %v1128, 0.0
        %1130 = vadd.xlane.f32.xlu0 %v1129
        %v1131 = vpop.xlane.xlu0 %1130
        %v1132 = vrcp.pop %v1131
        %v1133 = vmul.f32 %v1128, %v1132
        %v1134 = vpack.c.bf16 %v1133, %v1133
        %v1136 = vunpack.c.l.b16 %v955
        %v1137 = vpack.c.b16 %v1136, %v1136
        %1138 = vrot.lane.b32.xlu0 %v1137, 124
        %v1139 = vpop.permute.xlu0 %1138
        %v1141 = vsel %vm1008, %v1134, 0
        %v1144 = vsel %vm1024, %v1139, 0
        %1146 = vmatprep.subr.bf16.mxu0 0
        %1147 = vmatpush1.bf16.msra.mxu0 0
        %1148 = vmatprep.subr.bf16.mxu0 0
        %1149 = vmatpush1.bf16.msra.mxu0 0
        %1150 = vmatprep.subr.bf16.mxu0 0
        %1151 = vmatpush1.bf16.msra.mxu0 0
        %1152 = vmatprep.subr.bf16.mxu0 0
        %1153 = vmatpush1.bf16.msra.mxu0 0
        %1154 = vmatprep.subr.bf16.mxu0 0
        %1155 = vmatpush1.bf16.msra.mxu0 0
        %1156 = vmatprep.subr.bf16.mxu0 0
        %1157 = vmatpush1.bf16.msra.mxu0 0
        %1158 = vmatprep.subr.bf16.mxu0 0
        %1159 = vmatpush1.bf16.msra.mxu0 0
        %1160 = vmatprep.subr.bf16.mxu0 0
        %1161 = vmatpush1.bf16.msra.mxu0 %v1144
        %1162 = vmatprep.subr.bf16.mxu0 0
        %1163 = vmatpush2.bf16.msra.mxu0 0
        %1164 = vmatprep.subr.bf16.mxu0 0
        %1165 = vmatpush2.bf16.msra.mxu0 0
        %1166 = vmatprep.subr.bf16.mxu0 0
        %1167 = vmatpush2.bf16.msra.mxu0 0
        %1168 = vmatprep.subr.bf16.mxu0 0
        %1169 = vmatpush2.bf16.msra.mxu0 0
        %1170 = vmatprep.subr.bf16.mxu0 0
        %1171 = vmatpush2.bf16.msra.mxu0 0
        %1172 = vmatprep.subr.bf16.mxu0 0
        %1173 = vmatpush2.bf16.msra.mxu0 0
        %1174 = vmatprep.subr.bf16.mxu0 0
        %1175 = vmatpush2.bf16.msra.mxu0 0
        %1176 = vmatprep.subr.bf16.mxu0 0
        %1177 = vmatpush2.bf16.msra.mxu0 0
        %1178 = vmatprep.mubr.bf16.mxu0 0
        %1179 = vmatmul.mubr.bf16.gmra.mxu0 %v1141
        %v1180 = vpop.f32.mrf.mxu0
        %v1181 = vadd.f32 0.0, %v1180
        %v1182 = vpop.f32.mrf.mxu0
        %v1183 = vpop.f32.mrf.mxu0
        %v1184 = vpop.f32.mrf.mxu0
        %1185 = vdwg.mxu0
        %v1186 = vpack.c.bf16 %v1181, %v1181
        %v1188 = vunpack.c.l.b16 %v957
        %v1189 = vpack.c.b16 %v1188, %v1188
        %v1190 = vrot.slane %v1189, 2
        %v1192 = vsel %vm961, %v1186, 0
        %vm1194 = vcmask 1041408
        %v1196 = vsel %vm1194, %v1190, 0
        %1198 = vmatprep.subr.bf16.mxu0 0
        %1199 = vmatpush1.bf16.msra.mxu0 0
        %1200 = vmatprep.subr.bf16.mxu0 0
        %1201 = vmatpush1.bf16.msra.mxu0 0
        %1202 = vmatprep.subr.bf16.mxu0 0
        %1203 = vmatpush1.bf16.msra.mxu0 0
        %1204 = vmatprep.subr.bf16.mxu0 0
        %1205 = vmatpush1.bf16.msra.mxu0 0
        %1206 = vmatprep.subr.bf16.mxu0 0
        %1207 = vmatpush1.bf16.msra.mxu0 0
        %1208 = vmatprep.subr.bf16.mxu0 0
        %1209 = vmatpush1.bf16.msra.mxu0 0
        %1210 = vmatprep.subr.bf16.mxu0 0
        %1211 = vmatpush1.bf16.msra.mxu0 0
        %1212 = vmatprep.subr.bf16.mxu0 0
        %1213 = vmatpush1.bf16.msra.mxu0 %v1196
        %1214 = vmatprep.subr.bf16.mxu0 0
        %1215 = vmatpush2.bf16.msra.mxu0 0
        %1216 = vmatprep.subr.bf16.mxu0 0
        %1217 = vmatpush2.bf16.msra.mxu0 0
        %1218 = vmatprep.subr.bf16.mxu0 0
        %1219 = vmatpush2.bf16.msra.mxu0 0
        %1220 = vmatprep.subr.bf16.mxu0 0
        %1221 = vmatpush2.bf16.msra.mxu0 0
        %1222 = vmatprep.subr.bf16.mxu0 0
        %1223 = vmatpush2.bf16.msra.mxu0 0
        %1224 = vmatprep.subr.bf16.mxu0 0
        %1225 = vmatpush2.bf16.msra.mxu0 0
        %1226 = vmatprep.subr.bf16.mxu0 0
        %1227 = vmatpush2.bf16.msra.mxu0 0
        %1228 = vmatprep.subr.bf16.mxu0 0
        %1229 = vmatpush2.bf16.msra.mxu0 0
        %1230 = vmatprep.mubr.bf16.mxu0 0
        %1231 = vmatmul.mubr.bf16.gmra.mxu0 %v1192
        %v1232 = vpop.f32.mrf.mxu0
        %v1233 = vadd.f32 0.0, %v1232
        %v1234 = vpop.f32.mrf.mxu0
        %v1235 = vpop.f32.mrf.mxu0
        %v1236 = vpop.f32.mrf.mxu0
        %1237 = vdwg.mxu0
        %v1239 = vsel %vm961, %v1068, 0
        %v1242 = vsel %vm1194, %v957, 0
        %1244 = vmatprep.subr.bf16.mxu0 0
        %1245 = vmatpush1.bf16.msra.mxu0 0
        %1246 = vmatprep.subr.bf16.mxu0 0
        %1247 = vmatpush1.bf16.msra.mxu0 0
        %1248 = vmatprep.subr.bf16.mxu0 0
        %1249 = vmatpush1.bf16.msra.mxu0 0
        %1250 = vmatprep.subr.bf16.mxu0 0
        %1251 = vmatpush1.bf16.msra.mxu0 0
        %1252 = vmatprep.subr.bf16.mxu0 0
        %1253 = vmatpush1.bf16.msra.mxu0 0
        %1254 = vmatprep.subr.bf16.mxu0 0
        %1255 = vmatpush1.bf16.msra.mxu0 0
        %1256 = vmatprep.subr.bf16.mxu0 0
        %1257 = vmatpush1.bf16.msra.mxu0 0
        %1258 = vmatprep.subr.bf16.mxu0 0
        %1259 = vmatpush1.bf16.msra.mxu0 %v1242
        %1260 = vmatprep.subr.bf16.mxu0 0
        %1261 = vmatpush2.bf16.msra.mxu0 0
        %1262 = vmatprep.subr.bf16.mxu0 0
        %1263 = vmatpush2.bf16.msra.mxu0 0
        %1264 = vmatprep.subr.bf16.mxu0 0
        %1265 = vmatpush2.bf16.msra.mxu0 0
        %1266 = vmatprep.subr.bf16.mxu0 0
        %1267 = vmatpush2.bf16.msra.mxu0 0
        %1268 = vmatprep.subr.bf16.mxu0 0
        %1269 = vmatpush2.bf16.msra.mxu0 0
        %1270 = vmatprep.subr.bf16.mxu0 0
        %1271 = vmatpush2.bf16.msra.mxu0 0
        %1272 = vmatprep.subr.bf16.mxu0 0
        %1273 = vmatpush2.bf16.msra.mxu0 0
        %1274 = vmatprep.subr.bf16.mxu0 0
        %1275 = vmatpush2.bf16.msra.mxu0 0
        %1276 = vmatprep.mubr.bf16.mxu0 0
        %1277 = vmatmul.mubr.bf16.gmra.mxu0 %v1239
        %v1278 = vpop.f32.mrf.mxu0
        %v1279 = vadd.f32 %v1233, %v1278
        %v1280 = vpop.f32.mrf.mxu0
        %v1281 = vpop.f32.mrf.mxu0
        %v1282 = vpop.f32.mrf.mxu0
        %1283 = vdwg.mxu0
        %1284 = vrot.lane.b32.xlu0 %v953, 120
        %v1285 = vpop.permute.xlu0 %1284
        %1286 = vrot.lane.b32.xlu0 %v1074, 120
        %v1287 = vpop.permute.xlu0 %1286
        %v1289 = vsel %vm961, %v1285, 0
        %v1292 = vsel %vm961, %v1287, 0
        %1294 = vmatprep.subr.bf16.mxu0 0
        %1295 = vmatpush1.bf16.xpose.msra.mxu0 0
        %1296 = vmatprep.subr.bf16.mxu0 0
        %1297 = vmatpush1.bf16.xpose.msra.mxu0 0
        %1298 = vmatprep.subr.bf16.mxu0 0
        %1299 = vmatpush1.bf16.xpose.msra.mxu0 0
        %1300 = vmatprep.subr.bf16.mxu0 0
        %1301 = vmatpush1.bf16.xpose.msra.mxu0 0
        %1302 = vmatprep.subr.bf16.mxu0 0
        %1303 = vmatpush1.bf16.xpose.msra.mxu0 0
        %1304 = vmatprep.subr.bf16.mxu0 0
        %1305 = vmatpush1.bf16.xpose.msra.mxu0 0
        %1306 = vmatprep.subr.bf16.mxu0 0
        %1307 = vmatpush1.bf16.xpose.msra.mxu0 0
        %1308 = vmatprep.subr.bf16.mxu0 0
        %1309 = vmatpush1.bf16.xpose.msra.mxu0 %v1292
        %1310 = vmatprep.subr.bf16.mxu0 0
        %1311 = vmatpush2.bf16.xpose.msra.mxu0 0
        %1312 = vmatprep.subr.bf16.mxu0 0
        %1313 = vmatpush2.bf16.xpose.msra.mxu0 0
        %1314 = vmatprep.subr.bf16.mxu0 0
        %1315 = vmatpush2.bf16.xpose.msra.mxu0 0
        %1316 = vmatprep.subr.bf16.mxu0 0
        %1317 = vmatpush2.bf16.xpose.msra.mxu0 0
        %1318 = vmatprep.subr.bf16.mxu0 0
        %1319 = vmatpush2.bf16.xpose.msra.mxu0 0
        %1320 = vmatprep.subr.bf16.mxu0 0
        %1321 = vmatpush2.bf16.xpose.msra.mxu0 0
        %1322 = vmatprep.subr.bf16.mxu0 0
        %1323 = vmatpush2.bf16.xpose.msra.mxu0 0
        %1324 = vmatprep.subr.bf16.mxu0 0
        %1325 = vmatpush2.bf16.xpose.msra.mxu0 0
        %1326 = vmatprep.mubr.bf16.mxu0 0
        %1327 = vmatmul.mubr.bf16.gmra.mxu0 %v1289
        %v1328 = vpop.f32.mrf.mxu0
        %v1329 = vadd.f32 %v956, %v1328
        %v1330 = vpop.f32.mrf.mxu0
        %v1331 = vpop.f32.mrf.mxu0
        %v1332 = vpop.f32.mrf.mxu0
        %1333 = vdwg.mxu0
        %v1334 = vsel %vm1008, %v1329, -inf
        %1335 = vmax.xlane.f32.xlu0 %v1334
        %v1336 = vpop.xlane.xlu0 %1335
        %v1337 = vsub.f32 %v1329, %v1336
        %v1338 = vmul.f32 %v1337, 1.442695
        %v1339 = vpow.pop %v1338
        %v1340 = vsel %vm1008, %v1339, 0.0
        %1341 = vadd.xlane.f32.xlu0 %v1340
        %v1342 = vpop.xlane.xlu0 %1341
        %v1343 = vrcp.pop %v1342
        %v1344 = vmul.f32 %v1339, %v1343
        %v1345 = vpack.c.bf16 %v1344, %v1344
        %1346 = vrot.lane.b32.xlu0 %v1137, 120
        %v1347 = vpop.permute.xlu0 %1346
        %v1349 = vsel %vm1008, %v1345, 0
        %v1352 = vsel %vm1024, %v1347, 0
        %1354 = vmatprep.subr.bf16.mxu0 0
        %1355 = vmatpush1.bf16.msra.mxu0 0
        %1356 = vmatprep.subr.bf16.mxu0 0
        %1357 = vmatpush1.bf16.msra.mxu0 0
        %1358 = vmatprep.subr.bf16.mxu0 0
        %1359 = vmatpush1.bf16.msra.mxu0 0
        %1360 = vmatprep.subr.bf16.mxu0 0
        %1361 = vmatpush1.bf16.msra.mxu0 0
        %1362 = vmatprep.subr.bf16.mxu0 0
        %1363 = vmatpush1.bf16.msra.mxu0 0
        %1364 = vmatprep.subr.bf16.mxu0 0
        %1365 = vmatpush1.bf16.msra.mxu0 0
        %1366 = vmatprep.subr.bf16.mxu0 0
        %1367 = vmatpush1.bf16.msra.mxu0 0
        %1368 = vmatprep.subr.bf16.mxu0 0
        %1369 = vmatpush1.bf16.msra.mxu0 %v1352
        %1370 = vmatprep.subr.bf16.mxu0 0
        %1371 = vmatpush2.bf16.msra.mxu0 0
        %1372 = vmatprep.subr.bf16.mxu0 0
        %1373 = vmatpush2.bf16.msra.mxu0 0
        %1374 = vmatprep.subr.bf16.mxu0 0
        %1375 = vmatpush2.bf16.msra.mxu0 0
        %1376 = vmatprep.subr.bf16.mxu0 0
        %1377 = vmatpush2.bf16.msra.mxu0 0
        %1378 = vmatprep.subr.bf16.mxu0 0
        %1379 = vmatpush2.bf16.msra.mxu0 0
        %1380 = vmatprep.subr.bf16.mxu0 0
        %1381 = vmatpush2.bf16.msra.mxu0 0
        %1382 = vmatprep.subr.bf16.mxu0 0
        %1383 = vmatpush2.bf16.msra.mxu0 0
        %1384 = vmatprep.subr.bf16.mxu0 0
        %1385 = vmatpush2.bf16.msra.mxu0 0
        %1386 = vmatprep.mubr.bf16.mxu0 0
        %1387 = vmatmul.mubr.bf16.gmra.mxu0 %v1349
        %v1388 = vpop.f32.mrf.mxu0
        %v1389 = vadd.f32 0.0, %v1388
        %v1390 = vpop.f32.mrf.mxu0
        %v1391 = vpop.f32.mrf.mxu0
        %v1392 = vpop.f32.mrf.mxu0
        %1393 = vdwg.mxu0
        %v1394 = vpack.c.bf16 %v1389, %v1389
        %v1396 = vsel %vm961, %v1394, 0
        %v1399 = vsel %vm1194, %v958, 0
        %1401 = vmatprep.subr.bf16.mxu0 0
        %1402 = vmatpush1.bf16.msra.mxu0 0
        %1403 = vmatprep.subr.bf16.mxu0 0
        %1404 = vmatpush1.bf16.msra.mxu0 0
        %1405 = vmatprep.subr.bf16.mxu0 0
        %1406 = vmatpush1.bf16.msra.mxu0 0
        %1407 = vmatprep.subr.bf16.mxu0 0
        %1408 = vmatpush1.bf16.msra.mxu0 0
        %1409 = vmatprep.subr.bf16.mxu0 0
        %1410 = vmatpush1.bf16.msra.mxu0 0
        %1411 = vmatprep.subr.bf16.mxu0 0
        %1412 = vmatpush1.bf16.msra.mxu0 0
        %1413 = vmatprep.subr.bf16.mxu0 0
        %1414 = vmatpush1.bf16.msra.mxu0 0
        %1415 = vmatprep.subr.bf16.mxu0 0
        %1416 = vmatpush1.bf16.msra.mxu0 %v1399
        %1417 = vmatprep.subr.bf16.mxu0 0
        %1418 = vmatpush2.bf16.msra.mxu0 0
        %1419 = vmatprep.subr.bf16.mxu0 0
        %1420 = vmatpush2.bf16.msra.mxu0 0
        %1421 = vmatprep.subr.bf16.mxu0 0
        %1422 = vmatpush2.bf16.msra.mxu0 0
        %1423 = vmatprep.subr.bf16.mxu0 0
        %1424 = vmatpush2.bf16.msra.mxu0 0
        %1425 = vmatprep.subr.bf16.mxu0 0
        %1426 = vmatpush2.bf16.msra.mxu0 0
        %1427 = vmatprep.subr.bf16.mxu0 0
        %1428 = vmatpush2.bf16.msra.mxu0 0
        %1429 = vmatprep.subr.bf16.mxu0 0
        %1430 = vmatpush2.bf16.msra.mxu0 0
        %1431 = vmatprep.subr.bf16.mxu0 0
        %1432 = vmatpush2.bf16.msra.mxu0 0
        %1433 = vmatprep.mubr.bf16.mxu0 0
        %1434 = vmatmul.mubr.bf16.gmra.mxu0 %v1396
        %v1435 = vpop.f32.mrf.mxu0
        %v1436 = vadd.f32 0.0, %v1435
        %v1437 = vpop.f32.mrf.mxu0
        %v1438 = vpop.f32.mrf.mxu0
        %v1439 = vpop.f32.mrf.mxu0
        %1440 = vdwg.mxu0
        %v1441 = vadd.f32 %v1279, %v1436
        %1442 = vrot.lane.b32.xlu0 %v953, 116
        %v1443 = vpop.permute.xlu0 %1442
        %1444 = vrot.lane.b32.xlu0 %v1074, 116
        %v1445 = vpop.permute.xlu0 %1444
        %v1447 = vsel %vm961, %v1443, 0
        %v1450 = vsel %vm961, %v1445, 0
        %1452 = vmatprep.subr.bf16.mxu0 0
        %1453 = vmatpush1.bf16.xpose.msra.mxu0 0
        %1454 = vmatprep.subr.bf16.mxu0 0
        %1455 = vmatpush1.bf16.xpose.msra.mxu0 0
        %1456 = vmatprep.subr.bf16.mxu0 0
        %1457 = vmatpush1.bf16.xpose.msra.mxu0 0
        %1458 = vmatprep.subr.bf16.mxu0 0
        %1459 = vmatpush1.bf16.xpose.msra.mxu0 0
        %1460 = vmatprep.subr.bf16.mxu0 0
        %1461 = vmatpush1.bf16.xpose.msra.mxu0 0
        %1462 = vmatprep.subr.bf16.mxu0 0
        %1463 = vmatpush1.bf16.xpose.msra.mxu0 0
        %1464 = vmatprep.subr.bf16.mxu0 0
        %1465 = vmatpush1.bf16.xpose.msra.mxu0 0
        %1466 = vmatprep.subr.bf16.mxu0 0
        %1467 = vmatpush1.bf16.xpose.msra.mxu0 %v1450
        %1468 = vmatprep.subr.bf16.mxu0 0
        %1469 = vmatpush2.bf16.xpose.msra.mxu0 0
        %1470 = vmatprep.subr.bf16.mxu0 0
        %1471 = vmatpush2.bf16.xpose.msra.mxu0 0
        %1472 = vmatprep.subr.bf16.mxu0 0
        %1473 = vmatpush2.bf16.xpose.msra.mxu0 0
        %1474 = vmatprep.subr.bf16.mxu0 0
        %1475 = vmatpush2.bf16.xpose.msra.mxu0 0
        %1476 = vmatprep.subr.bf16.mxu0 0
        %1477 = vmatpush2.bf16.xpose.msra.mxu0 0
        %1478 = vmatprep.subr.bf16.mxu0 0
        %1479 = vmatpush2.bf16.xpose.msra.mxu0 0
        %1480 = vmatprep.subr.bf16.mxu0 0
        %1481 = vmatpush2.bf16.xpose.msra.mxu0 0
        %1482 = vmatprep.subr.bf16.mxu0 0
        %1483 = vmatpush2.bf16.xpose.msra.mxu0 0
        %1484 = vmatprep.mubr.bf16.mxu0 0
        %1485 = vmatmul.mubr.bf16.gmra.mxu0 %v1447
        %v1486 = vpop.f32.mrf.mxu0
        %v1487 = vadd.f32 %v956, %v1486
        %v1488 = vpop.f32.mrf.mxu0
        %v1489 = vpop.f32.mrf.mxu0
        %v1490 = vpop.f32.mrf.mxu0
        %1491 = vdwg.mxu0
        %v1492 = vsel %vm1008, %v1487, -inf
        %1493 = vmax.xlane.f32.xlu0 %v1492
        %v1494 = vpop.xlane.xlu0 %1493
        %v1495 = vsub.f32 %v1487, %v1494
        %v1496 = vmul.f32 %v1495, 1.442695
        %v1497 = vpow.pop %v1496
        %v1498 = vsel %vm1008, %v1497, 0.0
        %1499 = vadd.xlane.f32.xlu0 %v1498
        %v1500 = vpop.xlane.xlu0 %1499
        %v1501 = vrcp.pop %v1500
        %v1502 = vmul.f32 %v1497, %v1501
        %v1503 = vpack.c.bf16 %v1502, %v1502
        %1504 = vrot.lane.b32.xlu0 %v1137, 116
        %v1505 = vpop.permute.xlu0 %1504
        %v1507 = vsel %vm1008, %v1503, 0
        %v1510 = vsel %vm1024, %v1505, 0
        %1512 = vmatprep.subr.bf16.mxu0 0
        %1513 = vmatpush1.bf16.msra.mxu0 0
        %1514 = vmatprep.subr.bf16.mxu0 0
        %1515 = vmatpush1.bf16.msra.mxu0 0
        %1516 = vmatprep.subr.bf16.mxu0 0
        %1517 = vmatpush1.bf16.msra.mxu0 0
        %1518 = vmatprep.subr.bf16.mxu0 0
        %1519 = vmatpush1.bf16.msra.mxu0 0
        %1520 = vmatprep.subr.bf16.mxu0 0
        %1521 = vmatpush1.bf16.msra.mxu0 0
        %1522 = vmatprep.subr.bf16.mxu0 0
        %1523 = vmatpush1.bf16.msra.mxu0 0
        %1524 = vmatprep.subr.bf16.mxu0 0
        %1525 = vmatpush1.bf16.msra.mxu0 0
        %1526 = vmatprep.subr.bf16.mxu0 0
        %1527 = vmatpush1.bf16.msra.mxu0 %v1510
        %1528 = vmatprep.subr.bf16.mxu0 0
        %1529 = vmatpush2.bf16.msra.mxu0 0
        %1530 = vmatprep.subr.bf16.mxu0 0
        %1531 = vmatpush2.bf16.msra.mxu0 0
        %1532 = vmatprep.subr.bf16.mxu0 0
        %1533 = vmatpush2.bf16.msra.mxu0 0
        %1534 = vmatprep.subr.bf16.mxu0 0
        %1535 = vmatpush2.bf16.msra.mxu0 0
        %1536 = vmatprep.subr.bf16.mxu0 0
        %1537 = vmatpush2.bf16.msra.mxu0 0
        %1538 = vmatprep.subr.bf16.mxu0 0
        %1539 = vmatpush2.bf16.msra.mxu0 0
        %1540 = vmatprep.subr.bf16.mxu0 0
        %1541 = vmatpush2.bf16.msra.mxu0 0
        %1542 = vmatprep.subr.bf16.mxu0 0
        %1543 = vmatpush2.bf16.msra.mxu0 0
        %1544 = vmatprep.mubr.bf16.mxu0 0
        %1545 = vmatmul.mubr.bf16.gmra.mxu0 %v1507
        %v1546 = vpop.f32.mrf.mxu0
        %v1547 = vadd.f32 0.0, %v1546
        %v1548 = vpop.f32.mrf.mxu0
        %v1549 = vpop.f32.mrf.mxu0
        %v1550 = vpop.f32.mrf.mxu0
        %1551 = vdwg.mxu0
        %v1552 = vpack.c.bf16 %v1547, %v1547
        %v1554 = vunpack.c.l.b16 %v958
        %v1555 = vpack.c.b16 %v1554, %v1554
        %v1556 = vrot.slane %v1555, 2
        %v1558 = vsel %vm961, %v1552, 0
        %v1561 = vsel %vm1194, %v1556, 0
        %1563 = vmatprep.subr.bf16.mxu0 0
        %1564 = vmatpush1.bf16.msra.mxu0 0
        %1565 = vmatprep.subr.bf16.mxu0 0
        %1566 = vmatpush1.bf16.msra.mxu0 0
        %1567 = vmatprep.subr.bf16.mxu0 0
        %1568 = vmatpush1.bf16.msra.mxu0 0
        %1569 = vmatprep.subr.bf16.mxu0 0
        %1570 = vmatpush1.bf16.msra.mxu0 0
        %1571 = vmatprep.subr.bf16.mxu0 0
        %1572 = vmatpush1.bf16.msra.mxu0 0
        %1573 = vmatprep.subr.bf16.mxu0 0
        %1574 = vmatpush1.bf16.msra.mxu0 0
        %1575 = vmatprep.subr.bf16.mxu0 0
        %1576 = vmatpush1.bf16.msra.mxu0 0
        %1577 = vmatprep.subr.bf16.mxu0 0
        %1578 = vmatpush1.bf16.msra.mxu0 %v1561
        %1579 = vmatprep.subr.bf16.mxu0 0
        %1580 = vmatpush2.bf16.msra.mxu0 0
        %1581 = vmatprep.subr.bf16.mxu0 0
        %1582 = vmatpush2.bf16.msra.mxu0 0
        %1583 = vmatprep.subr.bf16.mxu0 0
        %1584 = vmatpush2.bf16.msra.mxu0 0
        %1585 = vmatprep.subr.bf16.mxu0 0
        %1586 = vmatpush2.bf16.msra.mxu0 0
        %1587 = vmatprep.subr.bf16.mxu0 0
        %1588 = vmatpush2.bf16.msra.mxu0 0
        %1589 = vmatprep.subr.bf16.mxu0 0
        %1590 = vmatpush2.bf16.msra.mxu0 0
        %1591 = vmatprep.subr.bf16.mxu0 0
        %1592 = vmatpush2.bf16.msra.mxu0 0
        %1593 = vmatprep.subr.bf16.mxu0 0
        %1594 = vmatpush2.bf16.msra.mxu0 0
        %1595 = vmatprep.mubr.bf16.mxu0 0
        %1596 = vmatmul.mubr.bf16.gmra.mxu0 %v1558
        %v1597 = vpop.f32.mrf.mxu0
        %v1598 = vadd.f32 0.0, %v1597
        %v1599 = vpop.f32.mrf.mxu0
        %v1600 = vpop.f32.mrf.mxu0
        %v1601 = vpop.f32.mrf.mxu0
        %1602 = vdwg.mxu0
        %v1603 = vadd.f32 %v1441, %v1598
        %1604 = vrot.lane.b32.xlu0 %v953, 112
        %v1605 = vpop.permute.xlu0 %1604
        %1606 = vrot.lane.b32.xlu0 %v1074, 112
        %v1607 = vpop.permute.xlu0 %1606
        %v1609 = vsel %vm961, %v1605, 0
        %v1612 = vsel %vm961, %v1607, 0
        %1614 = vmatprep.subr.bf16.mxu0 0
        %1615 = vmatpush1.bf16.xpose.msra.mxu0 0
        %1616 = vmatprep.subr.bf16.mxu0 0
        %1617 = vmatpush1.bf16.xpose.msra.mxu0 0
        %1618 = vmatprep.subr.bf16.mxu0 0
        %1619 = vmatpush1.bf16.xpose.msra.mxu0 0
        %1620 = vmatprep.subr.bf16.mxu0 0
        %1621 = vmatpush1.bf16.xpose.msra.mxu0 0
        %1622 = vmatprep.subr.bf16.mxu0 0
        %1623 = vmatpush1.bf16.xpose.msra.mxu0 0
        %1624 = vmatprep.subr.bf16.mxu0 0
        %1625 = vmatpush1.bf16.xpose.msra.mxu0 0
        %1626 = vmatprep.subr.bf16.mxu0 0
        %1627 = vmatpush1.bf16.xpose.msra.mxu0 0
        %1628 = vmatprep.subr.bf16.mxu0 0
        %1629 = vmatpush1.bf16.xpose.msra.mxu0 %v1612
        %1630 = vmatprep.subr.bf16.mxu0 0
        %1631 = vmatpush2.bf16.xpose.msra.mxu0 0
        %1632 = vmatprep.subr.bf16.mxu0 0
        %1633 = vmatpush2.bf16.xpose.msra.mxu0 0
        %1634 = vmatprep.subr.bf16.mxu0 0
        %1635 = vmatpush2.bf16.xpose.msra.mxu0 0
        %1636 = vmatprep.subr.bf16.mxu0 0
        %1637 = vmatpush2.bf16.xpose.msra.mxu0 0
        %1638 = vmatprep.subr.bf16.mxu0 0
        %1639 = vmatpush2.bf16.xpose.msra.mxu0 0
        %1640 = vmatprep.subr.bf16.mxu0 0
        %1641 = vmatpush2.bf16.xpose.msra.mxu0 0
        %1642 = vmatprep.subr.bf16.mxu0 0
        %1643 = vmatpush2.bf16.xpose.msra.mxu0 0
        %1644 = vmatprep.subr.bf16.mxu0 0
        %1645 = vmatpush2.bf16.xpose.msra.mxu0 0
        %1646 = vmatprep.mubr.bf16.mxu0 0
        %1647 = vmatmul.mubr.bf16.gmra.mxu0 %v1609
        %v1648 = vpop.f32.mrf.mxu0
        %v1649 = vadd.f32 %v956, %v1648
        %v1650 = vpop.f32.mrf.mxu0
        %v1651 = vpop.f32.mrf.mxu0
        %v1652 = vpop.f32.mrf.mxu0
        %1653 = vdwg.mxu0
        %v1654 = vsel %vm1008, %v1649, -inf
        %1655 = vmax.xlane.f32.xlu0 %v1654
        %v1656 = vpop.xlane.xlu0 %1655
        %v1657 = vsub.f32 %v1649, %v1656
        %v1658 = vmul.f32 %v1657, 1.442695
        %v1659 = vpow.pop %v1658
        %v1660 = vsel %vm1008, %v1659, 0.0
        %1661 = vadd.xlane.f32.xlu0 %v1660
        %v1662 = vpop.xlane.xlu0 %1661
        %v1663 = vrcp.pop %v1662
        %v1664 = vmul.f32 %v1659, %v1663
        %v1665 = vpack.c.bf16 %v1664, %v1664
        %1666 = vrot.lane.b32.xlu0 %v1137, 112
        %v1667 = vpop.permute.xlu0 %1666
        %v1669 = vsel %vm1008, %v1665, 0
        %v1672 = vsel %vm1024, %v1667, 0
        %1674 = vmatprep.subr.bf16.mxu0 0
        %1675 = vmatpush1.bf16.msra.mxu0 0
        %1676 = vmatprep.subr.bf16.mxu0 0
        %1677 = vmatpush1.bf16.msra.mxu0 0
        %1678 = vmatprep.subr.bf16.mxu0 0
        %1679 = vmatpush1.bf16.msra.mxu0 0
        %1680 = vmatprep.subr.bf16.mxu0 0
        %1681 = vmatpush1.bf16.msra.mxu0 0
        %1682 = vmatprep.subr.bf16.mxu0 0
        %1683 = vmatpush1.bf16.msra.mxu0 0
        %1684 = vmatprep.subr.bf16.mxu0 0
        %1685 = vmatpush1.bf16.msra.mxu0 0
        %1686 = vmatprep.subr.bf16.mxu0 0
        %1687 = vmatpush1.bf16.msra.mxu0 0
        %1688 = vmatprep.subr.bf16.mxu0 0
        %1689 = vmatpush1.bf16.msra.mxu0 %v1672
        %1690 = vmatprep.subr.bf16.mxu0 0
        %1691 = vmatpush2.bf16.msra.mxu0 0
        %1692 = vmatprep.subr.bf16.mxu0 0
        %1693 = vmatpush2.bf16.msra.mxu0 0
        %1694 = vmatprep.subr.bf16.mxu0 0
        %1695 = vmatpush2.bf16.msra.mxu0 0
        %1696 = vmatprep.subr.bf16.mxu0 0
        %1697 = vmatpush2.bf16.msra.mxu0 0
        %1698 = vmatprep.subr.bf16.mxu0 0
        %1699 = vmatpush2.bf16.msra.mxu0 0
        %1700 = vmatprep.subr.bf16.mxu0 0
        %1701 = vmatpush2.bf16.msra.mxu0 0
        %1702 = vmatprep.subr.bf16.mxu0 0
        %1703 = vmatpush2.bf16.msra.mxu0 0
        %1704 = vmatprep.subr.bf16.mxu0 0
        %1705 = vmatpush2.bf16.msra.mxu0 0
        %1706 = vmatprep.mubr.bf16.mxu0 0
        %1707 = vmatmul.mubr.bf16.gmra.mxu0 %v1669
        %v1708 = vpop.f32.mrf.mxu0
        %v1709 = vadd.f32 0.0, %v1708
        %v1710 = vpop.f32.mrf.mxu0
        %v1711 = vpop.f32.mrf.mxu0
        %v1712 = vpop.f32.mrf.mxu0
        %1713 = vdwg.mxu0
        %v1714 = vpack.c.bf16 %v1709, %v1709
        %v1716 = vsel %vm961, %v1714, 0
        %v1719 = vsel %vm1194, %v959, 0
        %1721 = vmatprep.subr.bf16.mxu0 0
        %1722 = vmatpush1.bf16.msra.mxu0 0
        %1723 = vmatprep.subr.bf16.mxu0 0
        %1724 = vmatpush1.bf16.msra.mxu0 0
        %1725 = vmatprep.subr.bf16.mxu0 0
        %1726 = vmatpush1.bf16.msra.mxu0 0
        %1727 = vmatprep.subr.bf16.mxu0 0
        %1728 = vmatpush1.bf16.msra.mxu0 0
        %1729 = vmatprep.subr.bf16.mxu0 0
        %1730 = vmatpush1.bf16.msra.mxu0 0
        %1731 = vmatprep.subr.bf16.mxu0 0
        %1732 = vmatpush1.bf16.msra.mxu0 0
        %1733 = vmatprep.subr.bf16.mxu0 0
        %1734 = vmatpush1.bf16.msra.mxu0 0
        %1735 = vmatprep.subr.bf16.mxu0 0
        %1736 = vmatpush1.bf16.msra.mxu0 %v1719
        %1737 = vmatprep.subr.bf16.mxu0 0
        %1738 = vmatpush2.bf16.msra.mxu0 0
        %1739 = vmatprep.subr.bf16.mxu0 0
        %1740 = vmatpush2.bf16.msra.mxu0 0
        %1741 = vmatprep.subr.bf16.mxu0 0
        %1742 = vmatpush2.bf16.msra.mxu0 0
        %1743 = vmatprep.subr.bf16.mxu0 0
        %1744 = vmatpush2.bf16.msra.mxu0 0
        %1745 = vmatprep.subr.bf16.mxu0 0
        %1746 = vmatpush2.bf16.msra.mxu0 0
        %1747 = vmatprep.subr.bf16.mxu0 0
        %1748 = vmatpush2.bf16.msra.mxu0 0
        %1749 = vmatprep.subr.bf16.mxu0 0
        %1750 = vmatpush2.bf16.msra.mxu0 0
        %1751 = vmatprep.subr.bf16.mxu0 0
        %1752 = vmatpush2.bf16.msra.mxu0 0
        %1753 = vmatprep.mubr.bf16.mxu0 0
        %1754 = vmatmul.mubr.bf16.gmra.mxu0 %v1716
        %v1755 = vpop.f32.mrf.mxu0
        %v1756 = vadd.f32 0.0, %v1755
        %v1757 = vpop.f32.mrf.mxu0
        %v1758 = vpop.f32.mrf.mxu0
        %v1759 = vpop.f32.mrf.mxu0
        %1760 = vdwg.mxu0
        %v1761 = vadd.f32 %v1603, %v1756
        %1762 = vrot.lane.b32.xlu0 %v953, 108
        %v1763 = vpop.permute.xlu0 %1762
        %1764 = vrot.lane.b32.xlu0 %v1074, 108
        %v1765 = vpop.permute.xlu0 %1764
        %v1767 = vsel %vm961, %v1763, 0
        %v1770 = vsel %vm961, %v1765, 0
        %1772 = vmatprep.subr.bf16.mxu0 0
        %1773 = vmatpush1.bf16.xpose.msra.mxu0 0
        %1774 = vmatprep.subr.bf16.mxu0 0
        %1775 = vmatpush1.bf16.xpose.msra.mxu0 0
        %1776 = vmatprep.subr.bf16.mxu0 0
        %1777 = vmatpush1.bf16.xpose.msra.mxu0 0
        %1778 = vmatprep.subr.bf16.mxu0 0
        %1779 = vmatpush1.bf16.xpose.msra.mxu0 0
        %1780 = vmatprep.subr.bf16.mxu0 0
        %1781 = vmatpush1.bf16.xpose.msra.mxu0 0
        %1782 = vmatprep.subr.bf16.mxu0 0
        %1783 = vmatpush1.bf16.xpose.msra.mxu0 0
        %1784 = vmatprep.subr.bf16.mxu0 0
        %1785 = vmatpush1.bf16.xpose.msra.mxu0 0
        %1786 = vmatprep.subr.bf16.mxu0 0
        %1787 = vmatpush1.bf16.xpose.msra.mxu0 %v1770
        %1788 = vmatprep.subr.bf16.mxu0 0
        %1789 = vmatpush2.bf16.xpose.msra.mxu0 0
        %1790 = vmatprep.subr.bf16.mxu0 0
        %1791 = vmatpush2.bf16.xpose.msra.mxu0 0
        %1792 = vmatprep.subr.bf16.mxu0 0
        %1793 = vmatpush2.bf16.xpose.msra.mxu0 0
        %1794 = vmatprep.subr.bf16.mxu0 0
        %1795 = vmatpush2.bf16.xpose.msra.mxu0 0
        %1796 = vmatprep.subr.bf16.mxu0 0
        %1797 = vmatpush2.bf16.xpose.msra.mxu0 0
        %1798 = vmatprep.subr.bf16.mxu0 0
        %1799 = vmatpush2.bf16.xpose.msra.mxu0 0
        %1800 = vmatprep.subr.bf16.mxu0 0
        %1801 = vmatpush2.bf16.xpose.msra.mxu0 0
        %1802 = vmatprep.subr.bf16.mxu0 0
        %1803 = vmatpush2.bf16.xpose.msra.mxu0 0
        %1804 = vmatprep.mubr.bf16.mxu0 0
        %1805 = vmatmul.mubr.bf16.gmra.mxu0 %v1767
        %v1806 = vpop.f32.mrf.mxu0
        %v1807 = vadd.f32 %v956, %v1806
        %v1808 = vpop.f32.mrf.mxu0
        %v1809 = vpop.f32.mrf.mxu0
        %v1810 = vpop.f32.mrf.mxu0
        %1811 = vdwg.mxu0
        %v1812 = vsel %vm1008, %v1807, -inf
        %1813 = vmax.xlane.f32.xlu0 %v1812
        %v1814 = vpop.xlane.xlu0 %1813
        %v1815 = vsub.f32 %v1807, %v1814
        %v1816 = vmul.f32 %v1815, 1.442695
        %v1817 = vpow.pop %v1816
        %v1818 = vsel %vm1008, %v1817, 0.0
        %1819 = vadd.xlane.f32.xlu0 %v1818
        %v1820 = vpop.xlane.xlu0 %1819
        %v1821 = vrcp.pop %v1820
        %v1822 = vmul.f32 %v1817, %v1821
        %v1823 = vpack.c.bf16 %v1822, %v1822
        %1824 = vrot.lane.b32.xlu0 %v1137, 108
        %v1825 = vpop.permute.xlu0 %1824
        %v1827 = vsel %vm1008, %v1823, 0
        %v1830 = vsel %vm1024, %v1825, 0
        %1832 = vmatprep.subr.bf16.mxu0 0
        %1833 = vmatpush1.bf16.msra.mxu0 0
        %1834 = vmatprep.subr.bf16.mxu0 0
        %1835 = vmatpush1.bf16.msra.mxu0 0
        %1836 = vmatprep.subr.bf16.mxu0 0
        %1837 = vmatpush1.bf16.msra.mxu0 0
        %1838 = vmatprep.subr.bf16.mxu0 0
        %1839 = vmatpush1.bf16.msra.mxu0 0
        %1840 = vmatprep.subr.bf16.mxu0 0
        %1841 = vmatpush1.bf16.msra.mxu0 0
        %1842 = vmatprep.subr.bf16.mxu0 0
        %1843 = vmatpush1.bf16.msra.mxu0 0
        %1844 = vmatprep.subr.bf16.mxu0 0
        %1845 = vmatpush1.bf16.msra.mxu0 0
        %1846 = vmatprep.subr.bf16.mxu0 0
        %1847 = vmatpush1.bf16.msra.mxu0 %v1830
        %1848 = vmatprep.subr.bf16.mxu0 0
        %1849 = vmatpush2.bf16.msra.mxu0 0
        %1850 = vmatprep.subr.bf16.mxu0 0
        %1851 = vmatpush2.bf16.msra.mxu0 0
        %1852 = vmatprep.subr.bf16.mxu0 0
        %1853 = vmatpush2.bf16.msra.mxu0 0
        %1854 = vmatprep.subr.bf16.mxu0 0
        %1855 = vmatpush2.bf16.msra.mxu0 0
        %1856 = vmatprep.subr.bf16.mxu0 0
        %1857 = vmatpush2.bf16.msra.mxu0 0
        %1858 = vmatprep.subr.bf16.mxu0 0
        %1859 = vmatpush2.bf16.msra.mxu0 0
        %1860 = vmatprep.subr.bf16.mxu0 0
        %1861 = vmatpush2.bf16.msra.mxu0 0
        %1862 = vmatprep.subr.bf16.mxu0 0
        %1863 = vmatpush2.bf16.msra.mxu0 0
        %1864 = vmatprep.mubr.bf16.mxu0 0
        %1865 = vmatmul.mubr.bf16.gmra.mxu0 %v1827
        %v1866 = vpop.f32.mrf.mxu0
        %v1867 = vadd.f32 0.0, %v1866
        %v1868 = vpop.f32.mrf.mxu0
        %v1869 = vpop.f32.mrf.mxu0
        %v1870 = vpop.f32.mrf.mxu0
        %1871 = vdwg.mxu0
        %v1872 = vpack.c.bf16 %v1867, %v1867
        %v1874 = vunpack.c.l.b16 %v959
        %v1875 = vpack.c.b16 %v1874, %v1874
        %v1876 = vrot.slane %v1875, 2
        %v1878 = vsel %vm961, %v1872, 0
        %v1881 = vsel %vm1194, %v1876, 0
        %1883 = vmatprep.subr.bf16.mxu0 0
        %1884 = vmatpush1.bf16.msra.mxu0 0
        %1885 = vmatprep.subr.bf16.mxu0 0
        %1886 = vmatpush1.bf16.msra.mxu0 0
        %1887 = vmatprep.subr.bf16.mxu0 0
        %1888 = vmatpush1.bf16.msra.mxu0 0
        %1889 = vmatprep.subr.bf16.mxu0 0
        %1890 = vmatpush1.bf16.msra.mxu0 0
        %1891 = vmatprep.subr.bf16.mxu0 0
        %1892 = vmatpush1.bf16.msra.mxu0 0
        %1893 = vmatprep.subr.bf16.mxu0 0
        %1894 = vmatpush1.bf16.msra.mxu0 0
        %1895 = vmatprep.subr.bf16.mxu0 0
        %1896 = vmatpush1.bf16.msra.mxu0 0
        %1897 = vmatprep.subr.bf16.mxu0 0
        %1898 = vmatpush1.bf16.msra.mxu0 %v1881
        %1899 = vmatprep.subr.bf16.mxu0 0
        %1900 = vmatpush2.bf16.msra.mxu0 0
        %1901 = vmatprep.subr.bf16.mxu0 0
        %1902 = vmatpush2.bf16.msra.mxu0 0
        %1903 = vmatprep.subr.bf16.mxu0 0
        %1904 = vmatpush2.bf16.msra.mxu0 0
        %1905 = vmatprep.subr.bf16.mxu0 0
        %1906 = vmatpush2.bf16.msra.mxu0 0
        %1907 = vmatprep.subr.bf16.mxu0 0
        %1908 = vmatpush2.bf16.msra.mxu0 0
        %1909 = vmatprep.subr.bf16.mxu0 0
        %1910 = vmatpush2.bf16.msra.mxu0 0
        %1911 = vmatprep.subr.bf16.mxu0 0
        %1912 = vmatpush2.bf16.msra.mxu0 0
        %1913 = vmatprep.subr.bf16.mxu0 0
        %1914 = vmatpush2.bf16.msra.mxu0 0
        %1915 = vmatprep.mubr.bf16.mxu0 0
        %1916 = vmatmul.mubr.bf16.gmra.mxu0 %v1878
        %v1917 = vpop.f32.mrf.mxu0
        %v1918 = vadd.f32 0.0, %v1917
        %v1919 = vpop.f32.mrf.mxu0
        %v1920 = vpop.f32.mrf.mxu0
        %v1921 = vpop.f32.mrf.mxu0
        %1922 = vdwg.mxu0
        %v1923 = vadd.f32 %v1761, %v1918
        %1924 = vrot.lane.b32.xlu0 %v953, 104
        %v1925 = vpop.permute.xlu0 %1924
        %1926 = vrot.lane.b32.xlu0 %v1074, 104
        %v1927 = vpop.permute.xlu0 %1926
        %v1929 = vsel %vm961, %v1925, 0
        %v1932 = vsel %vm961, %v1927, 0
        %1934 = vmatprep.subr.bf16.mxu0 0
        %1935 = vmatpush1.bf16.xpose.msra.mxu0 0
        %1936 = vmatprep.subr.bf16.mxu0 0
        %1937 = vmatpush1.bf16.xpose.msra.mxu0 0
        %1938 = vmatprep.subr.bf16.mxu0 0
        %1939 = vmatpush1.bf16.xpose.msra.mxu0 0
        %1940 = vmatprep.subr.bf16.mxu0 0
        %1941 = vmatpush1.bf16.xpose.msra.mxu0 0
        %1942 = vmatprep.subr.bf16.mxu0 0
        %1943 = vmatpush1.bf16.xpose.msra.mxu0 0
        %1944 = vmatprep.subr.bf16.mxu0 0
        %1945 = vmatpush1.bf16.xpose.msra.mxu0 0
        %1946 = vmatprep.subr.bf16.mxu0 0
        %1947 = vmatpush1.bf16.xpose.msra.mxu0 0
        %1948 = vmatprep.subr.bf16.mxu0 0
        %1949 = vmatpush1.bf16.xpose.msra.mxu0 %v1932
        %1950 = vmatprep.subr.bf16.mxu0 0
        %1951 = vmatpush2.bf16.xpose.msra.mxu0 0
        %1952 = vmatprep.subr.bf16.mxu0 0
        %1953 = vmatpush2.bf16.xpose.msra.mxu0 0
        %1954 = vmatprep.subr.bf16.mxu0 0
        %1955 = vmatpush2.bf16.xpose.msra.mxu0 0
        %1956 = vmatprep.subr.bf16.mxu0 0
        %1957 = vmatpush2.bf16.xpose.msra.mxu0 0
        %1958 = vmatprep.subr.bf16.mxu0 0
        %1959 = vmatpush2.bf16.xpose.msra.mxu0 0
        %1960 = vmatprep.subr.bf16.mxu0 0
        %1961 = vmatpush2.bf16.xpose.msra.mxu0 0
        %1962 = vmatprep.subr.bf16.mxu0 0
        %1963 = vmatpush2.bf16.xpose.msra.mxu0 0
        %1964 = vmatprep.subr.bf16.mxu0 0
        %1965 = vmatpush2.bf16.xpose.msra.mxu0 0
        %1966 = vmatprep.mubr.bf16.mxu0 0
        %1967 = vmatmul.mubr.bf16.gmra.mxu0 %v1929
        %v1968 = vpop.f32.mrf.mxu0
        %v1969 = vadd.f32 %v956, %v1968
        %v1970 = vpop.f32.mrf.mxu0
        %v1971 = vpop.f32.mrf.mxu0
        %v1972 = vpop.f32.mrf.mxu0
        %1973 = vdwg.mxu0
        %v1974 = vsel %vm1008, %v1969, -inf
        %1975 = vmax.xlane.f32.xlu0 %v1974
        %v1976 = vpop.xlane.xlu0 %1975
        %v1977 = vsub.f32 %v1969, %v1976
        %v1978 = vmul.f32 %v1977, 1.442695
        %v1979 = vpow.pop %v1978
        %v1980 = vsel %vm1008, %v1979, 0.0
        %1981 = vadd.xlane.f32.xlu0 %v1980
        %v1982 = vpop.xlane.xlu0 %1981
        %v1983 = vrcp.pop %v1982
        %v1984 = vmul.f32 %v1979, %v1983
        %v1985 = vpack.c.bf16 %v1984, %v1984
        %1986 = vrot.lane.b32.xlu0 %v1137, 104
        %v1987 = vpop.permute.xlu0 %1986
        %v1989 = vsel %vm1008, %v1985, 0
        %v1992 = vsel %vm1024, %v1987, 0
        %1994 = vmatprep.subr.bf16.mxu0 0
        %1995 = vmatpush1.bf16.msra.mxu0 0
        %1996 = vmatprep.subr.bf16.mxu0 0
        %1997 = vmatpush1.bf16.msra.mxu0 0
        %1998 = vmatprep.subr.bf16.mxu0 0
        %1999 = vmatpush1.bf16.msra.mxu0 0
        %2000 = vmatprep.subr.bf16.mxu0 0
        %2001 = vmatpush1.bf16.msra.mxu0 0
        %2002 = vmatprep.subr.bf16.mxu0 0
        %2003 = vmatpush1.bf16.msra.mxu0 0
        %2004 = vmatprep.subr.bf16.mxu0 0
        %2005 = vmatpush1.bf16.msra.mxu0 0
        %2006 = vmatprep.subr.bf16.mxu0 0
        %2007 = vmatpush1.bf16.msra.mxu0 0
        %2008 = vmatprep.subr.bf16.mxu0 0
        %2009 = vmatpush1.bf16.msra.mxu0 %v1992
        %2010 = vmatprep.subr.bf16.mxu0 0
        %2011 = vmatpush2.bf16.msra.mxu0 0
        %2012 = vmatprep.subr.bf16.mxu0 0
        %2013 = vmatpush2.bf16.msra.mxu0 0
        %2014 = vmatprep.subr.bf16.mxu0 0
        %2015 = vmatpush2.bf16.msra.mxu0 0
        %2016 = vmatprep.subr.bf16.mxu0 0
        %2017 = vmatpush2.bf16.msra.mxu0 0
        %2018 = vmatprep.subr.bf16.mxu0 0
        %2019 = vmatpush2.bf16.msra.mxu0 0
        %2020 = vmatprep.subr.bf16.mxu0 0
        %2021 = vmatpush2.bf16.msra.mxu0 0
        %2022 = vmatprep.subr.bf16.mxu0 0
        %2023 = vmatpush2.bf16.msra.mxu0 0
        %2024 = vmatprep.subr.bf16.mxu0 0
        %2025 = vmatpush2.bf16.msra.mxu0 0
        %2026 = vmatprep.mubr.bf16.mxu0 0
        %2027 = vmatmul.mubr.bf16.gmra.mxu0 %v1989
        %v2028 = vpop.f32.mrf.mxu0
        %v2029 = vadd.f32 0.0, %v2028
        %v2030 = vpop.f32.mrf.mxu0
        %v2031 = vpop.f32.mrf.mxu0
        %v2032 = vpop.f32.mrf.mxu0
        %2033 = vdwg.mxu0
        %v2034 = vpack.c.bf16 %v2029, %v2029
        %v2036 = vsel %vm961, %v2034, 0
        %v2039 = vsel %vm1194, %v960, 0
        %2041 = vmatprep.subr.bf16.mxu0 0
        %2042 = vmatpush1.bf16.msra.mxu0 0
        %2043 = vmatprep.subr.bf16.mxu0 0
        %2044 = vmatpush1.bf16.msra.mxu0 0
        %2045 = vmatprep.subr.bf16.mxu0 0
        %2046 = vmatpush1.bf16.msra.mxu0 0
        %2047 = vmatprep.subr.bf16.mxu0 0
        %2048 = vmatpush1.bf16.msra.mxu0 0
        %2049 = vmatprep.subr.bf16.mxu0 0
        %2050 = vmatpush1.bf16.msra.mxu0 0
        %2051 = vmatprep.subr.bf16.mxu0 0
        %2052 = vmatpush1.bf16.msra.mxu0 0
        %2053 = vmatprep.subr.bf16.mxu0 0
        %2054 = vmatpush1.bf16.msra.mxu0 0
        %2055 = vmatprep.subr.bf16.mxu0 0
        %2056 = vmatpush1.bf16.msra.mxu0 %v2039
        %2057 = vmatprep.subr.bf16.mxu0 0
        %2058 = vmatpush2.bf16.msra.mxu0 0
        %2059 = vmatprep.subr.bf16.mxu0 0
        %2060 = vmatpush2.bf16.msra.mxu0 0
        %2061 = vmatprep.subr.bf16.mxu0 0
        %2062 = vmatpush2.bf16.msra.mxu0 0
        %2063 = vmatprep.subr.bf16.mxu0 0
        %2064 = vmatpush2.bf16.msra.mxu0 0
        %2065 = vmatprep.subr.bf16.mxu0 0
        %2066 = vmatpush2.bf16.msra.mxu0 0
        %2067 = vmatprep.subr.bf16.mxu0 0
        %2068 = vmatpush2.bf16.msra.mxu0 0
        %2069 = vmatprep.subr.bf16.mxu0 0
        %2070 = vmatpush2.bf16.msra.mxu0 0
        %2071 = vmatprep.subr.bf16.mxu0 0
        %2072 = vmatpush2.bf16.msra.mxu0 0
        %2073 = vmatprep.mubr.bf16.mxu0 0
        %2074 = vmatmul.mubr.bf16.gmra.mxu0 %v2036
        %v2075 = vpop.f32.mrf.mxu0
        %v2076 = vadd.f32 0.0, %v2075
        %v2077 = vpop.f32.mrf.mxu0
        %v2078 = vpop.f32.mrf.mxu0
        %v2079 = vpop.f32.mrf.mxu0
        %2080 = vdwg.mxu0
        %v2081 = vadd.f32 %v1923, %v2076
        %2082 = vrot.lane.b32.xlu0 %v953, 100
        %v2083 = vpop.permute.xlu0 %2082
        %2084 = vrot.lane.b32.xlu0 %v1074, 100
        %v2085 = vpop.permute.xlu0 %2084
        %v2087 = vsel %vm961, %v2083, 0
        %v2090 = vsel %vm961, %v2085, 0
        %2092 = vmatprep.subr.bf16.mxu0 0
        %2093 = vmatpush1.bf16.xpose.msra.mxu0 0
        %2094 = vmatprep.subr.bf16.mxu0 0
        %2095 = vmatpush1.bf16.xpose.msra.mxu0 0
        %2096 = vmatprep.subr.bf16.mxu0 0
        %2097 = vmatpush1.bf16.xpose.msra.mxu0 0
        %2098 = vmatprep.subr.bf16.mxu0 0
        %2099 = vmatpush1.bf16.xpose.msra.mxu0 0
        %2100 = vmatprep.subr.bf16.mxu0 0
        %2101 = vmatpush1.bf16.xpose.msra.mxu0 0
        %2102 = vmatprep.subr.bf16.mxu0 0
        %2103 = vmatpush1.bf16.xpose.msra.mxu0 0
        %2104 = vmatprep.subr.bf16.mxu0 0
        %2105 = vmatpush1.bf16.xpose.msra.mxu0 0
        %2106 = vmatprep.subr.bf16.mxu0 0
        %2107 = vmatpush1.bf16.xpose.msra.mxu0 %v2090
        %2108 = vmatprep.subr.bf16.mxu0 0
        %2109 = vmatpush2.bf16.xpose.msra.mxu0 0
        %2110 = vmatprep.subr.bf16.mxu0 0
        %2111 = vmatpush2.bf16.xpose.msra.mxu0 0
        %2112 = vmatprep.subr.bf16.mxu0 0
        %2113 = vmatpush2.bf16.xpose.msra.mxu0 0
        %2114 = vmatprep.subr.bf16.mxu0 0
        %2115 = vmatpush2.bf16.xpose.msra.mxu0 0
        %2116 = vmatprep.subr.bf16.mxu0 0
        %2117 = vmatpush2.bf16.xpose.msra.mxu0 0
        %2118 = vmatprep.subr.bf16.mxu0 0
        %2119 = vmatpush2.bf16.xpose.msra.mxu0 0
        %2120 = vmatprep.subr.bf16.mxu0 0
        %2121 = vmatpush2.bf16.xpose.msra.mxu0 0
        %2122 = vmatprep.subr.bf16.mxu0 0
        %2123 = vmatpush2.bf16.xpose.msra.mxu0 0
        %2124 = vmatprep.mubr.bf16.mxu0 0
        %2125 = vmatmul.mubr.bf16.gmra.mxu0 %v2087
        %v2126 = vpop.f32.mrf.mxu0
        %v2127 = vadd.f32 %v956, %v2126
        %v2128 = vpop.f32.mrf.mxu0
        %v2129 = vpop.f32.mrf.mxu0
        %v2130 = vpop.f32.mrf.mxu0
        %2131 = vdwg.mxu0
        %v2132 = vsel %vm1008, %v2127, -inf
        %2133 = vmax.xlane.f32.xlu0 %v2132
        %v2134 = vpop.xlane.xlu0 %2133
        %v2135 = vsub.f32 %v2127, %v2134
        %v2136 = vmul.f32 %v2135, 1.442695
        %v2137 = vpow.pop %v2136
        %v2138 = vsel %vm1008, %v2137, 0.0
        %2139 = vadd.xlane.f32.xlu0 %v2138
        %v2140 = vpop.xlane.xlu0 %2139
        %v2141 = vrcp.pop %v2140
        %v2142 = vmul.f32 %v2137, %v2141
        %v2143 = vpack.c.bf16 %v2142, %v2142
        %2144 = vrot.lane.b32.xlu0 %v1137, 100
        %v2145 = vpop.permute.xlu0 %2144
        %v2147 = vsel %vm1008, %v2143, 0
        %v2150 = vsel %vm1024, %v2145, 0
        %2152 = vmatprep.subr.bf16.mxu0 0
        %2153 = vmatpush1.bf16.msra.mxu0 0
        %2154 = vmatprep.subr.bf16.mxu0 0
        %2155 = vmatpush1.bf16.msra.mxu0 0
        %2156 = vmatprep.subr.bf16.mxu0 0
        %2157 = vmatpush1.bf16.msra.mxu0 0
        %2158 = vmatprep.subr.bf16.mxu0 0
        %2159 = vmatpush1.bf16.msra.mxu0 0
        %2160 = vmatprep.subr.bf16.mxu0 0
        %2161 = vmatpush1.bf16.msra.mxu0 0
        %2162 = vmatprep.subr.bf16.mxu0 0
        %2163 = vmatpush1.bf16.msra.mxu0 0
        %2164 = vmatprep.subr.bf16.mxu0 0
        %2165 = vmatpush1.bf16.msra.mxu0 0
        %2166 = vmatprep.subr.bf16.mxu0 0
        %2167 = vmatpush1.bf16.msra.mxu0 %v2150
        %2168 = vmatprep.subr.bf16.mxu0 0
        %2169 = vmatpush2.bf16.msra.mxu0 0
        %2170 = vmatprep.subr.bf16.mxu0 0
        %2171 = vmatpush2.bf16.msra.mxu0 0
        %2172 = vmatprep.subr.bf16.mxu0 0
        %2173 = vmatpush2.bf16.msra.mxu0 0
        %2174 = vmatprep.subr.bf16.mxu0 0
        %2175 = vmatpush2.bf16.msra.mxu0 0
        %2176 = vmatprep.subr.bf16.mxu0 0
        %2177 = vmatpush2.bf16.msra.mxu0 0
        %2178 = vmatprep.subr.bf16.mxu0 0
        %2179 = vmatpush2.bf16.msra.mxu0 0
        %2180 = vmatprep.subr.bf16.mxu0 0
        %2181 = vmatpush2.bf16.msra.mxu0 0
        %2182 = vmatprep.subr.bf16.mxu0 0
        %2183 = vmatpush2.bf16.msra.mxu0 0
        %2184 = vmatprep.mubr.bf16.mxu0 0
        %2185 = vmatmul.mubr.bf16.gmra.mxu0 %v2147
        %v2186 = vpop.f32.mrf.mxu0
        %v2187 = vadd.f32 0.0, %v2186
        %v2188 = vpop.f32.mrf.mxu0
        %v2189 = vpop.f32.mrf.mxu0
        %v2190 = vpop.f32.mrf.mxu0
        %2191 = vdwg.mxu0
        %v2192 = vpack.c.bf16 %v2187, %v2187
        %v2194 = vunpack.c.l.b16 %v960
        %v2195 = vpack.c.b16 %v2194, %v2194
        %v2196 = vrot.slane %v2195, 2
        %v2198 = vsel %vm961, %v2192, 0
        %v2201 = vsel %vm1194, %v2196, 0
        %2203 = vmatprep.subr.bf16.mxu0 0
        %2204 = vmatpush1.bf16.msra.mxu0 0
        %2205 = vmatprep.subr.bf16.mxu0 0
        %2206 = vmatpush1.bf16.msra.mxu0 0
        %2207 = vmatprep.subr.bf16.mxu0 0
        %2208 = vmatpush1.bf16.msra.mxu0 0
        %2209 = vmatprep.subr.bf16.mxu0 0
        %2210 = vmatpush1.bf16.msra.mxu0 0
        %2211 = vmatprep.subr.bf16.mxu0 0
        %2212 = vmatpush1.bf16.msra.mxu0 0
        %2213 = vmatprep.subr.bf16.mxu0 0
        %2214 = vmatpush1.bf16.msra.mxu0 0
        %2215 = vmatprep.subr.bf16.mxu0 0
        %2216 = vmatpush1.bf16.msra.mxu0 0
        %2217 = vmatprep.subr.bf16.mxu0 0
        %2218 = vmatpush1.bf16.msra.mxu0 %v2201
        %2219 = vmatprep.subr.bf16.mxu0 0
        %2220 = vmatpush2.bf16.msra.mxu0 0
        %2221 = vmatprep.subr.bf16.mxu0 0
        %2222 = vmatpush2.bf16.msra.mxu0 0
        %2223 = vmatprep.subr.bf16.mxu0 0
        %2224 = vmatpush2.bf16.msra.mxu0 0
        %2225 = vmatprep.subr.bf16.mxu0 0
        %2226 = vmatpush2.bf16.msra.mxu0 0
        %2227 = vmatprep.subr.bf16.mxu0 0
        %2228 = vmatpush2.bf16.msra.mxu0 0
        %2229 = vmatprep.subr.bf16.mxu0 0
        %2230 = vmatpush2.bf16.msra.mxu0 0
        %2231 = vmatprep.subr.bf16.mxu0 0
        %2232 = vmatpush2.bf16.msra.mxu0 0
        %2233 = vmatprep.subr.bf16.mxu0 0
        %2234 = vmatpush2.bf16.msra.mxu0 0
        %2235 = vmatprep.mubr.bf16.mxu0 0
        %2236 = vmatmul.mubr.bf16.gmra.mxu0 %v2198
        %v2237 = vpop.f32.mrf.mxu0
        %v2238 = vadd.f32 0.0, %v2237
        %v2239 = vpop.f32.mrf.mxu0
        %v2240 = vpop.f32.mrf.mxu0
        %v2241 = vpop.f32.mrf.mxu0
        %2242 = vdwg.mxu0
        %v2243 = vadd.f32 %v2081, %v2238
        %v2244 = vld [vmem:[%s10] sm:$0x1]
        %v2246 = vlaneseq
        %v2247 = vshrl.u32 %v2246, 7
        %v2248 = vsub.s32 0, %v2247
        %v2249 = vrot.slane %v2244, %v2248
        %v2251 = vadd.f32 %v2243, %v2249
        %v2252 = vld [vmem:[%s11] sm:$0x1]
        %v2253 = vld [vmem:[%s12] sm:$0x1]
        %v2254 = vsel %vm908, %v2251, 0.0
        %2255 = vadd.xlane.f32.xlu0 %v2254
        %v2256 = vpop.xlane.xlu0 %2255
        %v2257 = vrcp.pop 32.0
        %v2258 = vmul.f32 %v2256, %v2257
        %v2259 = vsub.f32 %v2251, %v2258
        %v2260 = vmul.f32 %v2259, %v2259
        %v2261 = vsel %vm908, %v2260, 0.0
        %2262 = vadd.xlane.f32.xlu0 %v2261
        %v2263 = vpop.xlane.xlu0 %2262
        %v2264 = vmul.f32 %v2263, %v2257
        %v2266 = vlaneseq
        %v2267 = vshrl.u32 %v2266, 7
        %v2268 = vsub.s32 0, %v2267
        %v2269 = vrot.slane %v2252, %v2268
        %v2271 = vmul.f32 %v2269, %v2259
        %v2272 = vadd.f32 %v2264, 1e-06
        %v2273 = vrsqrt.pop %v2272
        %v2274 = vmul.f32 %v2271, %v2273
        %v2276 = vlaneseq
        %v2277 = vshrl.u32 %v2276, 7
        %v2278 = vsub.s32 0, %v2277
        %v2279 = vrot.slane %v2253, %v2278
        %v2281 = vadd.f32 %v2274, %v2279
        %v2282 = vadd.f32 %v2281, %v883
        %v2283 = vpack.c.bf16 %v2282, %v2282
        %v2284 = vld [vmem:[%s13] sm:$0xf]
        %v2285 = vld [vmem:[%s13 + $0x4] sm:$0xf]
        %v2286 = vld [vmem:[%s13 + $0x8] sm:$0xf]
        %v2287 = vld [vmem:[%s13 + $0xc] sm:$0xf]
        %v2288 = vld [vmem:[%s14] sm:$0x1]
        %v2290 = vlaneseq
        %v2291 = vshrl.u32 %v2290, 7
        %v2292 = vsub.s32 0, %v2291
        %v2293 = vrot.slane %v2288, %v2292
        %v2299 = vunpack.c.l.b16 %v2284
        %v2300 = vunpack.c.l.b16 %v2285
        %v2301 = vunpack.c.l.b16 %v2286
        %v2302 = vunpack.c.l.b16 %v2287
        %v2303 = vpack.c.b16 %v2300, %v2299
        %v2304 = vpack.c.b16 %v2302, %v2301
        %v2308 = vsel %vm908, %v2283, 0
        %2310 = vmatprep.subr.bf16.mxu0 0
        %2311 = vmatpush1.bf16.msra.mxu0 0
        %2312 = vmatprep.subr.bf16.mxu0 0
        %2313 = vmatpush1.bf16.msra.mxu0 0
        %2314 = vmatprep.subr.bf16.mxu0 0
        %2315 = vmatpush1.bf16.msra.mxu0 0
        %2316 = vmatprep.subr.bf16.mxu0 0
        %2317 = vmatpush1.bf16.msra.mxu0 0
        %2318 = vmatprep.subr.bf16.mxu0 0
        %2319 = vmatpush1.bf16.msra.mxu0 0
        %2320 = vmatprep.subr.bf16.mxu0 0
        %2321 = vmatpush1.bf16.msra.mxu0 0
        %2322 = vmatprep.subr.bf16.mxu0 0
        %2323 = vmatpush1.bf16.msra.mxu0 %v2304
        %2324 = vmatprep.subr.bf16.mxu0 0
        %2325 = vmatpush1.bf16.msra.mxu0 %v2303
        %2326 = vmatprep.subr.bf16.mxu0 0
        %2327 = vmatpush2.bf16.msra.mxu0 0
        %2328 = vmatprep.subr.bf16.mxu0 0
        %2329 = vmatpush2.bf16.msra.mxu0 0
        %2330 = vmatprep.subr.bf16.mxu0 0
        %2331 = vmatpush2.bf16.msra.mxu0 0
        %2332 = vmatprep.subr.bf16.mxu0 0
        %2333 = vmatpush2.bf16.msra.mxu0 0
        %2334 = vmatprep.subr.bf16.mxu0 0
        %2335 = vmatpush2.bf16.msra.mxu0 0
        %2336 = vmatprep.subr.bf16.mxu0 0
        %2337 = vmatpush2.bf16.msra.mxu0 0
        %2338 = vmatprep.subr.bf16.mxu0 0
        %2339 = vmatpush2.bf16.msra.mxu0 0
        %2340 = vmatprep.subr.bf16.mxu0 0
        %2341 = vmatpush2.bf16.msra.mxu0 0
        %2342 = vmatprep.mubr.bf16.mxu0 0
        %2343 = vmatmul.mubr.bf16.gmra.mxu0 %v2308
        %v2344 = vpop.f32.mrf.mxu0
        %v2345 = vadd.f32 %v2293, %v2344
        %v2346 = vpop.f32.mrf.mxu0
        %v2347 = vpop.f32.mrf.mxu0
        %v2348 = vpop.f32.mrf.mxu0
        %2349 = vdwg.mxu0
        %v2350 = vmax.f32 %v2345, 0.0
        %v2351 = vpack.c.bf16 %v2350, %v2350
        %v2352 = vld [vmem:[%s15] sm:$0xf]
        %v2353 = vld [vmem:[%s15 + $0x4] sm:$0xf]
        %v2354 = vld [vmem:[%s15 + $0x8] sm:$0xf]
        %v2355 = vld [vmem:[%s15 + $0xc] sm:$0xf]
        %v2356 = vld [vmem:[%s15 + $0x10] sm:$0xf]
        %v2357 = vld [vmem:[%s15 + $0x14] sm:$0xf]
        %v2358 = vld [vmem:[%s15 + $0x18] sm:$0xf]
        %v2359 = vld [vmem:[%s15 + $0x1c] sm:$0xf]
        %v2360 = vld [vmem:[%s16] sm:$0x1]
        %v2362 = vlaneseq
        %v2363 = vshrl.u32 %v2362, 7
        %v2364 = vsub.s32 0, %v2363
        %v2365 = vrot.slane %v2360, %v2364
        %v2375 = vunpack.c.l.b16 %v2352
        %v2376 = vunpack.c.l.b16 %v2353
        %v2377 = vunpack.c.l.b16 %v2354
        %v2378 = vunpack.c.l.b16 %v2355
        %v2379 = vunpack.c.l.b16 %v2356
        %v2380 = vunpack.c.l.b16 %v2357
        %v2381 = vunpack.c.l.b16 %v2358
        %v2382 = vunpack.c.l.b16 %v2359
        %v2383 = vpack.c.b16 %v2376, %v2375
        %v2384 = vpack.c.b16 %v2378, %v2377
        %v2385 = vpack.c.b16 %v2380, %v2379
        %v2386 = vpack.c.b16 %v2382, %v2381
        %vm2391 = vcmask 523264
        %v2393 = vsel %vm2391, %v2351, 0
        %2395 = vmatprep.subr.bf16.mxu0 0
        %2396 = vmatpush1.bf16.msra.mxu0 0
        %2397 = vmatprep.subr.bf16.mxu0 0
        %2398 = vmatpush1.bf16.msra.mxu0 0
        %2399 = vmatprep.subr.bf16.mxu0 0
        %2400 = vmatpush1.bf16.msra.mxu0 0
        %2401 = vmatprep.subr.bf16.mxu0 0
        %2402 = vmatpush1.bf16.msra.mxu0 0
        %2403 = vmatprep.subr.bf16.mxu0 0
        %2404 = vmatpush1.bf16.msra.mxu0 %v2386
        %2405 = vmatprep.subr.bf16.mxu0 0
        %2406 = vmatpush1.bf16.msra.mxu0 %v2385
        %2407 = vmatprep.subr.bf16.mxu0 0
        %2408 = vmatpush1.bf16.msra.mxu0 %v2384
        %2409 = vmatprep.subr.bf16.mxu0 0
        %2410 = vmatpush1.bf16.msra.mxu0 %v2383
        %2411 = vmatprep.subr.bf16.mxu0 0
        %2412 = vmatpush2.bf16.msra.mxu0 0
        %2413 = vmatprep.subr.bf16.mxu0 0
        %2414 = vmatpush2.bf16.msra.mxu0 0
        %2415 = vmatprep.subr.bf16.mxu0 0
        %2416 = vmatpush2.bf16.msra.mxu0 0
        %2417 = vmatprep.subr.bf16.mxu0 0
        %2418 = vmatpush2.bf16.msra.mxu0 0
        %2419 = vmatprep.subr.bf16.mxu0 0
        %2420 = vmatpush2.bf16.msra.mxu0 0
        %2421 = vmatprep.subr.bf16.mxu0 0
        %2422 = vmatpush2.bf16.msra.mxu0 0
        %2423 = vmatprep.subr.bf16.mxu0 0
        %2424 = vmatpush2.bf16.msra.mxu0 0
        %2425 = vmatprep.subr.bf16.mxu0 0
        %2426 = vmatpush2.bf16.msra.mxu0 0
        %2427 = vmatprep.mubr.bf16.mxu0 0
        %2428 = vmatmul.mubr.bf16.gmra.mxu0 %v2393
        %v2429 = vpop.f32.mrf.mxu0
        %v2430 = vadd.f32 %v2365, %v2429
        %v2431 = vpop.f32.mrf.mxu0
        %v2432 = vpop.f32.mrf.mxu0
        %v2433 = vpop.f32.mrf.mxu0
        %2434 = vdwg.mxu0
        %v2435 = vld [vmem:[%s17] sm:$0x1]
        %v2436 = vld [vmem:[%s18] sm:$0x1]
        %v2437 = vsel %vm908, %v2430, 0.0
        %2438 = vadd.xlane.f32.xlu0 %v2437
        %v2439 = vpop.xlane.xlu0 %2438
        %v2440 = vmul.f32 %v2439, %v2257
        %v2441 = vsub.f32 %v2430, %v2440
        %v2442 = vmul.f32 %v2441, %v2441
        %v2443 = vsel %vm908, %v2442, 0.0
        %2444 = vadd.xlane.f32.xlu0 %v2443
        %v2445 = vpop.xlane.xlu0 %2444
        %v2446 = vmul.f32 %v2445, %v2257
        %v2448 = vlaneseq
        %v2449 = vshrl.u32 %v2448, 7
        %v2450 = vsub.s32 0, %v2449
        %v2451 = vrot.slane %v2435, %v2450
        %v2453 = vmul.f32 %v2451, %v2441
        %v2454 = vadd.f32 %v2446, 1e-06
        %v2455 = vrsqrt.pop %v2454
        %v2456 = vmul.f32 %v2453, %v2455
        %v2458 = vlaneseq
        %v2459 = vshrl.u32 %v2458, 7
        %v2460 = vsub.s32 0, %v2459
        %v2461 = vrot.slane %v2436, %v2460
        %v2463 = vadd.f32 %v2456, %v2461
        %v2464 = vadd.f32 %v2463, %v2282
        %2465 = vst.msk [vmem:[%s729] sm:$0xff] %vm908, %v2464
        %s2466 = sand.u32 %s475, 1
        %s2467 = scalar_lea.sflag [#allocation6], %s2466
        %s2468 = sand.u32 %s475, 1
        %s2469 = smul.addr %s2468, 8
        %s2470 = scalar_lea.vmem [#allocation16], %s2469
        // Predicated region
        $region129: #{tpu_custom_call.1} parent=95 // pred_check
          %p2471 = pneg %p485
        $region130: #{tpu_custom_call.1} parent=95 // pred_check_branch
          %2473 = sbr.rel (%p2471) target = $region132
        $region131: #{tpu_custom_call.1} parent=95 // pred_region
          %s2475 = ssub.s32 128, 128
          %2476 = vsyncadd %s2467, %s2475
          %s2477 = sadd.s32 %s42, %s41
          %s2478 = smul.addr %s2477, 128
          %s2479 = scalar_lea.hbm %s19, %s2478
          %s2481 = sshll.u32 %s2470, 4
          %s2482 = int_to_ptr.vmem [resolvable:$true] %s2481
          %2484 = dma.vmem_to_hbm [thread:$0]  %s2482, 128, %s2479, %s2467
        $region132: #{tpu_custom_call.1} parent=95 // pred_fallthru
          _
      $region96: #{tpu_custom_call.1} parent=5 // pred_fallthru
        _
      %p2485 = scmp.le.s32.totalorder 2, %s32
      // Predicated region
      $region133: #{tpu_custom_call.1} parent=5 // pred_check
        %p2486 = pneg %p2485
      $region134: #{tpu_custom_call.1} parent=5 // pred_check_branch
        %2488 = sbr.rel (%p2486) target = $region136
      $region135: #{tpu_custom_call.1} parent=5 // pred_region
        %s2489 = ssub.s32 %s32, 2
        // Predicated region
        $region137: #{tpu_custom_call.1} parent=135 // pred_check
          %p2490 = pneg %p491
        $region138: #{tpu_custom_call.1} parent=135 // pred_check_branch
          %2492 = sbr.rel (%p2490) target = $region140
        $region139: #{tpu_custom_call.1} parent=135 // pred_region
          %s2493 = sand.u32 %s476, 1
          %s2494 = scalar_lea.sflag [#allocation6], %s2493
          %s2495 = sand.u32 %s476, 1
          %s2496 = smul.addr %s2495, 8
          %s2497 = scalar_lea.vmem [#allocation16], %s2496
          %2498 = dma.done %s2494, 128
        $region140: #{tpu_custom_call.1} parent=135 // pred_fallthru
          _
      $region136: #{tpu_custom_call.1} parent=5 // pred_fallthru
        _
    $region6: #{tpu_custom_call.1} parent=1 // loop_footer
      %s36 = sadd.s32 1, %s32
    $region7: #{tpu_custom_call.1} parent=1 // loop_footer_branch
      %31 = sbr.rel target = $region3
    $region8: #{tpu_custom_call.1} parent=1 // loop_exit
      _
    %2499 = vsyncpa [#allocation5], 1
    %s2500 = scalar_lea.sflag [#allocation5], 1
    %2501 = vsyncpa %s2500, 1
    %2502 = vsyncpa [#allocation8], 1
    %2503 = vsyncpa [#allocation11], 1
    %2504 = vsyncpa [#allocation14], 1
    %2505 = vsyncpa [#allocation6], 1
    %s2506 = scalar_lea.sflag [#allocation6], 1
    %2507 = vsyncpa %s2506, 1

</llo_original>
